<compile_context>
chip_gen: v5e
topology: v5e:2x2
jax: 0.10.0
libtpu: 0.0.40
codegen_flags: <defaults>
</compile_context>

<pallas_src>
import math

import jax
import jax.numpy as jnp
from jax import lax
from jax.experimental import pallas as pl
from jax.experimental.pallas import tpu as pltpu

HIDDEN_DIM = 128            # Zoidberg_GNN hidden_dim
FREQ_DIM = 256              # TimestepEmbedder.frequency_embedding_size
HALF = FREQ_DIM // 2        # 128
MAX_PERIOD = 10000.0
TIME_SCALE = 1000.0         # forward() calls time_embedder(timestep * 1000)
_NEG_LOG_MP_OVER_HALF = -math.log(MAX_PERIOD) / HALF
_LOG_TIME_SCALE = math.log(TIME_SCALE)


def _time_embedder_kernel(t_ref, w1_ref, b1_ref, w2_ref, b2_ref, out_ref):
    """One row-tile: sinusoidal timestep embedding + Linear -> SiLU -> Linear.

    t_ref:   (TILE, 1)          f32  raw timesteps (x1000 folded into freqs)
    w1_ref:  (FREQ_DIM, H)      bf16 first Linear weight (cos/sin inputs bounded)
    b1_ref:  (1, H)             f32
    w2_ref:  (H, H)             f32  second Linear weight kept f32 (accuracy)
    b2_ref:  (1, H)             f32
    out_ref: (TILE, H)          out dtype
    """
    # Frequency table with the x1000 scale folded into the exponent:
    #   1000 * exp(-ln(max_period) * i / half) == exp(ln(1000) - ln(max_period)*i/half)
    col = lax.broadcasted_iota(jnp.int32, (1, HALF), 1).astype(jnp.float32)
    freqs = jnp.exp(col * _NEG_LOG_MP_OVER_HALF + _LOG_TIME_SCALE)        # (1, HALF)
    args = t_ref[...] * freqs                                             # (TILE, HALF)

    # [cos | sin] built in-vreg; single K=256 bf16 matmul with f32 accumulation
    # (fills the 256-wide MXU contraction on v6e/v7x in one pass; one MRB
    # accumulator on v7x — no popped-partial VPU add).
    # TODO(synk): on v5e (4x128^2 MXU) a split K=128 form
    #             (cos @ W1[:128] + sin @ W1[128:]) avoids the 2-vreg-wide concat.
    emb = jnp.concatenate(
        [jnp.cos(args).astype(jnp.bfloat16), jnp.sin(args).astype(jnp.bfloat16)],
        axis=-1)                                                          # (TILE, 256)

    h = jnp.dot(emb, w1_ref[...], preferred_element_type=jnp.float32) + b1_ref[...]

    # SiLU: h * sigmoid(h), with the exp / reciprocal chain kept on the EUP slot.
    sig = pl.reciprocal(1.0 + jnp.exp(-h), approx=True)
    h = h * sig                                                           # f32

    # Second Linear fully in f32 (MXU is idle at this size; keeps embedding exact
    # enough for sensitive downstream layers).
    out = jnp.dot(h, w2_ref[...], preferred_element_type=jnp.float32) + b2_ref[...]
    out_ref[...] = out.astype(out_ref.dtype)


def prepare_kernel_params(params_f32):
    """One-time (out of the hot path) dtype prep of the MLP weights."""
    return {
        "w1": params_f32["w1"].astype(jnp.bfloat16),   # inputs bounded in [-1, 1]
        "b1": params_f32["b1"].astype(jnp.float32),
        "w2": params_f32["w2"].astype(jnp.float32),    # keep f32 (accuracy review)
        "b2": params_f32["b2"].astype(jnp.float32),
    }


def zoidberg_time_embed(timestep, kparams, *, tile=128, out_dtype=jnp.float32):
    """Equivalent of Zoidberg_GNN: time_emb = self.time_embedder(timestep * 1000).

    `timestep` may be any shape — e.g. the WHOLE sampling schedule (S, B) — and
    every row is embedded in one gridded pallas_call, so launch overhead and the
    weight DMA are paid once, not per diffusion step.  Set out_dtype=jnp.bfloat16
    to emit directly in the dtype the downstream GNN consumes.
    """
    lead_shape = timestep.shape
    flat = timestep.reshape(-1).astype(jnp.float32)
    n = flat.shape[0]
    n_tiles = pl.cdiv(n, tile)
    n_pad = n_tiles * tile
    if n_pad != n:
        flat = jnp.pad(flat, (0, n_pad - n))
    t = flat.reshape(n_pad, 1)

    cost = pl.CostEstimate(
        flops=2 * n_pad * (FREQ_DIM * HIDDEN_DIM + HIDDEN_DIM * HIDDEN_DIM),
        # exp for the freq table (HALF per tile) + sigmoid's exp and reciprocal;
        # sin/cos lower to VPU polynomials, not EUP transcendentals.
        transcendentals=n_tiles * HALF + 2 * n_pad * HIDDEN_DIM,
        bytes_accessed=(
            2 * FREQ_DIM * HIDDEN_DIM                 # bf16 W1
            + 4 * HIDDEN_DIM * HIDDEN_DIM             # f32 W2
            + 2 * HIDDEN_DIM * 4                      # f32 biases
            + n_pad * 4                               # timesteps
            + n_pad * HIDDEN_DIM * jnp.dtype(out_dtype).itemsize
        ),
    )

    # Weights/biases: grid-invariant blocks (constant index_map) -> DMA'd once,
    # VMEM-resident across all row tiles.
    def const2d(shape):
        return pl.BlockSpec(shape, lambda i: (0, 0))

    out = pl.pallas_call(
        _time_embedder_kernel,
        out_shape=jax.ShapeDtypeStruct((n_pad, HIDDEN_DIM), out_dtype),
        grid=(n_tiles,),
        in_specs=[
            pl.BlockSpec((tile, 1), lambda i: (i, 0)),      # timesteps, tiled by rows
            const2d((FREQ_DIM, HIDDEN_DIM)),                # W1 (bf16)
            const2d((1, HIDDEN_DIM)),                       # b1
            const2d((HIDDEN_DIM, HIDDEN_DIM)),              # W2 (f32)
            const2d((1, HIDDEN_DIM)),                       # b2
        ],
        out_specs=pl.BlockSpec((tile, HIDDEN_DIM), lambda i: (i, 0)),
        compiler_params=pltpu.CompilerParams(
            dimension_semantics=("parallel",)),             # v7x: shard rows over 2 TCs
        cost_estimate=cost,
    )(t, kparams["w1"], kparams["b1"], kparams["w2"], kparams["b2"])

    if n_pad != n:
        out = out[:n]
    return out.reshape(*lead_shape, HIDDEN_DIM)


def _reference_time_embed(timestep, params_f32):
    """Pure-JAX f32 reference (mirrors the PyTorch TimestepEmbedder exactly)."""
    t = timestep.astype(jnp.float32).reshape(-1) * TIME_SCALE
    freqs = jnp.exp(-math.log(MAX_PERIOD) * jnp.arange(HALF, dtype=jnp.float32) / HALF)
    args = t[:, None] * freqs[None]
    emb = jnp.concatenate([jnp.cos(args), jnp.sin(args)], axis=-1)
    h = emb @ params_f32["w1"] + params_f32["b1"]
    h = h * jax.nn.sigmoid(h)
    out = h @ params_f32["w2"] + params_f32["b2"]
    return out.reshape(*timestep.shape, HIDDEN_DIM)


def init_params(key):
    """Deterministic parameter init matching nn.Linear shapes (stored transposed)."""
    k1, k2, k3, k4 = jax.random.split(key, 4)
    s1 = 1.0 / math.sqrt(FREQ_DIM)
    s2 = 1.0 / math.sqrt(HIDDEN_DIM)
    return {
        "w1": jax.random.uniform(k1, (FREQ_DIM, HIDDEN_DIM), jnp.float32, -s1, s1),
        "b1": jax.random.uniform(k2, (1, HIDDEN_DIM), jnp.float32, -s1, s1),
        "w2": jax.random.uniform(k3, (HIDDEN_DIM, HIDDEN_DIM), jnp.float32, -s2, s2),
        "b2": jax.random.uniform(k4, (1, HIDDEN_DIM), jnp.float32, -s2, s2),
    }


if __name__ == "__main__":
    key = jax.random.PRNGKey(0)
    pkey, tkey = jax.random.split(key)

    params = init_params(pkey)
    kparams = prepare_kernel_params(params)        # one-time dtype prep

    # Whole diffusion sampling schedule batched into one call:
    # S = 32 sampling steps x B = 8 batch elements -> 256 rows, tile=128, grid=(2,).
    S, B = 32, 8
    timestep = jax.random.uniform(tkey, (S, B), jnp.float32)

    out = zoidberg_time_embed(timestep, kparams, tile=128)
    out = jax.block_until_ready(out)

    ref = _reference_time_embed(timestep, params)
    assert out.shape == (S, B, HIDDEN_DIM)
    # bf16 W1 / first-GEMM operand + approx reciprocal in sigmoid -> loose-ish tol.
    assert jnp.allclose(out, ref, atol=2e-2, rtol=2e-2), "mismatch vs JAX reference"

    print("KERNEL_OK")
</pallas_src>

<mosaic_0001>
module attributes {stable_mosaic.version = 11 : i64} {
  func.func @_time_embedder_kernel(%arg0: i32, %arg1: memref<128x1xf32, #tpu.memory_space<vmem>>, %arg2: memref<256x128xbf16, #tpu.memory_space<vmem>>, %arg3: memref<1x128xf32, #tpu.memory_space<vmem>>, %arg4: memref<128x128xf32, #tpu.memory_space<vmem>>, %arg5: memref<1x128xf32, #tpu.memory_space<vmem>>, %arg6: memref<128x128xf32, #tpu.memory_space<vmem>>) attributes {dimension_semantics = [#tpu.dimension_semantics<parallel>], iteration_bounds = array<i64: 2>, scalar_prefetch = 0 : i64, scratch_operands = 0 : i64, tpu.core_type = #tpu.core_type<tc>, window_params = [{transform_indices = @transform_0, window_bounds = array<i64: 128, 1>}, {pipeline_mode = #tpu.pipeline_mode<synchronous>, transform_indices = @transform_1, window_bounds = array<i64: 256, 128>}, {pipeline_mode = #tpu.pipeline_mode<synchronous>, transform_indices = @transform_2, window_bounds = array<i64: 1, 128>}, {pipeline_mode = #tpu.pipeline_mode<synchronous>, transform_indices = @transform_3, window_bounds = array<i64: 128, 128>}, {pipeline_mode = #tpu.pipeline_mode<synchronous>, transform_indices = @transform_4, window_bounds = array<i64: 1, 128>}, {transform_indices = @transform_5, window_bounds = array<i64: 128, 128>}]} {
    %0 = tpu.iota {dimensions = array<i32: 1>} : vector<1x128xi32>
    %1 = arith.sitofp %0 : vector<1x128xi32> to vector<1x128xf32>
    %cst = arith.constant -0.0719557852 : f32
    %2 = vector.broadcast %cst : f32 to vector<1x128xf32>
    %3 = arith.mulf %1, %2 : vector<1x128xf32>
    %cst_0 = arith.constant 6.90775537 : f32
    %4 = vector.broadcast %cst_0 : f32 to vector<1x128xf32>
    %5 = arith.addf %3, %4 : vector<1x128xf32>
    %6 = math.exp %5 : vector<1x128xf32>
    %c0 = arith.constant 0 : index
    %c0_1 = arith.constant 0 : index
    %7 = vector.load %arg1[%c0, %c0_1] : memref<128x1xf32, #tpu.memory_space<vmem>>, vector<128x1xf32>
    %8 = vector.broadcast %7 : vector<128x1xf32> to vector<128x128xf32>
    %9 = vector.broadcast %6 : vector<1x128xf32> to vector<128x128xf32>
    %10 = arith.mulf %8, %9 : vector<128x128xf32>
    %11 = math.cos %10 : vector<128x128xf32>
    %12 = arith.truncf %11 : vector<128x128xf32> to vector<128x128xbf16>
    %13 = math.sin %10 : vector<128x128xf32>
    %14 = arith.truncf %13 : vector<128x128xf32> to vector<128x128xbf16>
    %15 = tpu.concatenate %12, %14 in 1 : vector<128x128xbf16>, vector<128x128xbf16> -> vector<128x256xbf16>
    %c0_2 = arith.constant 0 : index
    %c0_3 = arith.constant 0 : index
    %16 = vector.load %arg2[%c0_2, %c0_3] : memref<256x128xbf16, #tpu.memory_space<vmem>>, vector<256x128xbf16>
    %cst_4 = arith.constant dense<0.000000e+00> : vector<128x128xf32>
    %17 = tpu.matmul %15, %16, %cst_4 {dimension_numbers = #tpu.dot_dimension_numbers<[1], [0], [0], [1], [0, 0, 1, 1], [], []>} : vector<128x256xbf16>, vector<256x128xbf16>, vector<128x128xf32> -> vector<128x128xf32>
    %c0_5 = arith.constant 0 : index
    %c0_6 = arith.constant 0 : index
    %18 = vector.load %arg3[%c0_5, %c0_6] : memref<1x128xf32, #tpu.memory_space<vmem>>, vector<1x128xf32>
    %19 = vector.broadcast %18 : vector<1x128xf32> to vector<128x128xf32>
    %20 = arith.addf %17, %19 : vector<128x128xf32>
    %cst_7 = arith.constant 0.000000e+00 : f32
    %21 = vector.broadcast %cst_7 : f32 to vector<128x128xf32>
    %22 = arith.subf %21, %20 : vector<128x128xf32>
    %23 = math.exp %22 : vector<128x128xf32>
    %cst_8 = arith.constant 1.000000e+00 : f32
    %24 = vector.broadcast %cst_8 : f32 to vector<128x128xf32>
    %25 = arith.addf %24, %23 : vector<128x128xf32>
    %26 = tpu.reciprocal %25 {approx = true} : vector<128x128xf32> -> vector<128x128xf32>
    %27 = arith.mulf %20, %26 : vector<128x128xf32>
    %c0_9 = arith.constant 0 : index
    %c0_10 = arith.constant 0 : index
    %28 = vector.load %arg4[%c0_9, %c0_10] : memref<128x128xf32, #tpu.memory_space<vmem>>, vector<128x128xf32>
    %cst_11 = arith.constant dense<0.000000e+00> : vector<128x128xf32>
    %29 = tpu.matmul %27, %28, %cst_11 {dimension_numbers = #tpu.dot_dimension_numbers<[1], [0], [0], [1], [0, 0, 1, 1], [], []>} : vector<128x128xf32>, vector<128x128xf32>, vector<128x128xf32> -> vector<128x128xf32>
    %c0_12 = arith.constant 0 : index
    %c0_13 = arith.constant 0 : index
    %30 = vector.load %arg5[%c0_12, %c0_13] : memref<1x128xf32, #tpu.memory_space<vmem>>, vector<1x128xf32>
    %31 = vector.broadcast %30 : vector<1x128xf32> to vector<128x128xf32>
    %32 = arith.addf %29, %31 : vector<128x128xf32>
    %c0_14 = arith.constant 0 : index
    %c0_15 = arith.constant 0 : index
    %33 = vector.load %arg6[%c0_14, %c0_15] : memref<128x128xf32, #tpu.memory_space<vmem>>, vector<128x128xf32>
    tpu.vector_store %arg6[%c0_14, %c0_15], %32 {strides = array<i32>} : memref<128x128xf32, #tpu.memory_space<vmem>>, vector<128x128xf32>,
    return
  }
  func.func @transform_0(%arg0: i32) -> (i32, i32) {
    %c0_i32 = arith.constant 0 : i32
    %c0_i32_0 = arith.constant 0 : i32
    return %arg0, %c0_i32 : i32, i32
  }
  func.func @transform_1(%arg0: i32) -> (i32, i32) {
    %c0_i32 = arith.constant 0 : i32
    %c0_i32_0 = arith.constant 0 : i32
    %c0_i32_1 = arith.constant 0 : i32
    return %c0_i32, %c0_i32_0 : i32, i32
  }
  func.func @transform_2(%arg0: i32) -> (i32, i32) {
    %c0_i32 = arith.constant 0 : i32
    %c0_i32_0 = arith.constant 0 : i32
    %c0_i32_1 = arith.constant 0 : i32
    return %c0_i32, %c0_i32_0 : i32, i32
  }
  func.func @transform_3(%arg0: i32) -> (i32, i32) {
    %c0_i32 = arith.constant 0 : i32
    %c0_i32_0 = arith.constant 0 : i32
    %c0_i32_1 = arith.constant 0 : i32
    return %c0_i32, %c0_i32_0 : i32, i32
  }
  func.func @transform_4(%arg0: i32) -> (i32, i32) {
    %c0_i32 = arith.constant 0 : i32
    %c0_i32_0 = arith.constant 0 : i32
    %c0_i32_1 = arith.constant 0 : i32
    return %c0_i32, %c0_i32_0 : i32, i32
  }
  func.func @transform_5(%arg0: i32) -> (i32, i32) {
    %c0_i32 = arith.constant 0 : i32
    %c0_i32_0 = arith.constant 0 : i32
    return %arg0, %c0_i32 : i32, i32
  }
}

</mosaic_0001>

<llo_original>
// kernel: tpu_custom_call.1
$region0: #{tpu_custom_call.1}
  #allocation0 [shape = 'u32[]', space=smem, size = 0x4, offset = 0x4, fixed_abs, tag = 'smem constant byte address 0x4 - core index']
  #allocation1 [shape = 'u32[72,128]{1,0:T(1,128)}', space=vmem, size = 0x9000, scoped, tag = 'internal scratch']
  %s0 = inlined_call_operand.vmem [shape: f32[256,1], index: 0, kind: input, shape index: {}]
  %s1 = inlined_call_operand.vmem [shape: bf16[256,128], index: 1, kind: input, shape index: {}]
  %s2 = inlined_call_operand.vmem [shape: f32[1,128], index: 2, kind: input, shape index: {}]
  %s3 = inlined_call_operand.vmem [shape: f32[128,128], index: 3, kind: input, shape index: {}]
  %s4 = inlined_call_operand.vmem [shape: f32[1,128], index: 4, kind: input, shape index: {}]
  %s5 = inlined_call_operand.hbm [shape: f32[256,128], index: 5, kind: output, shape index: {}]
  %s6 = sld [smem:[#allocation0]]
  $region53: #{tpu_custom_call.1} parent=0
    _
  %s8 = ssub.s32 1, %s6
  %s9 = scalar_select 0, %s8, %s6
  $region1: #{tpu_custom_call.1} parent=0
    #allocation2 [shape = 'u8[131072]{0}', space=vmem, size = 0x20000, scoped, tag = 'output window, operand 0']
    #allocation3 [shape = 's32[2]{0}', space=sflag, size = 0x8, scoped, tag = 'scoped memory for tpu_custom_call.1']
    %10 = vsyncpa [#allocation3], 0
    %s11 = scalar_lea.sflag [#allocation3], 1
    %12 = vsyncpa %s11, 0
    loop: start=0, step=1, limit=4
    $region2: #{tpu_custom_call.1} parent=1 // loop_pre_header
      _
    $region3: #{tpu_custom_call.1} parent=1 // loop_header
      %s14 = sphi 0, %s18
      %p15 = scmp.ge.s32.totalorder %s14, 4
      %s24 = sphi 0, %s26
      %s27 = sphi 0, %s24
      %s28 = sphi 0, %s27
      %s44 = sphi 0, %s28
      %s48 = sphi 0, %s48
      %s50 = sphi 0, %s48
      %s51 = sphi 0, %s50
      %s65 = sphi 0, %s51
      %s69 = sphi 0, %s69
      %s71 = sphi 0, %s69
      %s72 = sphi 0, %s71
      %s86 = sphi 0, %s72
      %s90 = sphi 0, %s90
      %s92 = sphi 0, %s90
      %s93 = sphi 0, %s92
      %s107 = sphi 0, %s93
      %s111 = sphi 0, %s111
      %s113 = sphi 0, %s111
      %s114 = sphi 0, %s113
      %s128 = sphi 0, %s114
      %s134 = sphi 0, %s136
      %s137 = sphi 0, %s134
      %s138 = sphi 0, %s137
      %s154 = sphi 0, %s138
    $region4: #{tpu_custom_call.1} parent=1 // loop_header_branch
      %17 = sbr.rel (%p15) target = $region8
    $region5: #{tpu_custom_call.1} parent=1 // loop_body
      %s19 = ssub.s32 %s14, 1
      %s20 = ssub.s32 %s14, 2
      %s21 = sadd.s32 %s14, 1
      %s22 = ssub.s32 %s14, %s21
      %p23 = scmp.eq.s32.totalorder %s22, 0
      %s25 = sadd.s32 %s24, 1
      %s26 = scalar_select %p23, %s24, %s25
      %p29 = pneg %p23
      %p30 = scmp.eq.s32.totalorder %s14, 1
      %p31 = por %p29, %p30
      %p32 = scmp.ne.s32.totalorder %s24, %s27
      %p33 = scmp.eq.s32.totalorder %s14, 0
      %p34 = por %p32, %p33
      %p35 = scmp.ne.s32.totalorder %s24, %s27
      %p36 = scmp.eq.s32.totalorder %s19, 1
      %p37 = por %p35, %p36
      %p38 = scmp.ne.s32.totalorder %s27, %s28
      %p39 = scmp.eq.s32.totalorder %s19, 0
      %p40 = por %p38, %p39
      %p41 = scmp.ne.s32.totalorder %s27, %s28
      %p42 = scmp.eq.s32.totalorder %s20, 1
      %p43 = por %p41, %p42
      %p45 = scmp.ne.s32.totalorder %s28, %s44
      %p46 = scmp.eq.s32.totalorder %s20, 0
      %p47 = por %p45, %p46
      %s49 = sadd.s32 %s48, 1
      %p52 = scmp.eq.s32.totalorder %s14, 1
      %p53 = scmp.ne.s32.totalorder %s48, %s50
      %p54 = scmp.eq.s32.totalorder %s14, 0
      %p55 = por %p53, %p54
      %p56 = scmp.ne.s32.totalorder %s48, %s50
      %p57 = scmp.eq.s32.totalorder %s19, 1
      %p58 = por %p56, %p57
      %p59 = scmp.ne.s32.totalorder %s50, %s51
      %p60 = scmp.eq.s32.totalorder %s19, 0
      %p61 = por %p59, %p60
      %p62 = scmp.ne.s32.totalorder %s50, %s51
      %p63 = scmp.eq.s32.totalorder %s20, 1
      %p64 = por %p62, %p63
      %p66 = scmp.ne.s32.totalorder %s51, %s65
      %p67 = scmp.eq.s32.totalorder %s20, 0
      %p68 = por %p66, %p67
      %s70 = sadd.s32 %s69, 1
      %p73 = scmp.eq.s32.totalorder %s14, 1
      %p74 = scmp.ne.s32.totalorder %s69, %s71
      %p75 = scmp.eq.s32.totalorder %s14, 0
      %p76 = por %p74, %p75
      %p77 = scmp.ne.s32.totalorder %s69, %s71
      %p78 = scmp.eq.s32.totalorder %s19, 1
      %p79 = por %p77, %p78
      %p80 = scmp.ne.s32.totalorder %s71, %s72
      %p81 = scmp.eq.s32.totalorder %s19, 0
      %p82 = por %p80, %p81
      %p83 = scmp.ne.s32.totalorder %s71, %s72
      %p84 = scmp.eq.s32.totalorder %s20, 1
      %p85 = por %p83, %p84
      %p87 = scmp.ne.s32.totalorder %s72, %s86
      %p88 = scmp.eq.s32.totalorder %s20, 0
      %p89 = por %p87, %p88
      %s91 = sadd.s32 %s90, 1
      %p94 = scmp.eq.s32.totalorder %s14, 1
      %p95 = scmp.ne.s32.totalorder %s90, %s92
      %p96 = scmp.eq.s32.totalorder %s14, 0
      %p97 = por %p95, %p96
      %p98 = scmp.ne.s32.totalorder %s90, %s92
      %p99 = scmp.eq.s32.totalorder %s19, 1
      %p100 = por %p98, %p99
      %p101 = scmp.ne.s32.totalorder %s92, %s93
      %p102 = scmp.eq.s32.totalorder %s19, 0
      %p103 = por %p101, %p102
      %p104 = scmp.ne.s32.totalorder %s92, %s93
      %p105 = scmp.eq.s32.totalorder %s20, 1
      %p106 = por %p104, %p105
      %p108 = scmp.ne.s32.totalorder %s93, %s107
      %p109 = scmp.eq.s32.totalorder %s20, 0
      %p110 = por %p108, %p109
      %s112 = sadd.s32 %s111, 1
      %p115 = scmp.eq.s32.totalorder %s14, 1
      %p116 = scmp.ne.s32.totalorder %s111, %s113
      %p117 = scmp.eq.s32.totalorder %s14, 0
      %p118 = por %p116, %p117
      %p119 = scmp.ne.s32.totalorder %s111, %s113
      %p120 = scmp.eq.s32.totalorder %s19, 1
      %p121 = por %p119, %p120
      %p122 = scmp.ne.s32.totalorder %s113, %s114
      %p123 = scmp.eq.s32.totalorder %s19, 0
      %p124 = por %p122, %p123
      %p125 = scmp.ne.s32.totalorder %s113, %s114
      %p126 = scmp.eq.s32.totalorder %s20, 1
      %p127 = por %p125, %p126
      %p129 = scmp.ne.s32.totalorder %s114, %s128
      %p130 = scmp.eq.s32.totalorder %s20, 0
      %p131 = por %p129, %p130
      %s132 = ssub.s32 %s14, %s21
      %p133 = scmp.eq.s32.totalorder %s132, 0
      %s135 = sadd.s32 %s134, 1
      %s136 = scalar_select %p133, %s134, %s135
      %p139 = pneg %p133
      %p140 = scmp.eq.s32.totalorder %s14, 1
      %p141 = por %p139, %p140
      %p142 = scmp.ne.s32.totalorder %s134, %s137
      %p143 = scmp.eq.s32.totalorder %s14, 0
      %p144 = por %p142, %p143
      %p145 = scmp.ne.s32.totalorder %s134, %s137
      %p146 = scmp.eq.s32.totalorder %s19, 1
      %p147 = por %p145, %p146
      %p148 = scmp.ne.s32.totalorder %s137, %s138
      %p149 = scmp.eq.s32.totalorder %s19, 0
      %p150 = por %p148, %p149
      %p151 = scmp.ne.s32.totalorder %s137, %s138
      %p152 = scmp.eq.s32.totalorder %s20, 1
      %p153 = por %p151, %p152
      %p155 = scmp.ne.s32.totalorder %s138, %s154
      %p156 = scmp.eq.s32.totalorder %s20, 0
      %p157 = por %p155, %p156
      %p158 = scmp.le.s32.totalorder 1, %s14
      %p159 = scmp.lt.s32.totalorder %s14, 3
      %p160 = pnand %p158, %p159
      %p161 = pneg %p160
      // Predicated region
      $region9: #{tpu_custom_call.1} parent=5 // pred_check
        _
      $region10: #{tpu_custom_call.1} parent=5 // pred_check_branch
        %163 = sbr.rel (%p160) target = $region12
      $region11: #{tpu_custom_call.1} parent=5 // pred_region
        %s164 = ssub.s32 %s14, 1
        // Predicated region
        $region13: #{tpu_custom_call.1} parent=11 // pred_check
          %p165 = pneg %p61
        $region14: #{tpu_custom_call.1} parent=11 // pred_check_branch
          %167 = sbr.rel (%p165) target = $region16
        $region15: #{tpu_custom_call.1} parent=11 // pred_region
          _
        $region16: #{tpu_custom_call.1} parent=11 // pred_fallthru
          _
        // Predicated region
        $region17: #{tpu_custom_call.1} parent=11 // pred_check
          %p168 = pneg %p82
        $region18: #{tpu_custom_call.1} parent=11 // pred_check_branch
          %170 = sbr.rel (%p168) target = $region20
        $region19: #{tpu_custom_call.1} parent=11 // pred_region
          _
        $region20: #{tpu_custom_call.1} parent=11 // pred_fallthru
          _
        // Predicated region
        $region21: #{tpu_custom_call.1} parent=11 // pred_check
          %p171 = pneg %p103
        $region22: #{tpu_custom_call.1} parent=11 // pred_check_branch
          %173 = sbr.rel (%p171) target = $region24
        $region23: #{tpu_custom_call.1} parent=11 // pred_region
          _
        $region24: #{tpu_custom_call.1} parent=11 // pred_fallthru
          _
        // Predicated region
        $region25: #{tpu_custom_call.1} parent=11 // pred_check
          %p174 = pneg %p124
        $region26: #{tpu_custom_call.1} parent=11 // pred_check_branch
          %176 = sbr.rel (%p174) target = $region28
        $region27: #{tpu_custom_call.1} parent=11 // pred_region
          _
        $region28: #{tpu_custom_call.1} parent=11 // pred_fallthru
          _
      $region12: #{tpu_custom_call.1} parent=5 // pred_fallthru
        _
      %p177 = scmp.lt.s32.totalorder %s14, 2
      // Predicated region
      $region29: #{tpu_custom_call.1} parent=5 // pred_check
        %p178 = pneg %p177
      $region30: #{tpu_custom_call.1} parent=5 // pred_check_branch
        %180 = sbr.rel (%p178) target = $region32
      $region31: #{tpu_custom_call.1} parent=5 // pred_region
        // Predicated region
        $region33: #{tpu_custom_call.1} parent=31 // pred_check
          %p181 = pneg %p34
        $region34: #{tpu_custom_call.1} parent=31 // pred_check_branch
          %183 = sbr.rel (%p181) target = $region36
        $region35: #{tpu_custom_call.1} parent=31 // pred_region
          %s184 = smul.u32 16, %s14
          %p185 = scmp.lt.s32.totalorder %s184, 31
          %s186 = scalar_select %p185, %s184, 31
          %s187 = smul.addr %s186, 8
          %s188 = scalar_lea.vmem %s0, %s187
          %s189 = smul.u32 16, %s14
        $region36: #{tpu_custom_call.1} parent=31 // pred_fallthru
          _
      $region32: #{tpu_custom_call.1} parent=5 // pred_fallthru
        _
      %p190 = scmp.le.s32.totalorder 1, %s14
      %p191 = scmp.lt.s32.totalorder %s14, 3
      %p192 = pnand %p190, %p191
      %p193 = pneg %p192
      // Predicated region
      $region37: #{tpu_custom_call.1} parent=5 // pred_check
        _
      $region38: #{tpu_custom_call.1} parent=5 // pred_check_branch
        %195 = sbr.rel (%p192) target = $region40
      $region39: #{tpu_custom_call.1} parent=5 // pred_region
        %s196 = ssub.s32 %s14, 1
        %s197 = smul.u32 16, %s19
        %p198 = scmp.lt.s32.totalorder %s197, 31
        %s199 = scalar_select %p198, %s197, 31
        %s200 = smul.addr %s199, 8
        %s201 = scalar_lea.vmem %s0, %s200
        %p202 = pneg %p40
        %p203 = pneg %p37
        %p204 = pneg %p61
        %p205 = pneg %p58
        %p206 = pneg %p82
        %p207 = pneg %p79
        %p208 = pneg %p103
        %p209 = pneg %p100
        %p210 = pneg %p124
        %p211 = pneg %p121
        %p212 = pneg %p150
        %p213 = pneg %p147
        %s214 = sand.u32 %s137, 1
        %s215 = scalar_lea.sflag [#allocation3], %s214
        %s216 = sand.u32 %s137, 1
        %s217 = smul.addr %s216, 128
        %s218 = scalar_lea.vmem [#allocation2], %s217
        %s219 = smul.u32 16, %s19
        %p220 = scmp.lt.s32.totalorder %s219, 31
        %s221 = scalar_select %p220, %s219, 31
        %s222 = smul.addr %s221, 8
        %s223 = scalar_lea.vmem %s0, %s222
        %s224 = smul.u32 16, %s19
        %s225 = smul.u32 16, %s19
        %v226 = vlaneseq
        %v227 = vand.u32 %v226, 127
        %v228 = vcvt.s32.f32 %v227
        %v229 = vmul.f32 %v228, -0.071955785
        %v230 = vadd.f32 %v229, 6.9077554
        %v231 = vmul.f32 %v230, 1.442695
        %v232 = vpow.pop %v231
        %v233 = vld [vmem:[%s223] sm:$0xff]
        %v234 = vld [vmem:[%s223 + $0x8] sm:$0xff]
        %v235 = vld [vmem:[%s223 + $0x10] sm:$0xff]
        %v236 = vld [vmem:[%s223 + $0x18] sm:$0xff]
        %v237 = vld [vmem:[%s223 + $0x20] sm:$0xff]
        %v238 = vld [vmem:[%s223 + $0x28] sm:$0xff]
        %v239 = vld [vmem:[%s223 + $0x30] sm:$0xff]
        %v240 = vld [vmem:[%s223 + $0x38] sm:$0xff]
        %v241 = vld [vmem:[%s223 + $0x40] sm:$0xff]
        %v242 = vld [vmem:[%s223 + $0x48] sm:$0xff]
        %v243 = vld [vmem:[%s223 + $0x50] sm:$0xff]
        %v244 = vld [vmem:[%s223 + $0x58] sm:$0xff]
        %v245 = vld [vmem:[%s223 + $0x60] sm:$0xff]
        %v246 = vld [vmem:[%s223 + $0x68] sm:$0xff]
        %v247 = vld [vmem:[%s223 + $0x70] sm:$0xff]
        %v248 = vld [vmem:[%s223 + $0x78] sm:$0xff]
        %250 = vset.pattern.permute.xlu0 0
        %251 = vperm.xlu0 %250, %v233
        %v252 = vpop.permute.xlu0 %251
        %255 = vset.pattern.permute.xlu0 0
        %256 = vperm.xlu0 %255, %v234
        %v257 = vpop.permute.xlu0 %256
        %260 = vset.pattern.permute.xlu0 0
        %261 = vperm.xlu0 %260, %v235
        %v262 = vpop.permute.xlu0 %261
        %265 = vset.pattern.permute.xlu0 0
        %266 = vperm.xlu0 %265, %v236
        %v267 = vpop.permute.xlu0 %266
        %270 = vset.pattern.permute.xlu0 0
        %271 = vperm.xlu0 %270, %v237
        %v272 = vpop.permute.xlu0 %271
        %275 = vset.pattern.permute.xlu0 0
        %276 = vperm.xlu0 %275, %v238
        %v277 = vpop.permute.xlu0 %276
        %280 = vset.pattern.permute.xlu0 0
        %281 = vperm.xlu0 %280, %v239
        %v282 = vpop.permute.xlu0 %281
        %285 = vset.pattern.permute.xlu0 0
        %286 = vperm.xlu0 %285, %v240
        %v287 = vpop.permute.xlu0 %286
        %290 = vset.pattern.permute.xlu0 0
        %291 = vperm.xlu0 %290, %v241
        %v292 = vpop.permute.xlu0 %291
        %295 = vset.pattern.permute.xlu0 0
        %296 = vperm.xlu0 %295, %v242
        %v297 = vpop.permute.xlu0 %296
        %300 = vset.pattern.permute.xlu0 0
        %301 = vperm.xlu0 %300, %v243
        %v302 = vpop.permute.xlu0 %301
        %305 = vset.pattern.permute.xlu0 0
        %306 = vperm.xlu0 %305, %v244
        %v307 = vpop.permute.xlu0 %306
        %310 = vset.pattern.permute.xlu0 0
        %311 = vperm.xlu0 %310, %v245
        %v312 = vpop.permute.xlu0 %311
        %315 = vset.pattern.permute.xlu0 0
        %316 = vperm.xlu0 %315, %v246
        %v317 = vpop.permute.xlu0 %316
        %320 = vset.pattern.permute.xlu0 0
        %321 = vperm.xlu0 %320, %v247
        %v322 = vpop.permute.xlu0 %321
        %325 = vset.pattern.permute.xlu0 0
        %326 = vperm.xlu0 %325, %v248
        %v327 = vpop.permute.xlu0 %326
        %v329 = vmul.f32 %v252, %v232
        %v330 = vmul.f32 %v257, %v232
        %v331 = vmul.f32 %v262, %v232
        %v332 = vmul.f32 %v267, %v232
        %v333 = vmul.f32 %v272, %v232
        %v334 = vmul.f32 %v277, %v232
        %v335 = vmul.f32 %v282, %v232
        %v336 = vmul.f32 %v287, %v232
        %v337 = vmul.f32 %v292, %v232
        %v338 = vmul.f32 %v297, %v232
        %v339 = vmul.f32 %v302, %v232
        %v340 = vmul.f32 %v307, %v232
        %v341 = vmul.f32 %v312, %v232
        %v342 = vmul.f32 %v317, %v232
        %v343 = vmul.f32 %v322, %v232
        %v344 = vmul.f32 %v327, %v232
        %v345 = vand.u32 2147483647, %v329
        %vm346 = vcmp.le.f32.partialorder %v345, 0.7853982
        %vm347 = vcmp.lt.s32.totalorder %v329, 0
        %v348 = vand.u32 %v329, 2139095040
        %v349 = vshrl.u32 %v348, 23
        %v350 = vsub.s32 %v349, 127
        %v351 = vand.u32 2147483647, %v329
        %v352 = vand.u32 %v351, 8388607
        %v353 = vor.u32 %v352, 8388608
        %v354 = vsub.s32 0, %v353
        %v355 = vadd.s32 %v350, 1
        %vm356 = vcmp.gt.s32.totalorder %v355, 0
        %v357 = vsel %vm356, %v355, 0
        %v358 = vshrl.u32 %v357, 5
        %v359 = vand.u32 %v357, 31
        %v360 = vsub.s32 32, %v359
        %v361 = vshrl.u32 683565275, %v360
        %v362 = vshll.u32 683565275, %v359
        %v363 = vshrl.u32 2475754826, %v360
        %v364 = vor.u32 %v362, %v363
        %v365 = vshll.u32 2475754826, %v359
        %v366 = vshrl.u32 2131351028, %v360
        %v367 = vor.u32 %v365, %v366
        %v368 = vshll.u32 2131351028, %v359
        %v369 = vshrl.u32 2102212464, %v360
        %v370 = vor.u32 %v368, %v369
        %v371 = vshll.u32 2102212464, %v359
        %v372 = vshrl.u32 920167782, %v360
        %v373 = vor.u32 %v371, %v372
        %v374 = vshll.u32 920167782, %v359
        %v375 = vshrl.u32 1326507024, %v360
        %v376 = vor.u32 %v374, %v375
        %vm377 = vcmp.lt.s32.totalorder %v358, 1
        %vm378 = vcmp.lt.s32.totalorder %v358, 2
        %vm379 = vcmp.lt.s32.totalorder %v358, 3
        %vm380 = vcmp.lt.s32.totalorder %v358, 4
        %v381 = vsel %vm377, %v361, %v364
        %v382 = vsel %vm380, %v370, 2102212464
        %v383 = vsel %vm379, %v367, %v382
        %v384 = vsel %vm378, %v381, %v383
        %v385 = vsel %vm377, %v364, %v367
        %v386 = vsel %vm380, %v373, 920167782
        %v387 = vsel %vm379, %v370, %v386
        %v388 = vsel %vm378, %v385, %v387
        %v389 = vsel %vm377, %v367, %v370
        %v390 = vsel %vm380, %v376, 1326507024
        %v391 = vsel %vm379, %v373, %v390
        %v392 = vsel %vm378, %v389, %v391
        %v393 = vshll.u32 %v353, 8
        %v394 = vand.u32 %v393, 65535
        %v395 = vshrl.u32 %v393, 16
        %v396 = vand.u32 %v392, 65535
        %v397 = vshrl.u32 %v392, 16
        %v398 = vmul.u32 %v394, %v396
        %v399 = vmul.u32 %v394, %v397
        %v400 = vmul.u32 %v395, %v396
        %v401 = vmul.u32 %v395, %v397
        %v402 = vshll.u32 %v399, 16
        %v403 = vshrl.u32 %v399, 16
        %v404 = vshll.u32 %v400, 16
        %v405 = vshrl.u32 %v400, 16
        %vm406 = vc.u32 %v398, %v402
        %v407 = vsel %vm406, 1, 0
        %v408 = vadd.s32 %v398, %v402
        %v409 = vadd.s32 %v401, %v407
        %vm410 = vc.u32 %v408, %v404
        %v411 = vsel %vm410, 1, 0
        %v412 = vadd.s32 %v408, %v404
        %v413 = vadd.s32 %v409, %v411
        %v414 = vadd.s32 %v413, %v403
        %v415 = vadd.s32 %v414, %v405
        %v416 = vand.u32 %v393, 65535
        %v417 = vshrl.u32 %v393, 16
        %v418 = vand.u32 %v388, 65535
        %v419 = vshrl.u32 %v388, 16
        %v420 = vmul.u32 %v416, %v418
        %v421 = vmul.u32 %v416, %v419
        %v422 = vmul.u32 %v417, %v418
        %v423 = vmul.u32 %v417, %v419
        %v424 = vshll.u32 %v421, 16
        %v425 = vshrl.u32 %v421, 16
        %v426 = vshll.u32 %v422, 16
        %v427 = vshrl.u32 %v422, 16
        %vm428 = vc.u32 %v420, %v424
        %v429 = vsel %vm428, 1, 0
        %v430 = vadd.s32 %v420, %v424
        %v431 = vadd.s32 %v423, %v429
        %vm432 = vc.u32 %v430, %v426
        %v433 = vsel %vm432, 1, 0
        %v434 = vadd.s32 %v430, %v426
        %v435 = vadd.s32 %v431, %v433
        %v436 = vadd.s32 %v435, %v425
        %v437 = vadd.s32 %v436, %v427
        %v438 = vmul.u32 %v393, %v384
        %v439 = vadd.s32 %v415, %v434
        %vm440 = vc.u32 %v415, %v434
        %v441 = vadd.s32 %v437, 1
        %v442 = vsel %vm440, %v441, %v437
        %v443 = vadd.s32 %v438, %v442
        %v444 = vadd.s32 %v443, 536870912
        %v445 = vshrl.u32 %v444, 30
        %v446 = vshll.u32 %v445, 30
        %v447 = vsub.s32 %v443, %v446
        %vm448 = vcmp.lt.s32.totalorder %v447, 0
        %v449 = vsub.s32 0, %v447
        %v450 = vsel %vm448, %v449, %v447
        %v451 = vclz %v450
        %v452 = vsub.s32 %v451, 2
        %vm453 = vcmp.gt.s32.totalorder 0, %v452
        %v454 = vsel %vm453, 0, %v452
        %v455 = vsub.s32 32, %v454
        %v456 = vshll.u32 %v447, %v454
        %v457 = vshrl.u32 %v439, %v455
        %v458 = vor.u32 %v456, %v457
        %v459 = vsub.s32 4294967266, %v454
        %v460 = vadd.s32 %v459, 127
        %v461 = vshll.u32 %v460, 23
        %v462 = vor.u32 4788187, %v461
        %v463 = vand.u32 2147483647, %v462
        %v465 = vcvt.s32.f32 %v458
        %v466 = vmul.f32 %v465, %v463
        %v467 = vxor.u32 %v466, 2147483648
        %v468 = vsel %vm347, %v467, %v466
        %v469 = vsub.s32 4, %v445
        %v470 = vsel %vm347, %v469, %v445
        %v471 = vsel %vm346, %v329, %v468
        %v472 = vsel %vm346, 0, %v470
        %v473 = vmul.f32 %v471, %v471
        %v474 = vmul.f32 %v473, -0.001358992
        %v475 = vadd.f32 %v474, 0.041655596
        %v476 = vmul.f32 %v473, %v475
        %v477 = vadd.f32 %v476, -0.4999988
        %v478 = vmul.f32 %v473, %v477
        %v479 = vadd.f32 1.0, %v478
        %v480 = vmul.f32 %v471, %v471
        %v481 = vmul.f32 %v480, -0.00019511016
        %v482 = vadd.f32 %v481, 0.008332121
        %v483 = vmul.f32 %v480, %v482
        %v484 = vadd.f32 %v483, -0.16666654
        %v485 = vmul.f32 %v480, %v484
        %v486 = vadd.f32 %v485, 1.0
        %v487 = vmul.f32 %v486, %v471
        %vm488 = vweird.f32 %v329
        %v489 = vand.u32 %v472, 3
        %vm490 = vcmp.lt.s32.totalorder %v489, 2
        %vm491 = vcmp.eq.s32.totalorder %v489, 0
        %v492 = vxor.u32 %v487, 2147483648
        %v493 = vsel %vm491, %v479, %v492
        %vm494 = vcmp.eq.s32.totalorder %v489, 2
        %v495 = vxor.u32 %v479, 2147483648
        %v496 = vsel %vm494, %v495, %v487
        %v497 = vsel %vm490, %v493, %v496
        %v498 = vsel %vm488, nan, %v497
        %v499 = vand.u32 2147483647, %v330
        %vm500 = vcmp.le.f32.partialorder %v499, 0.7853982
        %vm501 = vcmp.lt.s32.totalorder %v330, 0
        %v502 = vand.u32 %v330, 2139095040
        %v503 = vshrl.u32 %v502, 23
        %v504 = vsub.s32 %v503, 127
        %v505 = vand.u32 2147483647, %v330
        %v506 = vand.u32 %v505, 8388607
        %v507 = vor.u32 %v506, 8388608
        %v508 = vsub.s32 0, %v507
        %v509 = vadd.s32 %v504, 1
        %vm510 = vcmp.gt.s32.totalorder %v509, 0
        %v511 = vsel %vm510, %v509, 0
        %v512 = vshrl.u32 %v511, 5
        %v513 = vand.u32 %v511, 31
        %v514 = vsub.s32 32, %v513
        %v515 = vshrl.u32 683565275, %v514
        %v516 = vshll.u32 683565275, %v513
        %v517 = vshrl.u32 2475754826, %v514
        %v518 = vor.u32 %v516, %v517
        %v519 = vshll.u32 2475754826, %v513
        %v520 = vshrl.u32 2131351028, %v514
        %v521 = vor.u32 %v519, %v520
        %v522 = vshll.u32 2131351028, %v513
        %v523 = vshrl.u32 2102212464, %v514
        %v524 = vor.u32 %v522, %v523
        %v525 = vshll.u32 2102212464, %v513
        %v526 = vshrl.u32 920167782, %v514
        %v527 = vor.u32 %v525, %v526
        %v528 = vshll.u32 920167782, %v513
        %v529 = vshrl.u32 1326507024, %v514
        %v530 = vor.u32 %v528, %v529
        %vm531 = vcmp.lt.s32.totalorder %v512, 1
        %vm532 = vcmp.lt.s32.totalorder %v512, 2
        %vm533 = vcmp.lt.s32.totalorder %v512, 3
        %vm534 = vcmp.lt.s32.totalorder %v512, 4
        %v535 = vsel %vm531, %v515, %v518
        %v536 = vsel %vm534, %v524, 2102212464
        %v537 = vsel %vm533, %v521, %v536
        %v538 = vsel %vm532, %v535, %v537
        %v539 = vsel %vm531, %v518, %v521
        %v540 = vsel %vm534, %v527, 920167782
        %v541 = vsel %vm533, %v524, %v540
        %v542 = vsel %vm532, %v539, %v541
        %v543 = vsel %vm531, %v521, %v524
        %v544 = vsel %vm534, %v530, 1326507024
        %v545 = vsel %vm533, %v527, %v544
        %v546 = vsel %vm532, %v543, %v545
        %v547 = vshll.u32 %v507, 8
        %v548 = vand.u32 %v547, 65535
        %v549 = vshrl.u32 %v547, 16
        %v550 = vand.u32 %v546, 65535
        %v551 = vshrl.u32 %v546, 16
        %v552 = vmul.u32 %v548, %v550
        %v553 = vmul.u32 %v548, %v551
        %v554 = vmul.u32 %v549, %v550
        %v555 = vmul.u32 %v549, %v551
        %v556 = vshll.u32 %v553, 16
        %v557 = vshrl.u32 %v553, 16
        %v558 = vshll.u32 %v554, 16
        %v559 = vshrl.u32 %v554, 16
        %vm560 = vc.u32 %v552, %v556
        %v561 = vsel %vm560, 1, 0
        %v562 = vadd.s32 %v552, %v556
        %v563 = vadd.s32 %v555, %v561
        %vm564 = vc.u32 %v562, %v558
        %v565 = vsel %vm564, 1, 0
        %v566 = vadd.s32 %v562, %v558
        %v567 = vadd.s32 %v563, %v565
        %v568 = vadd.s32 %v567, %v557
        %v569 = vadd.s32 %v568, %v559
        %v570 = vand.u32 %v547, 65535
        %v571 = vshrl.u32 %v547, 16
        %v572 = vand.u32 %v542, 65535
        %v573 = vshrl.u32 %v542, 16
        %v574 = vmul.u32 %v570, %v572
        %v575 = vmul.u32 %v570, %v573
        %v576 = vmul.u32 %v571, %v572
        %v577 = vmul.u32 %v571, %v573
        %v578 = vshll.u32 %v575, 16
        %v579 = vshrl.u32 %v575, 16
        %v580 = vshll.u32 %v576, 16
        %v581 = vshrl.u32 %v576, 16
        %vm582 = vc.u32 %v574, %v578
        %v583 = vsel %vm582, 1, 0
        %v584 = vadd.s32 %v574, %v578
        %v585 = vadd.s32 %v577, %v583
        %vm586 = vc.u32 %v584, %v580
        %v587 = vsel %vm586, 1, 0
        %v588 = vadd.s32 %v584, %v580
        %v589 = vadd.s32 %v585, %v587
        %v590 = vadd.s32 %v589, %v579
        %v591 = vadd.s32 %v590, %v581
        %v592 = vmul.u32 %v547, %v538
        %v593 = vadd.s32 %v569, %v588
        %vm594 = vc.u32 %v569, %v588
        %v595 = vadd.s32 %v591, 1
        %v596 = vsel %vm594, %v595, %v591
        %v597 = vadd.s32 %v592, %v596
        %v598 = vadd.s32 %v597, 536870912
        %v599 = vshrl.u32 %v598, 30
        %v600 = vshll.u32 %v599, 30
        %v601 = vsub.s32 %v597, %v600
        %vm602 = vcmp.lt.s32.totalorder %v601, 0
        %v603 = vsub.s32 0, %v601
        %v604 = vsel %vm602, %v603, %v601
        %v605 = vclz %v604
        %v606 = vsub.s32 %v605, 2
        %vm607 = vcmp.gt.s32.totalorder 0, %v606
        %v608 = vsel %vm607, 0, %v606
        %v609 = vsub.s32 32, %v608
        %v610 = vshll.u32 %v601, %v608
        %v611 = vshrl.u32 %v593, %v609
        %v612 = vor.u32 %v610, %v611
        %v613 = vsub.s32 4294967266, %v608
        %v614 = vadd.s32 %v613, 127
        %v615 = vshll.u32 %v614, 23
        %v616 = vor.u32 4788187, %v615
        %v617 = vand.u32 2147483647, %v616
        %v619 = vcvt.s32.f32 %v612
        %v620 = vmul.f32 %v619, %v617
        %v621 = vxor.u32 %v620, 2147483648
        %v622 = vsel %vm501, %v621, %v620
        %v623 = vsub.s32 4, %v599
        %v624 = vsel %vm501, %v623, %v599
        %v625 = vsel %vm500, %v330, %v622
        %v626 = vsel %vm500, 0, %v624
        %v627 = vmul.f32 %v625, %v625
        %v628 = vmul.f32 %v627, -0.001358992
        %v629 = vadd.f32 %v628, 0.041655596
        %v630 = vmul.f32 %v627, %v629
        %v631 = vadd.f32 %v630, -0.4999988
        %v632 = vmul.f32 %v627, %v631
        %v633 = vadd.f32 1.0, %v632
        %v634 = vmul.f32 %v625, %v625
        %v635 = vmul.f32 %v634, -0.00019511016
        %v636 = vadd.f32 %v635, 0.008332121
        %v637 = vmul.f32 %v634, %v636
        %v638 = vadd.f32 %v637, -0.16666654
        %v639 = vmul.f32 %v634, %v638
        %v640 = vadd.f32 %v639, 1.0
        %v641 = vmul.f32 %v640, %v625
        %vm642 = vweird.f32 %v330
        %v643 = vand.u32 %v626, 3
        %vm644 = vcmp.lt.s32.totalorder %v643, 2
        %vm645 = vcmp.eq.s32.totalorder %v643, 0
        %v646 = vxor.u32 %v641, 2147483648
        %v647 = vsel %vm645, %v633, %v646
        %vm648 = vcmp.eq.s32.totalorder %v643, 2
        %v649 = vxor.u32 %v633, 2147483648
        %v650 = vsel %vm648, %v649, %v641
        %v651 = vsel %vm644, %v647, %v650
        %v652 = vsel %vm642, nan, %v651
        %v653 = vand.u32 2147483647, %v331
        %vm654 = vcmp.le.f32.partialorder %v653, 0.7853982
        %vm655 = vcmp.lt.s32.totalorder %v331, 0
        %v656 = vand.u32 %v331, 2139095040
        %v657 = vshrl.u32 %v656, 23
        %v658 = vsub.s32 %v657, 127
        %v659 = vand.u32 2147483647, %v331
        %v660 = vand.u32 %v659, 8388607
        %v661 = vor.u32 %v660, 8388608
        %v662 = vsub.s32 0, %v661
        %v663 = vadd.s32 %v658, 1
        %vm664 = vcmp.gt.s32.totalorder %v663, 0
        %v665 = vsel %vm664, %v663, 0
        %v666 = vshrl.u32 %v665, 5
        %v667 = vand.u32 %v665, 31
        %v668 = vsub.s32 32, %v667
        %v669 = vshrl.u32 683565275, %v668
        %v670 = vshll.u32 683565275, %v667
        %v671 = vshrl.u32 2475754826, %v668
        %v672 = vor.u32 %v670, %v671
        %v673 = vshll.u32 2475754826, %v667
        %v674 = vshrl.u32 2131351028, %v668
        %v675 = vor.u32 %v673, %v674
        %v676 = vshll.u32 2131351028, %v667
        %v677 = vshrl.u32 2102212464, %v668
        %v678 = vor.u32 %v676, %v677
        %v679 = vshll.u32 2102212464, %v667
        %v680 = vshrl.u32 920167782, %v668
        %v681 = vor.u32 %v679, %v680
        %v682 = vshll.u32 920167782, %v667
        %v683 = vshrl.u32 1326507024, %v668
        %v684 = vor.u32 %v682, %v683
        %vm685 = vcmp.lt.s32.totalorder %v666, 1
        %vm686 = vcmp.lt.s32.totalorder %v666, 2
        %vm687 = vcmp.lt.s32.totalorder %v666, 3
        %vm688 = vcmp.lt.s32.totalorder %v666, 4
        %v689 = vsel %vm685, %v669, %v672
        %v690 = vsel %vm688, %v678, 2102212464
        %v691 = vsel %vm687, %v675, %v690
        %v692 = vsel %vm686, %v689, %v691
        %v693 = vsel %vm685, %v672, %v675
        %v694 = vsel %vm688, %v681, 920167782
        %v695 = vsel %vm687, %v678, %v694
        %v696 = vsel %vm686, %v693, %v695
        %v697 = vsel %vm685, %v675, %v678
        %v698 = vsel %vm688, %v684, 1326507024
        %v699 = vsel %vm687, %v681, %v698
        %v700 = vsel %vm686, %v697, %v699
        %v701 = vshll.u32 %v661, 8
        %v702 = vand.u32 %v701, 65535
        %v703 = vshrl.u32 %v701, 16
        %v704 = vand.u32 %v700, 65535
        %v705 = vshrl.u32 %v700, 16
        %v706 = vmul.u32 %v702, %v704
        %v707 = vmul.u32 %v702, %v705
        %v708 = vmul.u32 %v703, %v704
        %v709 = vmul.u32 %v703, %v705
        %v710 = vshll.u32 %v707, 16
        %v711 = vshrl.u32 %v707, 16
        %v712 = vshll.u32 %v708, 16
        %v713 = vshrl.u32 %v708, 16
        %vm714 = vc.u32 %v706, %v710
        %v715 = vsel %vm714, 1, 0
        %v716 = vadd.s32 %v706, %v710
        %v717 = vadd.s32 %v709, %v715
        %vm718 = vc.u32 %v716, %v712
        %v719 = vsel %vm718, 1, 0
        %v720 = vadd.s32 %v716, %v712
        %v721 = vadd.s32 %v717, %v719
        %v722 = vadd.s32 %v721, %v711
        %v723 = vadd.s32 %v722, %v713
        %v724 = vand.u32 %v701, 65535
        %v725 = vshrl.u32 %v701, 16
        %v726 = vand.u32 %v696, 65535
        %v727 = vshrl.u32 %v696, 16
        %v728 = vmul.u32 %v724, %v726
        %v729 = vmul.u32 %v724, %v727
        %v730 = vmul.u32 %v725, %v726
        %v731 = vmul.u32 %v725, %v727
        %v732 = vshll.u32 %v729, 16
        %v733 = vshrl.u32 %v729, 16
        %v734 = vshll.u32 %v730, 16
        %v735 = vshrl.u32 %v730, 16
        %vm736 = vc.u32 %v728, %v732
        %v737 = vsel %vm736, 1, 0
        %v738 = vadd.s32 %v728, %v732
        %v739 = vadd.s32 %v731, %v737
        %vm740 = vc.u32 %v738, %v734
        %v741 = vsel %vm740, 1, 0
        %v742 = vadd.s32 %v738, %v734
        %v743 = vadd.s32 %v739, %v741
        %v744 = vadd.s32 %v743, %v733
        %v745 = vadd.s32 %v744, %v735
        %v746 = vmul.u32 %v701, %v692
        %v747 = vadd.s32 %v723, %v742
        %vm748 = vc.u32 %v723, %v742
        %v749 = vadd.s32 %v745, 1
        %v750 = vsel %vm748, %v749, %v745
        %v751 = vadd.s32 %v746, %v750
        %v752 = vadd.s32 %v751, 536870912
        %v753 = vshrl.u32 %v752, 30
        %v754 = vshll.u32 %v753, 30
        %v755 = vsub.s32 %v751, %v754
        %vm756 = vcmp.lt.s32.totalorder %v755, 0
        %v757 = vsub.s32 0, %v755
        %v758 = vsel %vm756, %v757, %v755
        %v759 = vclz %v758
        %v760 = vsub.s32 %v759, 2
        %vm761 = vcmp.gt.s32.totalorder 0, %v760
        %v762 = vsel %vm761, 0, %v760
        %v763 = vsub.s32 32, %v762
        %v764 = vshll.u32 %v755, %v762
        %v765 = vshrl.u32 %v747, %v763
        %v766 = vor.u32 %v764, %v765
        %v767 = vsub.s32 4294967266, %v762
        %v768 = vadd.s32 %v767, 127
        %v769 = vshll.u32 %v768, 23
        %v770 = vor.u32 4788187, %v769
        %v771 = vand.u32 2147483647, %v770
        %v773 = vcvt.s32.f32 %v766
        %v774 = vmul.f32 %v773, %v771
        %v775 = vxor.u32 %v774, 2147483648
        %v776 = vsel %vm655, %v775, %v774
        %v777 = vsub.s32 4, %v753
        %v778 = vsel %vm655, %v777, %v753
        %v779 = vsel %vm654, %v331, %v776
        %v780 = vsel %vm654, 0, %v778
        %v781 = vmul.f32 %v779, %v779
        %v782 = vmul.f32 %v781, -0.001358992
        %v783 = vadd.f32 %v782, 0.041655596
        %v784 = vmul.f32 %v781, %v783
        %v785 = vadd.f32 %v784, -0.4999988
        %v786 = vmul.f32 %v781, %v785
        %v787 = vadd.f32 1.0, %v786
        %v788 = vmul.f32 %v779, %v779
        %v789 = vmul.f32 %v788, -0.00019511016
        %v790 = vadd.f32 %v789, 0.008332121
        %v791 = vmul.f32 %v788, %v790
        %v792 = vadd.f32 %v791, -0.16666654
        %v793 = vmul.f32 %v788, %v792
        %v794 = vadd.f32 %v793, 1.0
        %v795 = vmul.f32 %v794, %v779
        %vm796 = vweird.f32 %v331
        %v797 = vand.u32 %v780, 3
        %vm798 = vcmp.lt.s32.totalorder %v797, 2
        %vm799 = vcmp.eq.s32.totalorder %v797, 0
        %v800 = vxor.u32 %v795, 2147483648
        %v801 = vsel %vm799, %v787, %v800
        %vm802 = vcmp.eq.s32.totalorder %v797, 2
        %v803 = vxor.u32 %v787, 2147483648
        %v804 = vsel %vm802, %v803, %v795
        %v805 = vsel %vm798, %v801, %v804
        %v806 = vsel %vm796, nan, %v805
        %v807 = vand.u32 2147483647, %v332
        %vm808 = vcmp.le.f32.partialorder %v807, 0.7853982
        %vm809 = vcmp.lt.s32.totalorder %v332, 0
        %v810 = vand.u32 %v332, 2139095040
        %v811 = vshrl.u32 %v810, 23
        %v812 = vsub.s32 %v811, 127
        %v813 = vand.u32 2147483647, %v332
        %v814 = vand.u32 %v813, 8388607
        %v815 = vor.u32 %v814, 8388608
        %v816 = vsub.s32 0, %v815
        %v817 = vadd.s32 %v812, 1
        %vm818 = vcmp.gt.s32.totalorder %v817, 0
        %v819 = vsel %vm818, %v817, 0
        %v820 = vshrl.u32 %v819, 5
        %v821 = vand.u32 %v819, 31
        %v822 = vsub.s32 32, %v821
        %v823 = vshrl.u32 683565275, %v822
        %v824 = vshll.u32 683565275, %v821
        %v825 = vshrl.u32 2475754826, %v822
        %v826 = vor.u32 %v824, %v825
        %v827 = vshll.u32 2475754826, %v821
        %v828 = vshrl.u32 2131351028, %v822
        %v829 = vor.u32 %v827, %v828
        %v830 = vshll.u32 2131351028, %v821
        %v831 = vshrl.u32 2102212464, %v822
        %v832 = vor.u32 %v830, %v831
        %v833 = vshll.u32 2102212464, %v821
        %v834 = vshrl.u32 920167782, %v822
        %v835 = vor.u32 %v833, %v834
        %v836 = vshll.u32 920167782, %v821
        %v837 = vshrl.u32 1326507024, %v822
        %v838 = vor.u32 %v836, %v837
        %vm839 = vcmp.lt.s32.totalorder %v820, 1
        %vm840 = vcmp.lt.s32.totalorder %v820, 2
        %vm841 = vcmp.lt.s32.totalorder %v820, 3
        %vm842 = vcmp.lt.s32.totalorder %v820, 4
        %v843 = vsel %vm839, %v823, %v826
        %v844 = vsel %vm842, %v832, 2102212464
        %v845 = vsel %vm841, %v829, %v844
        %v846 = vsel %vm840, %v843, %v845
        %v847 = vsel %vm839, %v826, %v829
        %v848 = vsel %vm842, %v835, 920167782
        %v849 = vsel %vm841, %v832, %v848
        %v850 = vsel %vm840, %v847, %v849
        %v851 = vsel %vm839, %v829, %v832
        %v852 = vsel %vm842, %v838, 1326507024
        %v853 = vsel %vm841, %v835, %v852
        %v854 = vsel %vm840, %v851, %v853
        %v855 = vshll.u32 %v815, 8
        %v856 = vand.u32 %v855, 65535
        %v857 = vshrl.u32 %v855, 16
        %v858 = vand.u32 %v854, 65535
        %v859 = vshrl.u32 %v854, 16
        %v860 = vmul.u32 %v856, %v858
        %v861 = vmul.u32 %v856, %v859
        %v862 = vmul.u32 %v857, %v858
        %v863 = vmul.u32 %v857, %v859
        %v864 = vshll.u32 %v861, 16
        %v865 = vshrl.u32 %v861, 16
        %v866 = vshll.u32 %v862, 16
        %v867 = vshrl.u32 %v862, 16
        %vm868 = vc.u32 %v860, %v864
        %v869 = vsel %vm868, 1, 0
        %v870 = vadd.s32 %v860, %v864
        %v871 = vadd.s32 %v863, %v869
        %vm872 = vc.u32 %v870, %v866
        %v873 = vsel %vm872, 1, 0
        %v874 = vadd.s32 %v870, %v866
        %v875 = vadd.s32 %v871, %v873
        %v876 = vadd.s32 %v875, %v865
        %v877 = vadd.s32 %v876, %v867
        %v878 = vand.u32 %v855, 65535
        %v879 = vshrl.u32 %v855, 16
        %v880 = vand.u32 %v850, 65535
        %v881 = vshrl.u32 %v850, 16
        %v882 = vmul.u32 %v878, %v880
        %v883 = vmul.u32 %v878, %v881
        %v884 = vmul.u32 %v879, %v880
        %v885 = vmul.u32 %v879, %v881
        %v886 = vshll.u32 %v883, 16
        %v887 = vshrl.u32 %v883, 16
        %v888 = vshll.u32 %v884, 16
        %v889 = vshrl.u32 %v884, 16
        %vm890 = vc.u32 %v882, %v886
        %v891 = vsel %vm890, 1, 0
        %v892 = vadd.s32 %v882, %v886
        %v893 = vadd.s32 %v885, %v891
        %vm894 = vc.u32 %v892, %v888
        %v895 = vsel %vm894, 1, 0
        %v896 = vadd.s32 %v892, %v888
        %v897 = vadd.s32 %v893, %v895
        %v898 = vadd.s32 %v897, %v887
        %v899 = vadd.s32 %v898, %v889
        %v900 = vmul.u32 %v855, %v846
        %v901 = vadd.s32 %v877, %v896
        %vm902 = vc.u32 %v877, %v896
        %v903 = vadd.s32 %v899, 1
        %v904 = vsel %vm902, %v903, %v899
        %v905 = vadd.s32 %v900, %v904
        %v906 = vadd.s32 %v905, 536870912
        %v907 = vshrl.u32 %v906, 30
        %v908 = vshll.u32 %v907, 30
        %v909 = vsub.s32 %v905, %v908
        %vm910 = vcmp.lt.s32.totalorder %v909, 0
        %v911 = vsub.s32 0, %v909
        %v912 = vsel %vm910, %v911, %v909
        %v913 = vclz %v912
        %v914 = vsub.s32 %v913, 2
        %vm915 = vcmp.gt.s32.totalorder 0, %v914
        %v916 = vsel %vm915, 0, %v914
        %v917 = vsub.s32 32, %v916
        %v918 = vshll.u32 %v909, %v916
        %v919 = vshrl.u32 %v901, %v917
        %v920 = vor.u32 %v918, %v919
        %v921 = vsub.s32 4294967266, %v916
        %v922 = vadd.s32 %v921, 127
        %v923 = vshll.u32 %v922, 23
        %v924 = vor.u32 4788187, %v923
        %v925 = vand.u32 2147483647, %v924
        %v927 = vcvt.s32.f32 %v920
        %v928 = vmul.f32 %v927, %v925
        %v929 = vxor.u32 %v928, 2147483648
        %v930 = vsel %vm809, %v929, %v928
        %v931 = vsub.s32 4, %v907
        %v932 = vsel %vm809, %v931, %v907
        %v933 = vsel %vm808, %v332, %v930
        %v934 = vsel %vm808, 0, %v932
        %v935 = vmul.f32 %v933, %v933
        %v936 = vmul.f32 %v935, -0.001358992
        %v937 = vadd.f32 %v936, 0.041655596
        %v938 = vmul.f32 %v935, %v937
        %v939 = vadd.f32 %v938, -0.4999988
        %v940 = vmul.f32 %v935, %v939
        %v941 = vadd.f32 1.0, %v940
        %v942 = vmul.f32 %v933, %v933
        %v943 = vmul.f32 %v942, -0.00019511016
        %v944 = vadd.f32 %v943, 0.008332121
        %v945 = vmul.f32 %v942, %v944
        %v946 = vadd.f32 %v945, -0.16666654
        %v947 = vmul.f32 %v942, %v946
        %v948 = vadd.f32 %v947, 1.0
        %v949 = vmul.f32 %v948, %v933
        %vm950 = vweird.f32 %v332
        %v951 = vand.u32 %v934, 3
        %vm952 = vcmp.lt.s32.totalorder %v951, 2
        %vm953 = vcmp.eq.s32.totalorder %v951, 0
        %v954 = vxor.u32 %v949, 2147483648
        %v955 = vsel %vm953, %v941, %v954
        %vm956 = vcmp.eq.s32.totalorder %v951, 2
        %v957 = vxor.u32 %v941, 2147483648
        %v958 = vsel %vm956, %v957, %v949
        %v959 = vsel %vm952, %v955, %v958
        %v960 = vsel %vm950, nan, %v959
        %v961 = vand.u32 2147483647, %v333
        %vm962 = vcmp.le.f32.partialorder %v961, 0.7853982
        %vm963 = vcmp.lt.s32.totalorder %v333, 0
        %v964 = vand.u32 %v333, 2139095040
        %v965 = vshrl.u32 %v964, 23
        %v966 = vsub.s32 %v965, 127
        %v967 = vand.u32 2147483647, %v333
        %v968 = vand.u32 %v967, 8388607
        %v969 = vor.u32 %v968, 8388608
        %v970 = vsub.s32 0, %v969
        %v971 = vadd.s32 %v966, 1
        %vm972 = vcmp.gt.s32.totalorder %v971, 0
        %v973 = vsel %vm972, %v971, 0
        %v974 = vshrl.u32 %v973, 5
        %v975 = vand.u32 %v973, 31
        %v976 = vsub.s32 32, %v975
        %v977 = vshrl.u32 683565275, %v976
        %v978 = vshll.u32 683565275, %v975
        %v979 = vshrl.u32 2475754826, %v976
        %v980 = vor.u32 %v978, %v979
        %v981 = vshll.u32 2475754826, %v975
        %v982 = vshrl.u32 2131351028, %v976
        %v983 = vor.u32 %v981, %v982
        %v984 = vshll.u32 2131351028, %v975
        %v985 = vshrl.u32 2102212464, %v976
        %v986 = vor.u32 %v984, %v985
        %v987 = vshll.u32 2102212464, %v975
        %v988 = vshrl.u32 920167782, %v976
        %v989 = vor.u32 %v987, %v988
        %v990 = vshll.u32 920167782, %v975
        %v991 = vshrl.u32 1326507024, %v976
        %v992 = vor.u32 %v990, %v991
        %vm993 = vcmp.lt.s32.totalorder %v974, 1
        %vm994 = vcmp.lt.s32.totalorder %v974, 2
        %vm995 = vcmp.lt.s32.totalorder %v974, 3
        %vm996 = vcmp.lt.s32.totalorder %v974, 4
        %v997 = vsel %vm993, %v977, %v980
        %v998 = vsel %vm996, %v986, 2102212464
        %v999 = vsel %vm995, %v983, %v998
        %v1000 = vsel %vm994, %v997, %v999
        %v1001 = vsel %vm993, %v980, %v983
        %v1002 = vsel %vm996, %v989, 920167782
        %v1003 = vsel %vm995, %v986, %v1002
        %v1004 = vsel %vm994, %v1001, %v1003
        %v1005 = vsel %vm993, %v983, %v986
        %v1006 = vsel %vm996, %v992, 1326507024
        %v1007 = vsel %vm995, %v989, %v1006
        %v1008 = vsel %vm994, %v1005, %v1007
        %v1009 = vshll.u32 %v969, 8
        %v1010 = vand.u32 %v1009, 65535
        %v1011 = vshrl.u32 %v1009, 16
        %v1012 = vand.u32 %v1008, 65535
        %v1013 = vshrl.u32 %v1008, 16
        %v1014 = vmul.u32 %v1010, %v1012
        %v1015 = vmul.u32 %v1010, %v1013
        %v1016 = vmul.u32 %v1011, %v1012
        %v1017 = vmul.u32 %v1011, %v1013
        %v1018 = vshll.u32 %v1015, 16
        %v1019 = vshrl.u32 %v1015, 16
        %v1020 = vshll.u32 %v1016, 16
        %v1021 = vshrl.u32 %v1016, 16
        %vm1022 = vc.u32 %v1014, %v1018
        %v1023 = vsel %vm1022, 1, 0
        %v1024 = vadd.s32 %v1014, %v1018
        %v1025 = vadd.s32 %v1017, %v1023
        %vm1026 = vc.u32 %v1024, %v1020
        %v1027 = vsel %vm1026, 1, 0
        %v1028 = vadd.s32 %v1024, %v1020
        %v1029 = vadd.s32 %v1025, %v1027
        %v1030 = vadd.s32 %v1029, %v1019
        %v1031 = vadd.s32 %v1030, %v1021
        %v1032 = vand.u32 %v1009, 65535
        %v1033 = vshrl.u32 %v1009, 16
        %v1034 = vand.u32 %v1004, 65535
        %v1035 = vshrl.u32 %v1004, 16
        %v1036 = vmul.u32 %v1032, %v1034
        %v1037 = vmul.u32 %v1032, %v1035
        %v1038 = vmul.u32 %v1033, %v1034
        %v1039 = vmul.u32 %v1033, %v1035
        %v1040 = vshll.u32 %v1037, 16
        %v1041 = vshrl.u32 %v1037, 16
        %v1042 = vshll.u32 %v1038, 16
        %v1043 = vshrl.u32 %v1038, 16
        %vm1044 = vc.u32 %v1036, %v1040
        %v1045 = vsel %vm1044, 1, 0
        %v1046 = vadd.s32 %v1036, %v1040
        %v1047 = vadd.s32 %v1039, %v1045
        %vm1048 = vc.u32 %v1046, %v1042
        %v1049 = vsel %vm1048, 1, 0
        %v1050 = vadd.s32 %v1046, %v1042
        %v1051 = vadd.s32 %v1047, %v1049
        %v1052 = vadd.s32 %v1051, %v1041
        %v1053 = vadd.s32 %v1052, %v1043
        %v1054 = vmul.u32 %v1009, %v1000
        %v1055 = vadd.s32 %v1031, %v1050
        %vm1056 = vc.u32 %v1031, %v1050
        %v1057 = vadd.s32 %v1053, 1
        %v1058 = vsel %vm1056, %v1057, %v1053
        %v1059 = vadd.s32 %v1054, %v1058
        %v1060 = vadd.s32 %v1059, 536870912
        %v1061 = vshrl.u32 %v1060, 30
        %v1062 = vshll.u32 %v1061, 30
        %v1063 = vsub.s32 %v1059, %v1062
        %vm1064 = vcmp.lt.s32.totalorder %v1063, 0
        %v1065 = vsub.s32 0, %v1063
        %v1066 = vsel %vm1064, %v1065, %v1063
        %v1067 = vclz %v1066
        %v1068 = vsub.s32 %v1067, 2
        %vm1069 = vcmp.gt.s32.totalorder 0, %v1068
        %v1070 = vsel %vm1069, 0, %v1068
        %v1071 = vsub.s32 32, %v1070
        %v1072 = vshll.u32 %v1063, %v1070
        %v1073 = vshrl.u32 %v1055, %v1071
        %v1074 = vor.u32 %v1072, %v1073
        %v1075 = vsub.s32 4294967266, %v1070
        %v1076 = vadd.s32 %v1075, 127
        %v1077 = vshll.u32 %v1076, 23
        %v1078 = vor.u32 4788187, %v1077
        %v1079 = vand.u32 2147483647, %v1078
        %v1081 = vcvt.s32.f32 %v1074
        %v1082 = vmul.f32 %v1081, %v1079
        %v1083 = vxor.u32 %v1082, 2147483648
        %v1084 = vsel %vm963, %v1083, %v1082
        %v1085 = vsub.s32 4, %v1061
        %v1086 = vsel %vm963, %v1085, %v1061
        %v1087 = vsel %vm962, %v333, %v1084
        %v1088 = vsel %vm962, 0, %v1086
        %v1089 = vmul.f32 %v1087, %v1087
        %v1090 = vmul.f32 %v1089, -0.001358992
        %v1091 = vadd.f32 %v1090, 0.041655596
        %v1092 = vmul.f32 %v1089, %v1091
        %v1093 = vadd.f32 %v1092, -0.4999988
        %v1094 = vmul.f32 %v1089, %v1093
        %v1095 = vadd.f32 1.0, %v1094
        %v1096 = vmul.f32 %v1087, %v1087
        %v1097 = vmul.f32 %v1096, -0.00019511016
        %v1098 = vadd.f32 %v1097, 0.008332121
        %v1099 = vmul.f32 %v1096, %v1098
        %v1100 = vadd.f32 %v1099, -0.16666654
        %v1101 = vmul.f32 %v1096, %v1100
        %v1102 = vadd.f32 %v1101, 1.0
        %v1103 = vmul.f32 %v1102, %v1087
        %vm1104 = vweird.f32 %v333
        %v1105 = vand.u32 %v1088, 3
        %vm1106 = vcmp.lt.s32.totalorder %v1105, 2
        %vm1107 = vcmp.eq.s32.totalorder %v1105, 0
        %v1108 = vxor.u32 %v1103, 2147483648
        %v1109 = vsel %vm1107, %v1095, %v1108
        %vm1110 = vcmp.eq.s32.totalorder %v1105, 2
        %v1111 = vxor.u32 %v1095, 2147483648
        %v1112 = vsel %vm1110, %v1111, %v1103
        %v1113 = vsel %vm1106, %v1109, %v1112
        %v1114 = vsel %vm1104, nan, %v1113
        %v1115 = vand.u32 2147483647, %v334
        %vm1116 = vcmp.le.f32.partialorder %v1115, 0.7853982
        %vm1117 = vcmp.lt.s32.totalorder %v334, 0
        %v1118 = vand.u32 %v334, 2139095040
        %v1119 = vshrl.u32 %v1118, 23
        %v1120 = vsub.s32 %v1119, 127
        %v1121 = vand.u32 2147483647, %v334
        %v1122 = vand.u32 %v1121, 8388607
        %v1123 = vor.u32 %v1122, 8388608
        %v1124 = vsub.s32 0, %v1123
        %v1125 = vadd.s32 %v1120, 1
        %vm1126 = vcmp.gt.s32.totalorder %v1125, 0
        %v1127 = vsel %vm1126, %v1125, 0
        %v1128 = vshrl.u32 %v1127, 5
        %v1129 = vand.u32 %v1127, 31
        %v1130 = vsub.s32 32, %v1129
        %v1131 = vshrl.u32 683565275, %v1130
        %v1132 = vshll.u32 683565275, %v1129
        %v1133 = vshrl.u32 2475754826, %v1130
        %v1134 = vor.u32 %v1132, %v1133
        %v1135 = vshll.u32 2475754826, %v1129
        %v1136 = vshrl.u32 2131351028, %v1130
        %v1137 = vor.u32 %v1135, %v1136
        %v1138 = vshll.u32 2131351028, %v1129
        %v1139 = vshrl.u32 2102212464, %v1130
        %v1140 = vor.u32 %v1138, %v1139
        %v1141 = vshll.u32 2102212464, %v1129
        %v1142 = vshrl.u32 920167782, %v1130
        %v1143 = vor.u32 %v1141, %v1142
        %v1144 = vshll.u32 920167782, %v1129
        %v1145 = vshrl.u32 1326507024, %v1130
        %v1146 = vor.u32 %v1144, %v1145
        %vm1147 = vcmp.lt.s32.totalorder %v1128, 1
        %vm1148 = vcmp.lt.s32.totalorder %v1128, 2
        %vm1149 = vcmp.lt.s32.totalorder %v1128, 3
        %vm1150 = vcmp.lt.s32.totalorder %v1128, 4
        %v1151 = vsel %vm1147, %v1131, %v1134
        %v1152 = vsel %vm1150, %v1140, 2102212464
        %v1153 = vsel %vm1149, %v1137, %v1152
        %v1154 = vsel %vm1148, %v1151, %v1153
        %v1155 = vsel %vm1147, %v1134, %v1137
        %v1156 = vsel %vm1150, %v1143, 920167782
        %v1157 = vsel %vm1149, %v1140, %v1156
        %v1158 = vsel %vm1148, %v1155, %v1157
        %v1159 = vsel %vm1147, %v1137, %v1140
        %v1160 = vsel %vm1150, %v1146, 1326507024
        %v1161 = vsel %vm1149, %v1143, %v1160
        %v1162 = vsel %vm1148, %v1159, %v1161
        %v1163 = vshll.u32 %v1123, 8
        %v1164 = vand.u32 %v1163, 65535
        %v1165 = vshrl.u32 %v1163, 16
        %v1166 = vand.u32 %v1162, 65535
        %v1167 = vshrl.u32 %v1162, 16
        %v1168 = vmul.u32 %v1164, %v1166
        %v1169 = vmul.u32 %v1164, %v1167
        %v1170 = vmul.u32 %v1165, %v1166
        %v1171 = vmul.u32 %v1165, %v1167
        %v1172 = vshll.u32 %v1169, 16
        %v1173 = vshrl.u32 %v1169, 16
        %v1174 = vshll.u32 %v1170, 16
        %v1175 = vshrl.u32 %v1170, 16
        %vm1176 = vc.u32 %v1168, %v1172
        %v1177 = vsel %vm1176, 1, 0
        %v1178 = vadd.s32 %v1168, %v1172
        %v1179 = vadd.s32 %v1171, %v1177
        %vm1180 = vc.u32 %v1178, %v1174
        %v1181 = vsel %vm1180, 1, 0
        %v1182 = vadd.s32 %v1178, %v1174
        %v1183 = vadd.s32 %v1179, %v1181
        %v1184 = vadd.s32 %v1183, %v1173
        %v1185 = vadd.s32 %v1184, %v1175
        %v1186 = vand.u32 %v1163, 65535
        %v1187 = vshrl.u32 %v1163, 16
        %v1188 = vand.u32 %v1158, 65535
        %v1189 = vshrl.u32 %v1158, 16
        %v1190 = vmul.u32 %v1186, %v1188
        %v1191 = vmul.u32 %v1186, %v1189
        %v1192 = vmul.u32 %v1187, %v1188
        %v1193 = vmul.u32 %v1187, %v1189
        %v1194 = vshll.u32 %v1191, 16
        %v1195 = vshrl.u32 %v1191, 16
        %v1196 = vshll.u32 %v1192, 16
        %v1197 = vshrl.u32 %v1192, 16
        %vm1198 = vc.u32 %v1190, %v1194
        %v1199 = vsel %vm1198, 1, 0
        %v1200 = vadd.s32 %v1190, %v1194
        %v1201 = vadd.s32 %v1193, %v1199
        %vm1202 = vc.u32 %v1200, %v1196
        %v1203 = vsel %vm1202, 1, 0
        %v1204 = vadd.s32 %v1200, %v1196
        %v1205 = vadd.s32 %v1201, %v1203
        %v1206 = vadd.s32 %v1205, %v1195
        %v1207 = vadd.s32 %v1206, %v1197
        %v1208 = vmul.u32 %v1163, %v1154
        %v1209 = vadd.s32 %v1185, %v1204
        %vm1210 = vc.u32 %v1185, %v1204
        %v1211 = vadd.s32 %v1207, 1
        %v1212 = vsel %vm1210, %v1211, %v1207
        %v1213 = vadd.s32 %v1208, %v1212
        %v1214 = vadd.s32 %v1213, 536870912
        %v1215 = vshrl.u32 %v1214, 30
        %v1216 = vshll.u32 %v1215, 30
        %v1217 = vsub.s32 %v1213, %v1216
        %vm1218 = vcmp.lt.s32.totalorder %v1217, 0
        %v1219 = vsub.s32 0, %v1217
        %v1220 = vsel %vm1218, %v1219, %v1217
        %v1221 = vclz %v1220
        %v1222 = vsub.s32 %v1221, 2
        %vm1223 = vcmp.gt.s32.totalorder 0, %v1222
        %v1224 = vsel %vm1223, 0, %v1222
        %v1225 = vsub.s32 32, %v1224
        %v1226 = vshll.u32 %v1217, %v1224
        %v1227 = vshrl.u32 %v1209, %v1225
        %v1228 = vor.u32 %v1226, %v1227
        %v1229 = vsub.s32 4294967266, %v1224
        %v1230 = vadd.s32 %v1229, 127
        %v1231 = vshll.u32 %v1230, 23
        %v1232 = vor.u32 4788187, %v1231
        %v1233 = vand.u32 2147483647, %v1232
        %v1235 = vcvt.s32.f32 %v1228
        %v1236 = vmul.f32 %v1235, %v1233
        %v1237 = vxor.u32 %v1236, 2147483648
        %v1238 = vsel %vm1117, %v1237, %v1236
        %v1239 = vsub.s32 4, %v1215
        %v1240 = vsel %vm1117, %v1239, %v1215
        %v1241 = vsel %vm1116, %v334, %v1238
        %v1242 = vsel %vm1116, 0, %v1240
        %v1243 = vmul.f32 %v1241, %v1241
        %v1244 = vmul.f32 %v1243, -0.001358992
        %v1245 = vadd.f32 %v1244, 0.041655596
        %v1246 = vmul.f32 %v1243, %v1245
        %v1247 = vadd.f32 %v1246, -0.4999988
        %v1248 = vmul.f32 %v1243, %v1247
        %v1249 = vadd.f32 1.0, %v1248
        %v1250 = vmul.f32 %v1241, %v1241
        %v1251 = vmul.f32 %v1250, -0.00019511016
        %v1252 = vadd.f32 %v1251, 0.008332121
        %v1253 = vmul.f32 %v1250, %v1252
        %v1254 = vadd.f32 %v1253, -0.16666654
        %v1255 = vmul.f32 %v1250, %v1254
        %v1256 = vadd.f32 %v1255, 1.0
        %v1257 = vmul.f32 %v1256, %v1241
        %vm1258 = vweird.f32 %v334
        %v1259 = vand.u32 %v1242, 3
        %vm1260 = vcmp.lt.s32.totalorder %v1259, 2
        %vm1261 = vcmp.eq.s32.totalorder %v1259, 0
        %v1262 = vxor.u32 %v1257, 2147483648
        %v1263 = vsel %vm1261, %v1249, %v1262
        %vm1264 = vcmp.eq.s32.totalorder %v1259, 2
        %v1265 = vxor.u32 %v1249, 2147483648
        %v1266 = vsel %vm1264, %v1265, %v1257
        %v1267 = vsel %vm1260, %v1263, %v1266
        %v1268 = vsel %vm1258, nan, %v1267
        %v1269 = vand.u32 2147483647, %v335
        %vm1270 = vcmp.le.f32.partialorder %v1269, 0.7853982
        %vm1271 = vcmp.lt.s32.totalorder %v335, 0
        %v1272 = vand.u32 %v335, 2139095040
        %v1273 = vshrl.u32 %v1272, 23
        %v1274 = vsub.s32 %v1273, 127
        %v1275 = vand.u32 2147483647, %v335
        %v1276 = vand.u32 %v1275, 8388607
        %v1277 = vor.u32 %v1276, 8388608
        %v1278 = vsub.s32 0, %v1277
        %v1279 = vadd.s32 %v1274, 1
        %vm1280 = vcmp.gt.s32.totalorder %v1279, 0
        %v1281 = vsel %vm1280, %v1279, 0
        %v1282 = vshrl.u32 %v1281, 5
        %v1283 = vand.u32 %v1281, 31
        %v1284 = vsub.s32 32, %v1283
        %v1285 = vshrl.u32 683565275, %v1284
        %v1286 = vshll.u32 683565275, %v1283
        %v1287 = vshrl.u32 2475754826, %v1284
        %v1288 = vor.u32 %v1286, %v1287
        %v1289 = vshll.u32 2475754826, %v1283
        %v1290 = vshrl.u32 2131351028, %v1284
        %v1291 = vor.u32 %v1289, %v1290
        %v1292 = vshll.u32 2131351028, %v1283
        %v1293 = vshrl.u32 2102212464, %v1284
        %v1294 = vor.u32 %v1292, %v1293
        %v1295 = vshll.u32 2102212464, %v1283
        %v1296 = vshrl.u32 920167782, %v1284
        %v1297 = vor.u32 %v1295, %v1296
        %v1298 = vshll.u32 920167782, %v1283
        %v1299 = vshrl.u32 1326507024, %v1284
        %v1300 = vor.u32 %v1298, %v1299
        %vm1301 = vcmp.lt.s32.totalorder %v1282, 1
        %vm1302 = vcmp.lt.s32.totalorder %v1282, 2
        %vm1303 = vcmp.lt.s32.totalorder %v1282, 3
        %vm1304 = vcmp.lt.s32.totalorder %v1282, 4
        %v1305 = vsel %vm1301, %v1285, %v1288
        %v1306 = vsel %vm1304, %v1294, 2102212464
        %v1307 = vsel %vm1303, %v1291, %v1306
        %v1308 = vsel %vm1302, %v1305, %v1307
        %v1309 = vsel %vm1301, %v1288, %v1291
        %v1310 = vsel %vm1304, %v1297, 920167782
        %v1311 = vsel %vm1303, %v1294, %v1310
        %v1312 = vsel %vm1302, %v1309, %v1311
        %v1313 = vsel %vm1301, %v1291, %v1294
        %v1314 = vsel %vm1304, %v1300, 1326507024
        %v1315 = vsel %vm1303, %v1297, %v1314
        %v1316 = vsel %vm1302, %v1313, %v1315
        %v1317 = vshll.u32 %v1277, 8
        %v1318 = vand.u32 %v1317, 65535
        %v1319 = vshrl.u32 %v1317, 16
        %v1320 = vand.u32 %v1316, 65535
        %v1321 = vshrl.u32 %v1316, 16
        %v1322 = vmul.u32 %v1318, %v1320
        %v1323 = vmul.u32 %v1318, %v1321
        %v1324 = vmul.u32 %v1319, %v1320
        %v1325 = vmul.u32 %v1319, %v1321
        %v1326 = vshll.u32 %v1323, 16
        %v1327 = vshrl.u32 %v1323, 16
        %v1328 = vshll.u32 %v1324, 16
        %v1329 = vshrl.u32 %v1324, 16
        %vm1330 = vc.u32 %v1322, %v1326
        %v1331 = vsel %vm1330, 1, 0
        %v1332 = vadd.s32 %v1322, %v1326
        %v1333 = vadd.s32 %v1325, %v1331
        %vm1334 = vc.u32 %v1332, %v1328
        %v1335 = vsel %vm1334, 1, 0
        %v1336 = vadd.s32 %v1332, %v1328
        %v1337 = vadd.s32 %v1333, %v1335
        %v1338 = vadd.s32 %v1337, %v1327
        %v1339 = vadd.s32 %v1338, %v1329
        %v1340 = vand.u32 %v1317, 65535
        %v1341 = vshrl.u32 %v1317, 16
        %v1342 = vand.u32 %v1312, 65535
        %v1343 = vshrl.u32 %v1312, 16
        %v1344 = vmul.u32 %v1340, %v1342
        %v1345 = vmul.u32 %v1340, %v1343
        %v1346 = vmul.u32 %v1341, %v1342
        %v1347 = vmul.u32 %v1341, %v1343
        %v1348 = vshll.u32 %v1345, 16
        %v1349 = vshrl.u32 %v1345, 16
        %v1350 = vshll.u32 %v1346, 16
        %v1351 = vshrl.u32 %v1346, 16
        %vm1352 = vc.u32 %v1344, %v1348
        %v1353 = vsel %vm1352, 1, 0
        %v1354 = vadd.s32 %v1344, %v1348
        %v1355 = vadd.s32 %v1347, %v1353
        %vm1356 = vc.u32 %v1354, %v1350
        %v1357 = vsel %vm1356, 1, 0
        %v1358 = vadd.s32 %v1354, %v1350
        %v1359 = vadd.s32 %v1355, %v1357
        %v1360 = vadd.s32 %v1359, %v1349
        %v1361 = vadd.s32 %v1360, %v1351
        %v1362 = vmul.u32 %v1317, %v1308
        %v1363 = vadd.s32 %v1339, %v1358
        %vm1364 = vc.u32 %v1339, %v1358
        %v1365 = vadd.s32 %v1361, 1
        %v1366 = vsel %vm1364, %v1365, %v1361
        %v1367 = vadd.s32 %v1362, %v1366
        %v1368 = vadd.s32 %v1367, 536870912
        %v1369 = vshrl.u32 %v1368, 30
        %v1370 = vshll.u32 %v1369, 30
        %v1371 = vsub.s32 %v1367, %v1370
        %vm1372 = vcmp.lt.s32.totalorder %v1371, 0
        %v1373 = vsub.s32 0, %v1371
        %v1374 = vsel %vm1372, %v1373, %v1371
        %v1375 = vclz %v1374
        %v1376 = vsub.s32 %v1375, 2
        %vm1377 = vcmp.gt.s32.totalorder 0, %v1376
        %v1378 = vsel %vm1377, 0, %v1376
        %v1379 = vsub.s32 32, %v1378
        %v1380 = vshll.u32 %v1371, %v1378
        %v1381 = vshrl.u32 %v1363, %v1379
        %v1382 = vor.u32 %v1380, %v1381
        %v1383 = vsub.s32 4294967266, %v1378
        %v1384 = vadd.s32 %v1383, 127
        %v1385 = vshll.u32 %v1384, 23
        %v1386 = vor.u32 4788187, %v1385
        %v1387 = vand.u32 2147483647, %v1386
        %v1389 = vcvt.s32.f32 %v1382
        %v1390 = vmul.f32 %v1389, %v1387
        %v1391 = vxor.u32 %v1390, 2147483648
        %v1392 = vsel %vm1271, %v1391, %v1390
        %v1393 = vsub.s32 4, %v1369
        %v1394 = vsel %vm1271, %v1393, %v1369
        %v1395 = vsel %vm1270, %v335, %v1392
        %v1396 = vsel %vm1270, 0, %v1394
        %v1397 = vmul.f32 %v1395, %v1395
        %v1398 = vmul.f32 %v1397, -0.001358992
        %v1399 = vadd.f32 %v1398, 0.041655596
        %v1400 = vmul.f32 %v1397, %v1399
        %v1401 = vadd.f32 %v1400, -0.4999988
        %v1402 = vmul.f32 %v1397, %v1401
        %v1403 = vadd.f32 1.0, %v1402
        %v1404 = vmul.f32 %v1395, %v1395
        %v1405 = vmul.f32 %v1404, -0.00019511016
        %v1406 = vadd.f32 %v1405, 0.008332121
        %v1407 = vmul.f32 %v1404, %v1406
        %v1408 = vadd.f32 %v1407, -0.16666654
        %v1409 = vmul.f32 %v1404, %v1408
        %v1410 = vadd.f32 %v1409, 1.0
        %v1411 = vmul.f32 %v1410, %v1395
        %vm1412 = vweird.f32 %v335
        %v1413 = vand.u32 %v1396, 3
        %vm1414 = vcmp.lt.s32.totalorder %v1413, 2
        %vm1415 = vcmp.eq.s32.totalorder %v1413, 0
        %v1416 = vxor.u32 %v1411, 2147483648
        %v1417 = vsel %vm1415, %v1403, %v1416
        %vm1418 = vcmp.eq.s32.totalorder %v1413, 2
        %v1419 = vxor.u32 %v1403, 2147483648
        %v1420 = vsel %vm1418, %v1419, %v1411
        %v1421 = vsel %vm1414, %v1417, %v1420
        %v1422 = vsel %vm1412, nan, %v1421
        %v1423 = vand.u32 2147483647, %v336
        %vm1424 = vcmp.le.f32.partialorder %v1423, 0.7853982
        %vm1425 = vcmp.lt.s32.totalorder %v336, 0
        %v1426 = vand.u32 %v336, 2139095040
        %v1427 = vshrl.u32 %v1426, 23
        %v1428 = vsub.s32 %v1427, 127
        %v1429 = vand.u32 2147483647, %v336
        %v1430 = vand.u32 %v1429, 8388607
        %v1431 = vor.u32 %v1430, 8388608
        %v1432 = vsub.s32 0, %v1431
        %v1433 = vadd.s32 %v1428, 1
        %vm1434 = vcmp.gt.s32.totalorder %v1433, 0
        %v1435 = vsel %vm1434, %v1433, 0
        %v1436 = vshrl.u32 %v1435, 5
        %v1437 = vand.u32 %v1435, 31
        %v1438 = vsub.s32 32, %v1437
        %v1439 = vshrl.u32 683565275, %v1438
        %v1440 = vshll.u32 683565275, %v1437
        %v1441 = vshrl.u32 2475754826, %v1438
        %v1442 = vor.u32 %v1440, %v1441
        %v1443 = vshll.u32 2475754826, %v1437
        %v1444 = vshrl.u32 2131351028, %v1438
        %v1445 = vor.u32 %v1443, %v1444
        %v1446 = vshll.u32 2131351028, %v1437
        %v1447 = vshrl.u32 2102212464, %v1438
        %v1448 = vor.u32 %v1446, %v1447
        %v1449 = vshll.u32 2102212464, %v1437
        %v1450 = vshrl.u32 920167782, %v1438
        %v1451 = vor.u32 %v1449, %v1450
        %v1452 = vshll.u32 920167782, %v1437
        %v1453 = vshrl.u32 1326507024, %v1438
        %v1454 = vor.u32 %v1452, %v1453
        %vm1455 = vcmp.lt.s32.totalorder %v1436, 1
        %vm1456 = vcmp.lt.s32.totalorder %v1436, 2
        %vm1457 = vcmp.lt.s32.totalorder %v1436, 3
        %vm1458 = vcmp.lt.s32.totalorder %v1436, 4
        %v1459 = vsel %vm1455, %v1439, %v1442
        %v1460 = vsel %vm1458, %v1448, 2102212464
        %v1461 = vsel %vm1457, %v1445, %v1460
        %v1462 = vsel %vm1456, %v1459, %v1461
        %v1463 = vsel %vm1455, %v1442, %v1445
        %v1464 = vsel %vm1458, %v1451, 920167782
        %v1465 = vsel %vm1457, %v1448, %v1464
        %v1466 = vsel %vm1456, %v1463, %v1465
        %v1467 = vsel %vm1455, %v1445, %v1448
        %v1468 = vsel %vm1458, %v1454, 1326507024
        %v1469 = vsel %vm1457, %v1451, %v1468
        %v1470 = vsel %vm1456, %v1467, %v1469
        %v1471 = vshll.u32 %v1431, 8
        %v1472 = vand.u32 %v1471, 65535
        %v1473 = vshrl.u32 %v1471, 16
        %v1474 = vand.u32 %v1470, 65535
        %v1475 = vshrl.u32 %v1470, 16
        %v1476 = vmul.u32 %v1472, %v1474
        %v1477 = vmul.u32 %v1472, %v1475
        %v1478 = vmul.u32 %v1473, %v1474
        %v1479 = vmul.u32 %v1473, %v1475
        %v1480 = vshll.u32 %v1477, 16
        %v1481 = vshrl.u32 %v1477, 16
        %v1482 = vshll.u32 %v1478, 16
        %v1483 = vshrl.u32 %v1478, 16
        %vm1484 = vc.u32 %v1476, %v1480
        %v1485 = vsel %vm1484, 1, 0
        %v1486 = vadd.s32 %v1476, %v1480
        %v1487 = vadd.s32 %v1479, %v1485
        %vm1488 = vc.u32 %v1486, %v1482
        %v1489 = vsel %vm1488, 1, 0
        %v1490 = vadd.s32 %v1486, %v1482
        %v1491 = vadd.s32 %v1487, %v1489
        %v1492 = vadd.s32 %v1491, %v1481
        %v1493 = vadd.s32 %v1492, %v1483
        %v1494 = vand.u32 %v1471, 65535
        %v1495 = vshrl.u32 %v1471, 16
        %v1496 = vand.u32 %v1466, 65535
        %v1497 = vshrl.u32 %v1466, 16
        %v1498 = vmul.u32 %v1494, %v1496
        %v1499 = vmul.u32 %v1494, %v1497
        %v1500 = vmul.u32 %v1495, %v1496
        %v1501 = vmul.u32 %v1495, %v1497
        %v1502 = vshll.u32 %v1499, 16
        %v1503 = vshrl.u32 %v1499, 16
        %v1504 = vshll.u32 %v1500, 16
        %v1505 = vshrl.u32 %v1500, 16
        %vm1506 = vc.u32 %v1498, %v1502
        %v1507 = vsel %vm1506, 1, 0
        %v1508 = vadd.s32 %v1498, %v1502
        %v1509 = vadd.s32 %v1501, %v1507
        %vm1510 = vc.u32 %v1508, %v1504
        %v1511 = vsel %vm1510, 1, 0
        %v1512 = vadd.s32 %v1508, %v1504
        %v1513 = vadd.s32 %v1509, %v1511
        %v1514 = vadd.s32 %v1513, %v1503
        %v1515 = vadd.s32 %v1514, %v1505
        %v1516 = vmul.u32 %v1471, %v1462
        %v1517 = vadd.s32 %v1493, %v1512
        %vm1518 = vc.u32 %v1493, %v1512
        %v1519 = vadd.s32 %v1515, 1
        %v1520 = vsel %vm1518, %v1519, %v1515
        %v1521 = vadd.s32 %v1516, %v1520
        %v1522 = vadd.s32 %v1521, 536870912
        %v1523 = vshrl.u32 %v1522, 30
        %v1524 = vshll.u32 %v1523, 30
        %v1525 = vsub.s32 %v1521, %v1524
        %vm1526 = vcmp.lt.s32.totalorder %v1525, 0
        %v1527 = vsub.s32 0, %v1525
        %v1528 = vsel %vm1526, %v1527, %v1525
        %v1529 = vclz %v1528
        %v1530 = vsub.s32 %v1529, 2
        %vm1531 = vcmp.gt.s32.totalorder 0, %v1530
        %v1532 = vsel %vm1531, 0, %v1530
        %v1533 = vsub.s32 32, %v1532
        %v1534 = vshll.u32 %v1525, %v1532
        %v1535 = vshrl.u32 %v1517, %v1533
        %v1536 = vor.u32 %v1534, %v1535
        %v1537 = vsub.s32 4294967266, %v1532
        %v1538 = vadd.s32 %v1537, 127
        %v1539 = vshll.u32 %v1538, 23
        %v1540 = vor.u32 4788187, %v1539
        %v1541 = vand.u32 2147483647, %v1540
        %v1543 = vcvt.s32.f32 %v1536
        %v1544 = vmul.f32 %v1543, %v1541
        %v1545 = vxor.u32 %v1544, 2147483648
        %v1546 = vsel %vm1425, %v1545, %v1544
        %v1547 = vsub.s32 4, %v1523
        %v1548 = vsel %vm1425, %v1547, %v1523
        %v1549 = vsel %vm1424, %v336, %v1546
        %v1550 = vsel %vm1424, 0, %v1548
        %v1551 = vmul.f32 %v1549, %v1549
        %v1552 = vmul.f32 %v1551, -0.001358992
        %v1553 = vadd.f32 %v1552, 0.041655596
        %v1554 = vmul.f32 %v1551, %v1553
        %v1555 = vadd.f32 %v1554, -0.4999988
        %v1556 = vmul.f32 %v1551, %v1555
        %v1557 = vadd.f32 1.0, %v1556
        %v1558 = vmul.f32 %v1549, %v1549
        %v1559 = vmul.f32 %v1558, -0.00019511016
        %v1560 = vadd.f32 %v1559, 0.008332121
        %v1561 = vmul.f32 %v1558, %v1560
        %v1562 = vadd.f32 %v1561, -0.16666654
        %v1563 = vmul.f32 %v1558, %v1562
        %v1564 = vadd.f32 %v1563, 1.0
        %v1565 = vmul.f32 %v1564, %v1549
        %vm1566 = vweird.f32 %v336
        %v1567 = vand.u32 %v1550, 3
        %vm1568 = vcmp.lt.s32.totalorder %v1567, 2
        %vm1569 = vcmp.eq.s32.totalorder %v1567, 0
        %v1570 = vxor.u32 %v1565, 2147483648
        %v1571 = vsel %vm1569, %v1557, %v1570
        %vm1572 = vcmp.eq.s32.totalorder %v1567, 2
        %v1573 = vxor.u32 %v1557, 2147483648
        %v1574 = vsel %vm1572, %v1573, %v1565
        %v1575 = vsel %vm1568, %v1571, %v1574
        %v1576 = vsel %vm1566, nan, %v1575
        %v1577 = vand.u32 2147483647, %v337
        %vm1578 = vcmp.le.f32.partialorder %v1577, 0.7853982
        %vm1579 = vcmp.lt.s32.totalorder %v337, 0
        %v1580 = vand.u32 %v337, 2139095040
        %v1581 = vshrl.u32 %v1580, 23
        %v1582 = vsub.s32 %v1581, 127
        %v1583 = vand.u32 2147483647, %v337
        %v1584 = vand.u32 %v1583, 8388607
        %v1585 = vor.u32 %v1584, 8388608
        %v1586 = vsub.s32 0, %v1585
        %v1587 = vadd.s32 %v1582, 1
        %vm1588 = vcmp.gt.s32.totalorder %v1587, 0
        %v1589 = vsel %vm1588, %v1587, 0
        %v1590 = vshrl.u32 %v1589, 5
        %v1591 = vand.u32 %v1589, 31
        %v1592 = vsub.s32 32, %v1591
        %v1593 = vshrl.u32 683565275, %v1592
        %v1594 = vshll.u32 683565275, %v1591
        %v1595 = vshrl.u32 2475754826, %v1592
        %v1596 = vor.u32 %v1594, %v1595
        %v1597 = vshll.u32 2475754826, %v1591
        %v1598 = vshrl.u32 2131351028, %v1592
        %v1599 = vor.u32 %v1597, %v1598
        %v1600 = vshll.u32 2131351028, %v1591
        %v1601 = vshrl.u32 2102212464, %v1592
        %v1602 = vor.u32 %v1600, %v1601
        %v1603 = vshll.u32 2102212464, %v1591
        %v1604 = vshrl.u32 920167782, %v1592
        %v1605 = vor.u32 %v1603, %v1604
        %v1606 = vshll.u32 920167782, %v1591
        %v1607 = vshrl.u32 1326507024, %v1592
        %v1608 = vor.u32 %v1606, %v1607
        %vm1609 = vcmp.lt.s32.totalorder %v1590, 1
        %vm1610 = vcmp.lt.s32.totalorder %v1590, 2
        %vm1611 = vcmp.lt.s32.totalorder %v1590, 3
        %vm1612 = vcmp.lt.s32.totalorder %v1590, 4
        %v1613 = vsel %vm1609, %v1593, %v1596
        %v1614 = vsel %vm1612, %v1602, 2102212464
        %v1615 = vsel %vm1611, %v1599, %v1614
        %v1616 = vsel %vm1610, %v1613, %v1615
        %v1617 = vsel %vm1609, %v1596, %v1599
        %v1618 = vsel %vm1612, %v1605, 920167782
        %v1619 = vsel %vm1611, %v1602, %v1618
        %v1620 = vsel %vm1610, %v1617, %v1619
        %v1621 = vsel %vm1609, %v1599, %v1602
        %v1622 = vsel %vm1612, %v1608, 1326507024
        %v1623 = vsel %vm1611, %v1605, %v1622
        %v1624 = vsel %vm1610, %v1621, %v1623
        %v1625 = vshll.u32 %v1585, 8
        %v1626 = vand.u32 %v1625, 65535
        %v1627 = vshrl.u32 %v1625, 16
        %v1628 = vand.u32 %v1624, 65535
        %v1629 = vshrl.u32 %v1624, 16
        %v1630 = vmul.u32 %v1626, %v1628
        %v1631 = vmul.u32 %v1626, %v1629
        %v1632 = vmul.u32 %v1627, %v1628
        %v1633 = vmul.u32 %v1627, %v1629
        %v1634 = vshll.u32 %v1631, 16
        %v1635 = vshrl.u32 %v1631, 16
        %v1636 = vshll.u32 %v1632, 16
        %v1637 = vshrl.u32 %v1632, 16
        %vm1638 = vc.u32 %v1630, %v1634
        %v1639 = vsel %vm1638, 1, 0
        %v1640 = vadd.s32 %v1630, %v1634
        %v1641 = vadd.s32 %v1633, %v1639
        %vm1642 = vc.u32 %v1640, %v1636
        %v1643 = vsel %vm1642, 1, 0
        %v1644 = vadd.s32 %v1640, %v1636
        %v1645 = vadd.s32 %v1641, %v1643
        %v1646 = vadd.s32 %v1645, %v1635
        %v1647 = vadd.s32 %v1646, %v1637
        %v1648 = vand.u32 %v1625, 65535
        %v1649 = vshrl.u32 %v1625, 16
        %v1650 = vand.u32 %v1620, 65535
        %v1651 = vshrl.u32 %v1620, 16
        %v1652 = vmul.u32 %v1648, %v1650
        %v1653 = vmul.u32 %v1648, %v1651
        %v1654 = vmul.u32 %v1649, %v1650
        %v1655 = vmul.u32 %v1649, %v1651
        %v1656 = vshll.u32 %v1653, 16
        %v1657 = vshrl.u32 %v1653, 16
        %v1658 = vshll.u32 %v1654, 16
        %v1659 = vshrl.u32 %v1654, 16
        %vm1660 = vc.u32 %v1652, %v1656
        %v1661 = vsel %vm1660, 1, 0
        %v1662 = vadd.s32 %v1652, %v1656
        %v1663 = vadd.s32 %v1655, %v1661
        %vm1664 = vc.u32 %v1662, %v1658
        %v1665 = vsel %vm1664, 1, 0
        %v1666 = vadd.s32 %v1662, %v1658
        %v1667 = vadd.s32 %v1663, %v1665
        %v1668 = vadd.s32 %v1667, %v1657
        %v1669 = vadd.s32 %v1668, %v1659
        %v1670 = vmul.u32 %v1625, %v1616
        %v1671 = vadd.s32 %v1647, %v1666
        %vm1672 = vc.u32 %v1647, %v1666
        %v1673 = vadd.s32 %v1669, 1
        %v1674 = vsel %vm1672, %v1673, %v1669
        %v1675 = vadd.s32 %v1670, %v1674
        %v1676 = vadd.s32 %v1675, 536870912
        %v1677 = vshrl.u32 %v1676, 30
        %v1678 = vshll.u32 %v1677, 30
        %v1679 = vsub.s32 %v1675, %v1678
        %vm1680 = vcmp.lt.s32.totalorder %v1679, 0
        %v1681 = vsub.s32 0, %v1679
        %v1682 = vsel %vm1680, %v1681, %v1679
        %v1683 = vclz %v1682
        %v1684 = vsub.s32 %v1683, 2
        %vm1685 = vcmp.gt.s32.totalorder 0, %v1684
        %v1686 = vsel %vm1685, 0, %v1684
        %v1687 = vsub.s32 32, %v1686
        %v1688 = vshll.u32 %v1679, %v1686
        %v1689 = vshrl.u32 %v1671, %v1687
        %v1690 = vor.u32 %v1688, %v1689
        %v1691 = vsub.s32 4294967266, %v1686
        %v1692 = vadd.s32 %v1691, 127
        %v1693 = vshll.u32 %v1692, 23
        %v1694 = vor.u32 4788187, %v1693
        %v1695 = vand.u32 2147483647, %v1694
        %v1697 = vcvt.s32.f32 %v1690
        %v1698 = vmul.f32 %v1697, %v1695
        %v1699 = vxor.u32 %v1698, 2147483648
        %v1700 = vsel %vm1579, %v1699, %v1698
        %v1701 = vsub.s32 4, %v1677
        %v1702 = vsel %vm1579, %v1701, %v1677
        %v1703 = vsel %vm1578, %v337, %v1700
        %v1704 = vsel %vm1578, 0, %v1702
        %v1705 = vmul.f32 %v1703, %v1703
        %v1706 = vmul.f32 %v1705, -0.001358992
        %v1707 = vadd.f32 %v1706, 0.041655596
        %v1708 = vmul.f32 %v1705, %v1707
        %v1709 = vadd.f32 %v1708, -0.4999988
        %v1710 = vmul.f32 %v1705, %v1709
        %v1711 = vadd.f32 1.0, %v1710
        %v1712 = vmul.f32 %v1703, %v1703
        %v1713 = vmul.f32 %v1712, -0.00019511016
        %v1714 = vadd.f32 %v1713, 0.008332121
        %v1715 = vmul.f32 %v1712, %v1714
        %v1716 = vadd.f32 %v1715, -0.16666654
        %v1717 = vmul.f32 %v1712, %v1716
        %v1718 = vadd.f32 %v1717, 1.0
        %v1719 = vmul.f32 %v1718, %v1703
        %vm1720 = vweird.f32 %v337
        %v1721 = vand.u32 %v1704, 3
        %vm1722 = vcmp.lt.s32.totalorder %v1721, 2
        %vm1723 = vcmp.eq.s32.totalorder %v1721, 0
        %v1724 = vxor.u32 %v1719, 2147483648
        %v1725 = vsel %vm1723, %v1711, %v1724
        %vm1726 = vcmp.eq.s32.totalorder %v1721, 2
        %v1727 = vxor.u32 %v1711, 2147483648
        %v1728 = vsel %vm1726, %v1727, %v1719
        %v1729 = vsel %vm1722, %v1725, %v1728
        %v1730 = vsel %vm1720, nan, %v1729
        %v1731 = vand.u32 2147483647, %v338
        %vm1732 = vcmp.le.f32.partialorder %v1731, 0.7853982
        %vm1733 = vcmp.lt.s32.totalorder %v338, 0
        %v1734 = vand.u32 %v338, 2139095040
        %v1735 = vshrl.u32 %v1734, 23
        %v1736 = vsub.s32 %v1735, 127
        %v1737 = vand.u32 2147483647, %v338
        %v1738 = vand.u32 %v1737, 8388607
        %v1739 = vor.u32 %v1738, 8388608
        %v1740 = vsub.s32 0, %v1739
        %v1741 = vadd.s32 %v1736, 1
        %vm1742 = vcmp.gt.s32.totalorder %v1741, 0
        %v1743 = vsel %vm1742, %v1741, 0
        %v1744 = vshrl.u32 %v1743, 5
        %v1745 = vand.u32 %v1743, 31
        %v1746 = vsub.s32 32, %v1745
        %v1747 = vshrl.u32 683565275, %v1746
        %v1748 = vshll.u32 683565275, %v1745
        %v1749 = vshrl.u32 2475754826, %v1746
        %v1750 = vor.u32 %v1748, %v1749
        %v1751 = vshll.u32 2475754826, %v1745
        %v1752 = vshrl.u32 2131351028, %v1746
        %v1753 = vor.u32 %v1751, %v1752
        %v1754 = vshll.u32 2131351028, %v1745
        %v1755 = vshrl.u32 2102212464, %v1746
        %v1756 = vor.u32 %v1754, %v1755
        %v1757 = vshll.u32 2102212464, %v1745
        %v1758 = vshrl.u32 920167782, %v1746
        %v1759 = vor.u32 %v1757, %v1758
        %v1760 = vshll.u32 920167782, %v1745
        %v1761 = vshrl.u32 1326507024, %v1746
        %v1762 = vor.u32 %v1760, %v1761
        %vm1763 = vcmp.lt.s32.totalorder %v1744, 1
        %vm1764 = vcmp.lt.s32.totalorder %v1744, 2
        %vm1765 = vcmp.lt.s32.totalorder %v1744, 3
        %vm1766 = vcmp.lt.s32.totalorder %v1744, 4
        %v1767 = vsel %vm1763, %v1747, %v1750
        %v1768 = vsel %vm1766, %v1756, 2102212464
        %v1769 = vsel %vm1765, %v1753, %v1768
        %v1770 = vsel %vm1764, %v1767, %v1769
        %v1771 = vsel %vm1763, %v1750, %v1753
        %v1772 = vsel %vm1766, %v1759, 920167782
        %v1773 = vsel %vm1765, %v1756, %v1772
        %v1774 = vsel %vm1764, %v1771, %v1773
        %v1775 = vsel %vm1763, %v1753, %v1756
        %v1776 = vsel %vm1766, %v1762, 1326507024
        %v1777 = vsel %vm1765, %v1759, %v1776
        %v1778 = vsel %vm1764, %v1775, %v1777
        %v1779 = vshll.u32 %v1739, 8
        %v1780 = vand.u32 %v1779, 65535
        %v1781 = vshrl.u32 %v1779, 16
        %v1782 = vand.u32 %v1778, 65535
        %v1783 = vshrl.u32 %v1778, 16
        %v1784 = vmul.u32 %v1780, %v1782
        %v1785 = vmul.u32 %v1780, %v1783
        %v1786 = vmul.u32 %v1781, %v1782
        %v1787 = vmul.u32 %v1781, %v1783
        %v1788 = vshll.u32 %v1785, 16
        %v1789 = vshrl.u32 %v1785, 16
        %v1790 = vshll.u32 %v1786, 16
        %v1791 = vshrl.u32 %v1786, 16
        %vm1792 = vc.u32 %v1784, %v1788
        %v1793 = vsel %vm1792, 1, 0
        %v1794 = vadd.s32 %v1784, %v1788
        %v1795 = vadd.s32 %v1787, %v1793
        %vm1796 = vc.u32 %v1794, %v1790
        %v1797 = vsel %vm1796, 1, 0
        %v1798 = vadd.s32 %v1794, %v1790
        %v1799 = vadd.s32 %v1795, %v1797
        %v1800 = vadd.s32 %v1799, %v1789
        %v1801 = vadd.s32 %v1800, %v1791
        %v1802 = vand.u32 %v1779, 65535
        %v1803 = vshrl.u32 %v1779, 16
        %v1804 = vand.u32 %v1774, 65535
        %v1805 = vshrl.u32 %v1774, 16
        %v1806 = vmul.u32 %v1802, %v1804
        %v1807 = vmul.u32 %v1802, %v1805
        %v1808 = vmul.u32 %v1803, %v1804
        %v1809 = vmul.u32 %v1803, %v1805
        %v1810 = vshll.u32 %v1807, 16
        %v1811 = vshrl.u32 %v1807, 16
        %v1812 = vshll.u32 %v1808, 16
        %v1813 = vshrl.u32 %v1808, 16
        %vm1814 = vc.u32 %v1806, %v1810
        %v1815 = vsel %vm1814, 1, 0
        %v1816 = vadd.s32 %v1806, %v1810
        %v1817 = vadd.s32 %v1809, %v1815
        %vm1818 = vc.u32 %v1816, %v1812
        %v1819 = vsel %vm1818, 1, 0
        %v1820 = vadd.s32 %v1816, %v1812
        %v1821 = vadd.s32 %v1817, %v1819
        %v1822 = vadd.s32 %v1821, %v1811
        %v1823 = vadd.s32 %v1822, %v1813
        %v1824 = vmul.u32 %v1779, %v1770
        %v1825 = vadd.s32 %v1801, %v1820
        %vm1826 = vc.u32 %v1801, %v1820
        %v1827 = vadd.s32 %v1823, 1
        %v1828 = vsel %vm1826, %v1827, %v1823
        %v1829 = vadd.s32 %v1824, %v1828
        %v1830 = vadd.s32 %v1829, 536870912
        %v1831 = vshrl.u32 %v1830, 30
        %v1832 = vshll.u32 %v1831, 30
        %v1833 = vsub.s32 %v1829, %v1832
        %vm1834 = vcmp.lt.s32.totalorder %v1833, 0
        %v1835 = vsub.s32 0, %v1833
        %v1836 = vsel %vm1834, %v1835, %v1833
        %v1837 = vclz %v1836
        %v1838 = vsub.s32 %v1837, 2
        %vm1839 = vcmp.gt.s32.totalorder 0, %v1838
        %v1840 = vsel %vm1839, 0, %v1838
        %v1841 = vsub.s32 32, %v1840
        %v1842 = vshll.u32 %v1833, %v1840
        %v1843 = vshrl.u32 %v1825, %v1841
        %v1844 = vor.u32 %v1842, %v1843
        %v1845 = vsub.s32 4294967266, %v1840
        %v1846 = vadd.s32 %v1845, 127
        %v1847 = vshll.u32 %v1846, 23
        %v1848 = vor.u32 4788187, %v1847
        %v1849 = vand.u32 2147483647, %v1848
        %v1851 = vcvt.s32.f32 %v1844
        %v1852 = vmul.f32 %v1851, %v1849
        %v1853 = vxor.u32 %v1852, 2147483648
        %v1854 = vsel %vm1733, %v1853, %v1852
        %v1855 = vsub.s32 4, %v1831
        %v1856 = vsel %vm1733, %v1855, %v1831
        %v1857 = vsel %vm1732, %v338, %v1854
        %v1858 = vsel %vm1732, 0, %v1856
        %v1859 = vmul.f32 %v1857, %v1857
        %v1860 = vmul.f32 %v1859, -0.001358992
        %v1861 = vadd.f32 %v1860, 0.041655596
        %v1862 = vmul.f32 %v1859, %v1861
        %v1863 = vadd.f32 %v1862, -0.4999988
        %v1864 = vmul.f32 %v1859, %v1863
        %v1865 = vadd.f32 1.0, %v1864
        %v1866 = vmul.f32 %v1857, %v1857
        %v1867 = vmul.f32 %v1866, -0.00019511016
        %v1868 = vadd.f32 %v1867, 0.008332121
        %v1869 = vmul.f32 %v1866, %v1868
        %v1870 = vadd.f32 %v1869, -0.16666654
        %v1871 = vmul.f32 %v1866, %v1870
        %v1872 = vadd.f32 %v1871, 1.0
        %v1873 = vmul.f32 %v1872, %v1857
        %vm1874 = vweird.f32 %v338
        %v1875 = vand.u32 %v1858, 3
        %vm1876 = vcmp.lt.s32.totalorder %v1875, 2
        %vm1877 = vcmp.eq.s32.totalorder %v1875, 0
        %v1878 = vxor.u32 %v1873, 2147483648
        %v1879 = vsel %vm1877, %v1865, %v1878
        %vm1880 = vcmp.eq.s32.totalorder %v1875, 2
        %v1881 = vxor.u32 %v1865, 2147483648
        %v1882 = vsel %vm1880, %v1881, %v1873
        %v1883 = vsel %vm1876, %v1879, %v1882
        %v1884 = vsel %vm1874, nan, %v1883
        %v1885 = vand.u32 2147483647, %v339
        %vm1886 = vcmp.le.f32.partialorder %v1885, 0.7853982
        %vm1887 = vcmp.lt.s32.totalorder %v339, 0
        %v1888 = vand.u32 %v339, 2139095040
        %v1889 = vshrl.u32 %v1888, 23
        %v1890 = vsub.s32 %v1889, 127
        %v1891 = vand.u32 2147483647, %v339
        %v1892 = vand.u32 %v1891, 8388607
        %v1893 = vor.u32 %v1892, 8388608
        %v1894 = vsub.s32 0, %v1893
        %v1895 = vadd.s32 %v1890, 1
        %vm1896 = vcmp.gt.s32.totalorder %v1895, 0
        %v1897 = vsel %vm1896, %v1895, 0
        %v1898 = vshrl.u32 %v1897, 5
        %v1899 = vand.u32 %v1897, 31
        %v1900 = vsub.s32 32, %v1899
        %v1901 = vshrl.u32 683565275, %v1900
        %v1902 = vshll.u32 683565275, %v1899
        %v1903 = vshrl.u32 2475754826, %v1900
        %v1904 = vor.u32 %v1902, %v1903
        %v1905 = vshll.u32 2475754826, %v1899
        %v1906 = vshrl.u32 2131351028, %v1900
        %v1907 = vor.u32 %v1905, %v1906
        %v1908 = vshll.u32 2131351028, %v1899
        %v1909 = vshrl.u32 2102212464, %v1900
        %v1910 = vor.u32 %v1908, %v1909
        %v1911 = vshll.u32 2102212464, %v1899
        %v1912 = vshrl.u32 920167782, %v1900
        %v1913 = vor.u32 %v1911, %v1912
        %v1914 = vshll.u32 920167782, %v1899
        %v1915 = vshrl.u32 1326507024, %v1900
        %v1916 = vor.u32 %v1914, %v1915
        %vm1917 = vcmp.lt.s32.totalorder %v1898, 1
        %vm1918 = vcmp.lt.s32.totalorder %v1898, 2
        %vm1919 = vcmp.lt.s32.totalorder %v1898, 3
        %vm1920 = vcmp.lt.s32.totalorder %v1898, 4
        %v1921 = vsel %vm1917, %v1901, %v1904
        %v1922 = vsel %vm1920, %v1910, 2102212464
        %v1923 = vsel %vm1919, %v1907, %v1922
        %v1924 = vsel %vm1918, %v1921, %v1923
        %v1925 = vsel %vm1917, %v1904, %v1907
        %v1926 = vsel %vm1920, %v1913, 920167782
        %v1927 = vsel %vm1919, %v1910, %v1926
        %v1928 = vsel %vm1918, %v1925, %v1927
        %v1929 = vsel %vm1917, %v1907, %v1910
        %v1930 = vsel %vm1920, %v1916, 1326507024
        %v1931 = vsel %vm1919, %v1913, %v1930
        %v1932 = vsel %vm1918, %v1929, %v1931
        %v1933 = vshll.u32 %v1893, 8
        %v1934 = vand.u32 %v1933, 65535
        %v1935 = vshrl.u32 %v1933, 16
        %v1936 = vand.u32 %v1932, 65535
        %v1937 = vshrl.u32 %v1932, 16
        %v1938 = vmul.u32 %v1934, %v1936
        %v1939 = vmul.u32 %v1934, %v1937
        %v1940 = vmul.u32 %v1935, %v1936
        %v1941 = vmul.u32 %v1935, %v1937
        %v1942 = vshll.u32 %v1939, 16
        %v1943 = vshrl.u32 %v1939, 16
        %v1944 = vshll.u32 %v1940, 16
        %v1945 = vshrl.u32 %v1940, 16
        %vm1946 = vc.u32 %v1938, %v1942
        %v1947 = vsel %vm1946, 1, 0
        %v1948 = vadd.s32 %v1938, %v1942
        %v1949 = vadd.s32 %v1941, %v1947
        %vm1950 = vc.u32 %v1948, %v1944
        %v1951 = vsel %vm1950, 1, 0
        %v1952 = vadd.s32 %v1948, %v1944
        %v1953 = vadd.s32 %v1949, %v1951
        %v1954 = vadd.s32 %v1953, %v1943
        %v1955 = vadd.s32 %v1954, %v1945
        %v1956 = vand.u32 %v1933, 65535
        %v1957 = vshrl.u32 %v1933, 16
        %v1958 = vand.u32 %v1928, 65535
        %v1959 = vshrl.u32 %v1928, 16
        %v1960 = vmul.u32 %v1956, %v1958
        %v1961 = vmul.u32 %v1956, %v1959
        %v1962 = vmul.u32 %v1957, %v1958
        %v1963 = vmul.u32 %v1957, %v1959
        %v1964 = vshll.u32 %v1961, 16
        %v1965 = vshrl.u32 %v1961, 16
        %v1966 = vshll.u32 %v1962, 16
        %v1967 = vshrl.u32 %v1962, 16
        %vm1968 = vc.u32 %v1960, %v1964
        %v1969 = vsel %vm1968, 1, 0
        %v1970 = vadd.s32 %v1960, %v1964
        %v1971 = vadd.s32 %v1963, %v1969
        %vm1972 = vc.u32 %v1970, %v1966
        %v1973 = vsel %vm1972, 1, 0
        %v1974 = vadd.s32 %v1970, %v1966
        %v1975 = vadd.s32 %v1971, %v1973
        %v1976 = vadd.s32 %v1975, %v1965
        %v1977 = vadd.s32 %v1976, %v1967
        %v1978 = vmul.u32 %v1933, %v1924
        %v1979 = vadd.s32 %v1955, %v1974
        %vm1980 = vc.u32 %v1955, %v1974
        %v1981 = vadd.s32 %v1977, 1
        %v1982 = vsel %vm1980, %v1981, %v1977
        %v1983 = vadd.s32 %v1978, %v1982
        %v1984 = vadd.s32 %v1983, 536870912
        %v1985 = vshrl.u32 %v1984, 30
        %v1986 = vshll.u32 %v1985, 30
        %v1987 = vsub.s32 %v1983, %v1986
        %vm1988 = vcmp.lt.s32.totalorder %v1987, 0
        %v1989 = vsub.s32 0, %v1987
        %v1990 = vsel %vm1988, %v1989, %v1987
        %v1991 = vclz %v1990
        %v1992 = vsub.s32 %v1991, 2
        %vm1993 = vcmp.gt.s32.totalorder 0, %v1992
        %v1994 = vsel %vm1993, 0, %v1992
        %v1995 = vsub.s32 32, %v1994
        %v1996 = vshll.u32 %v1987, %v1994
        %v1997 = vshrl.u32 %v1979, %v1995
        %v1998 = vor.u32 %v1996, %v1997
        %v1999 = vsub.s32 4294967266, %v1994
        %v2000 = vadd.s32 %v1999, 127
        %v2001 = vshll.u32 %v2000, 23
        %v2002 = vor.u32 4788187, %v2001
        %v2003 = vand.u32 2147483647, %v2002
        %v2005 = vcvt.s32.f32 %v1998
        %v2006 = vmul.f32 %v2005, %v2003
        %v2007 = vxor.u32 %v2006, 2147483648
        %v2008 = vsel %vm1887, %v2007, %v2006
        %v2009 = vsub.s32 4, %v1985
        %v2010 = vsel %vm1887, %v2009, %v1985
        %v2011 = vsel %vm1886, %v339, %v2008
        %v2012 = vsel %vm1886, 0, %v2010
        %v2013 = vmul.f32 %v2011, %v2011
        %v2014 = vmul.f32 %v2013, -0.001358992
        %v2015 = vadd.f32 %v2014, 0.041655596
        %v2016 = vmul.f32 %v2013, %v2015
        %v2017 = vadd.f32 %v2016, -0.4999988
        %v2018 = vmul.f32 %v2013, %v2017
        %v2019 = vadd.f32 1.0, %v2018
        %v2020 = vmul.f32 %v2011, %v2011
        %v2021 = vmul.f32 %v2020, -0.00019511016
        %v2022 = vadd.f32 %v2021, 0.008332121
        %v2023 = vmul.f32 %v2020, %v2022
        %v2024 = vadd.f32 %v2023, -0.16666654
        %v2025 = vmul.f32 %v2020, %v2024
        %v2026 = vadd.f32 %v2025, 1.0
        %v2027 = vmul.f32 %v2026, %v2011
        %vm2028 = vweird.f32 %v339
        %v2029 = vand.u32 %v2012, 3
        %vm2030 = vcmp.lt.s32.totalorder %v2029, 2
        %vm2031 = vcmp.eq.s32.totalorder %v2029, 0
        %v2032 = vxor.u32 %v2027, 2147483648
        %v2033 = vsel %vm2031, %v2019, %v2032
        %vm2034 = vcmp.eq.s32.totalorder %v2029, 2
        %v2035 = vxor.u32 %v2019, 2147483648
        %v2036 = vsel %vm2034, %v2035, %v2027
        %v2037 = vsel %vm2030, %v2033, %v2036
        %v2038 = vsel %vm2028, nan, %v2037
        %v2039 = vand.u32 2147483647, %v340
        %vm2040 = vcmp.le.f32.partialorder %v2039, 0.7853982
        %vm2041 = vcmp.lt.s32.totalorder %v340, 0
        %v2042 = vand.u32 %v340, 2139095040
        %v2043 = vshrl.u32 %v2042, 23
        %v2044 = vsub.s32 %v2043, 127
        %v2045 = vand.u32 2147483647, %v340
        %v2046 = vand.u32 %v2045, 8388607
        %v2047 = vor.u32 %v2046, 8388608
        %v2048 = vsub.s32 0, %v2047
        %v2049 = vadd.s32 %v2044, 1
        %vm2050 = vcmp.gt.s32.totalorder %v2049, 0
        %v2051 = vsel %vm2050, %v2049, 0
        %v2052 = vshrl.u32 %v2051, 5
        %v2053 = vand.u32 %v2051, 31
        %v2054 = vsub.s32 32, %v2053
        %v2055 = vshrl.u32 683565275, %v2054
        %v2056 = vshll.u32 683565275, %v2053
        %v2057 = vshrl.u32 2475754826, %v2054
        %v2058 = vor.u32 %v2056, %v2057
        %v2059 = vshll.u32 2475754826, %v2053
        %v2060 = vshrl.u32 2131351028, %v2054
        %v2061 = vor.u32 %v2059, %v2060
        %v2062 = vshll.u32 2131351028, %v2053
        %v2063 = vshrl.u32 2102212464, %v2054
        %v2064 = vor.u32 %v2062, %v2063
        %v2065 = vshll.u32 2102212464, %v2053
        %v2066 = vshrl.u32 920167782, %v2054
        %v2067 = vor.u32 %v2065, %v2066
        %v2068 = vshll.u32 920167782, %v2053
        %v2069 = vshrl.u32 1326507024, %v2054
        %v2070 = vor.u32 %v2068, %v2069
        %vm2071 = vcmp.lt.s32.totalorder %v2052, 1
        %vm2072 = vcmp.lt.s32.totalorder %v2052, 2
        %vm2073 = vcmp.lt.s32.totalorder %v2052, 3
        %vm2074 = vcmp.lt.s32.totalorder %v2052, 4
        %v2075 = vsel %vm2071, %v2055, %v2058
        %v2076 = vsel %vm2074, %v2064, 2102212464
        %v2077 = vsel %vm2073, %v2061, %v2076
        %v2078 = vsel %vm2072, %v2075, %v2077
        %v2079 = vsel %vm2071, %v2058, %v2061
        %v2080 = vsel %vm2074, %v2067, 920167782
        %v2081 = vsel %vm2073, %v2064, %v2080
        %v2082 = vsel %vm2072, %v2079, %v2081
        %v2083 = vsel %vm2071, %v2061, %v2064
        %v2084 = vsel %vm2074, %v2070, 1326507024
        %v2085 = vsel %vm2073, %v2067, %v2084
        %v2086 = vsel %vm2072, %v2083, %v2085
        %v2087 = vshll.u32 %v2047, 8
        %v2088 = vand.u32 %v2087, 65535
        %v2089 = vshrl.u32 %v2087, 16
        %v2090 = vand.u32 %v2086, 65535
        %v2091 = vshrl.u32 %v2086, 16
        %v2092 = vmul.u32 %v2088, %v2090
        %v2093 = vmul.u32 %v2088, %v2091
        %v2094 = vmul.u32 %v2089, %v2090
        %v2095 = vmul.u32 %v2089, %v2091
        %v2096 = vshll.u32 %v2093, 16
        %v2097 = vshrl.u32 %v2093, 16
        %v2098 = vshll.u32 %v2094, 16
        %v2099 = vshrl.u32 %v2094, 16
        %vm2100 = vc.u32 %v2092, %v2096
        %v2101 = vsel %vm2100, 1, 0
        %v2102 = vadd.s32 %v2092, %v2096
        %v2103 = vadd.s32 %v2095, %v2101
        %vm2104 = vc.u32 %v2102, %v2098
        %v2105 = vsel %vm2104, 1, 0
        %v2106 = vadd.s32 %v2102, %v2098
        %v2107 = vadd.s32 %v2103, %v2105
        %v2108 = vadd.s32 %v2107, %v2097
        %v2109 = vadd.s32 %v2108, %v2099
        %v2110 = vand.u32 %v2087, 65535
        %v2111 = vshrl.u32 %v2087, 16
        %v2112 = vand.u32 %v2082, 65535
        %v2113 = vshrl.u32 %v2082, 16
        %v2114 = vmul.u32 %v2110, %v2112
        %v2115 = vmul.u32 %v2110, %v2113
        %v2116 = vmul.u32 %v2111, %v2112
        %v2117 = vmul.u32 %v2111, %v2113
        %v2118 = vshll.u32 %v2115, 16
        %v2119 = vshrl.u32 %v2115, 16
        %v2120 = vshll.u32 %v2116, 16
        %v2121 = vshrl.u32 %v2116, 16
        %vm2122 = vc.u32 %v2114, %v2118
        %v2123 = vsel %vm2122, 1, 0
        %v2124 = vadd.s32 %v2114, %v2118
        %v2125 = vadd.s32 %v2117, %v2123
        %vm2126 = vc.u32 %v2124, %v2120
        %v2127 = vsel %vm2126, 1, 0
        %v2128 = vadd.s32 %v2124, %v2120
        %v2129 = vadd.s32 %v2125, %v2127
        %v2130 = vadd.s32 %v2129, %v2119
        %v2131 = vadd.s32 %v2130, %v2121
        %v2132 = vmul.u32 %v2087, %v2078
        %v2133 = vadd.s32 %v2109, %v2128
        %vm2134 = vc.u32 %v2109, %v2128
        %v2135 = vadd.s32 %v2131, 1
        %v2136 = vsel %vm2134, %v2135, %v2131
        %v2137 = vadd.s32 %v2132, %v2136
        %v2138 = vadd.s32 %v2137, 536870912
        %v2139 = vshrl.u32 %v2138, 30
        %v2140 = vshll.u32 %v2139, 30
        %v2141 = vsub.s32 %v2137, %v2140
        %vm2142 = vcmp.lt.s32.totalorder %v2141, 0
        %v2143 = vsub.s32 0, %v2141
        %v2144 = vsel %vm2142, %v2143, %v2141
        %v2145 = vclz %v2144
        %v2146 = vsub.s32 %v2145, 2
        %vm2147 = vcmp.gt.s32.totalorder 0, %v2146
        %v2148 = vsel %vm2147, 0, %v2146
        %v2149 = vsub.s32 32, %v2148
        %v2150 = vshll.u32 %v2141, %v2148
        %v2151 = vshrl.u32 %v2133, %v2149
        %v2152 = vor.u32 %v2150, %v2151
        %v2153 = vsub.s32 4294967266, %v2148
        %v2154 = vadd.s32 %v2153, 127
        %v2155 = vshll.u32 %v2154, 23
        %v2156 = vor.u32 4788187, %v2155
        %v2157 = vand.u32 2147483647, %v2156
        %v2159 = vcvt.s32.f32 %v2152
        %v2160 = vmul.f32 %v2159, %v2157
        %v2161 = vxor.u32 %v2160, 2147483648
        %v2162 = vsel %vm2041, %v2161, %v2160
        %v2163 = vsub.s32 4, %v2139
        %v2164 = vsel %vm2041, %v2163, %v2139
        %v2165 = vsel %vm2040, %v340, %v2162
        %v2166 = vsel %vm2040, 0, %v2164
        %v2167 = vmul.f32 %v2165, %v2165
        %v2168 = vmul.f32 %v2167, -0.001358992
        %v2169 = vadd.f32 %v2168, 0.041655596
        %v2170 = vmul.f32 %v2167, %v2169
        %v2171 = vadd.f32 %v2170, -0.4999988
        %v2172 = vmul.f32 %v2167, %v2171
        %v2173 = vadd.f32 1.0, %v2172
        %v2174 = vmul.f32 %v2165, %v2165
        %v2175 = vmul.f32 %v2174, -0.00019511016
        %v2176 = vadd.f32 %v2175, 0.008332121
        %v2177 = vmul.f32 %v2174, %v2176
        %v2178 = vadd.f32 %v2177, -0.16666654
        %v2179 = vmul.f32 %v2174, %v2178
        %v2180 = vadd.f32 %v2179, 1.0
        %v2181 = vmul.f32 %v2180, %v2165
        %vm2182 = vweird.f32 %v340
        %v2183 = vand.u32 %v2166, 3
        %vm2184 = vcmp.lt.s32.totalorder %v2183, 2
        %vm2185 = vcmp.eq.s32.totalorder %v2183, 0
        %v2186 = vxor.u32 %v2181, 2147483648
        %v2187 = vsel %vm2185, %v2173, %v2186
        %vm2188 = vcmp.eq.s32.totalorder %v2183, 2
        %v2189 = vxor.u32 %v2173, 2147483648
        %v2190 = vsel %vm2188, %v2189, %v2181
        %v2191 = vsel %vm2184, %v2187, %v2190
        %v2192 = vsel %vm2182, nan, %v2191
        %v2193 = vand.u32 2147483647, %v341
        %vm2194 = vcmp.le.f32.partialorder %v2193, 0.7853982
        %vm2195 = vcmp.lt.s32.totalorder %v341, 0
        %v2196 = vand.u32 %v341, 2139095040
        %v2197 = vshrl.u32 %v2196, 23
        %v2198 = vsub.s32 %v2197, 127
        %v2199 = vand.u32 2147483647, %v341
        %v2200 = vand.u32 %v2199, 8388607
        %v2201 = vor.u32 %v2200, 8388608
        %v2202 = vsub.s32 0, %v2201
        %v2203 = vadd.s32 %v2198, 1
        %vm2204 = vcmp.gt.s32.totalorder %v2203, 0
        %v2205 = vsel %vm2204, %v2203, 0
        %v2206 = vshrl.u32 %v2205, 5
        %v2207 = vand.u32 %v2205, 31
        %v2208 = vsub.s32 32, %v2207
        %v2209 = vshrl.u32 683565275, %v2208
        %v2210 = vshll.u32 683565275, %v2207
        %v2211 = vshrl.u32 2475754826, %v2208
        %v2212 = vor.u32 %v2210, %v2211
        %v2213 = vshll.u32 2475754826, %v2207
        %v2214 = vshrl.u32 2131351028, %v2208
        %v2215 = vor.u32 %v2213, %v2214
        %v2216 = vshll.u32 2131351028, %v2207
        %v2217 = vshrl.u32 2102212464, %v2208
        %v2218 = vor.u32 %v2216, %v2217
        %v2219 = vshll.u32 2102212464, %v2207
        %v2220 = vshrl.u32 920167782, %v2208
        %v2221 = vor.u32 %v2219, %v2220
        %v2222 = vshll.u32 920167782, %v2207
        %v2223 = vshrl.u32 1326507024, %v2208
        %v2224 = vor.u32 %v2222, %v2223
        %vm2225 = vcmp.lt.s32.totalorder %v2206, 1
        %vm2226 = vcmp.lt.s32.totalorder %v2206, 2
        %vm2227 = vcmp.lt.s32.totalorder %v2206, 3
        %vm2228 = vcmp.lt.s32.totalorder %v2206, 4
        %v2229 = vsel %vm2225, %v2209, %v2212
        %v2230 = vsel %vm2228, %v2218, 2102212464
        %v2231 = vsel %vm2227, %v2215, %v2230
        %v2232 = vsel %vm2226, %v2229, %v2231
        %v2233 = vsel %vm2225, %v2212, %v2215
        %v2234 = vsel %vm2228, %v2221, 920167782
        %v2235 = vsel %vm2227, %v2218, %v2234
        %v2236 = vsel %vm2226, %v2233, %v2235
        %v2237 = vsel %vm2225, %v2215, %v2218
        %v2238 = vsel %vm2228, %v2224, 1326507024
        %v2239 = vsel %vm2227, %v2221, %v2238
        %v2240 = vsel %vm2226, %v2237, %v2239
        %v2241 = vshll.u32 %v2201, 8
        %v2242 = vand.u32 %v2241, 65535
        %v2243 = vshrl.u32 %v2241, 16
        %v2244 = vand.u32 %v2240, 65535
        %v2245 = vshrl.u32 %v2240, 16
        %v2246 = vmul.u32 %v2242, %v2244
        %v2247 = vmul.u32 %v2242, %v2245
        %v2248 = vmul.u32 %v2243, %v2244
        %v2249 = vmul.u32 %v2243, %v2245
        %v2250 = vshll.u32 %v2247, 16
        %v2251 = vshrl.u32 %v2247, 16
        %v2252 = vshll.u32 %v2248, 16
        %v2253 = vshrl.u32 %v2248, 16
        %vm2254 = vc.u32 %v2246, %v2250
        %v2255 = vsel %vm2254, 1, 0
        %v2256 = vadd.s32 %v2246, %v2250
        %v2257 = vadd.s32 %v2249, %v2255
        %vm2258 = vc.u32 %v2256, %v2252
        %v2259 = vsel %vm2258, 1, 0
        %v2260 = vadd.s32 %v2256, %v2252
        %v2261 = vadd.s32 %v2257, %v2259
        %v2262 = vadd.s32 %v2261, %v2251
        %v2263 = vadd.s32 %v2262, %v2253
        %v2264 = vand.u32 %v2241, 65535
        %v2265 = vshrl.u32 %v2241, 16
        %v2266 = vand.u32 %v2236, 65535
        %v2267 = vshrl.u32 %v2236, 16
        %v2268 = vmul.u32 %v2264, %v2266
        %v2269 = vmul.u32 %v2264, %v2267
        %v2270 = vmul.u32 %v2265, %v2266
        %v2271 = vmul.u32 %v2265, %v2267
        %v2272 = vshll.u32 %v2269, 16
        %v2273 = vshrl.u32 %v2269, 16
        %v2274 = vshll.u32 %v2270, 16
        %v2275 = vshrl.u32 %v2270, 16
        %vm2276 = vc.u32 %v2268, %v2272
        %v2277 = vsel %vm2276, 1, 0
        %v2278 = vadd.s32 %v2268, %v2272
        %v2279 = vadd.s32 %v2271, %v2277
        %vm2280 = vc.u32 %v2278, %v2274
        %v2281 = vsel %vm2280, 1, 0
        %v2282 = vadd.s32 %v2278, %v2274
        %v2283 = vadd.s32 %v2279, %v2281
        %v2284 = vadd.s32 %v2283, %v2273
        %v2285 = vadd.s32 %v2284, %v2275
        %v2286 = vmul.u32 %v2241, %v2232
        %v2287 = vadd.s32 %v2263, %v2282
        %vm2288 = vc.u32 %v2263, %v2282
        %v2289 = vadd.s32 %v2285, 1
        %v2290 = vsel %vm2288, %v2289, %v2285
        %v2291 = vadd.s32 %v2286, %v2290
        %v2292 = vadd.s32 %v2291, 536870912
        %v2293 = vshrl.u32 %v2292, 30
        %v2294 = vshll.u32 %v2293, 30
        %v2295 = vsub.s32 %v2291, %v2294
        %vm2296 = vcmp.lt.s32.totalorder %v2295, 0
        %v2297 = vsub.s32 0, %v2295
        %v2298 = vsel %vm2296, %v2297, %v2295
        %v2299 = vclz %v2298
        %v2300 = vsub.s32 %v2299, 2
        %vm2301 = vcmp.gt.s32.totalorder 0, %v2300
        %v2302 = vsel %vm2301, 0, %v2300
        %v2303 = vsub.s32 32, %v2302
        %v2304 = vshll.u32 %v2295, %v2302
        %v2305 = vshrl.u32 %v2287, %v2303
        %v2306 = vor.u32 %v2304, %v2305
        %v2307 = vsub.s32 4294967266, %v2302
        %v2308 = vadd.s32 %v2307, 127
        %v2309 = vshll.u32 %v2308, 23
        %v2310 = vor.u32 4788187, %v2309
        %v2311 = vand.u32 2147483647, %v2310
        %v2313 = vcvt.s32.f32 %v2306
        %v2314 = vmul.f32 %v2313, %v2311
        %v2315 = vxor.u32 %v2314, 2147483648
        %v2316 = vsel %vm2195, %v2315, %v2314
        %v2317 = vsub.s32 4, %v2293
        %v2318 = vsel %vm2195, %v2317, %v2293
        %v2319 = vsel %vm2194, %v341, %v2316
        %v2320 = vsel %vm2194, 0, %v2318
        %v2321 = vmul.f32 %v2319, %v2319
        %v2322 = vmul.f32 %v2321, -0.001358992
        %v2323 = vadd.f32 %v2322, 0.041655596
        %v2324 = vmul.f32 %v2321, %v2323
        %v2325 = vadd.f32 %v2324, -0.4999988
        %v2326 = vmul.f32 %v2321, %v2325
        %v2327 = vadd.f32 1.0, %v2326
        %v2328 = vmul.f32 %v2319, %v2319
        %v2329 = vmul.f32 %v2328, -0.00019511016
        %v2330 = vadd.f32 %v2329, 0.008332121
        %v2331 = vmul.f32 %v2328, %v2330
        %v2332 = vadd.f32 %v2331, -0.16666654
        %v2333 = vmul.f32 %v2328, %v2332
        %v2334 = vadd.f32 %v2333, 1.0
        %v2335 = vmul.f32 %v2334, %v2319
        %vm2336 = vweird.f32 %v341
        %v2337 = vand.u32 %v2320, 3
        %vm2338 = vcmp.lt.s32.totalorder %v2337, 2
        %vm2339 = vcmp.eq.s32.totalorder %v2337, 0
        %v2340 = vxor.u32 %v2335, 2147483648
        %v2341 = vsel %vm2339, %v2327, %v2340
        %vm2342 = vcmp.eq.s32.totalorder %v2337, 2
        %v2343 = vxor.u32 %v2327, 2147483648
        %v2344 = vsel %vm2342, %v2343, %v2335
        %v2345 = vsel %vm2338, %v2341, %v2344
        %v2346 = vsel %vm2336, nan, %v2345
        %v2347 = vand.u32 2147483647, %v342
        %vm2348 = vcmp.le.f32.partialorder %v2347, 0.7853982
        %vm2349 = vcmp.lt.s32.totalorder %v342, 0
        %v2350 = vand.u32 %v342, 2139095040
        %v2351 = vshrl.u32 %v2350, 23
        %v2352 = vsub.s32 %v2351, 127
        %v2353 = vand.u32 2147483647, %v342
        %v2354 = vand.u32 %v2353, 8388607
        %v2355 = vor.u32 %v2354, 8388608
        %v2356 = vsub.s32 0, %v2355
        %v2357 = vadd.s32 %v2352, 1
        %vm2358 = vcmp.gt.s32.totalorder %v2357, 0
        %v2359 = vsel %vm2358, %v2357, 0
        %v2360 = vshrl.u32 %v2359, 5
        %v2361 = vand.u32 %v2359, 31
        %v2362 = vsub.s32 32, %v2361
        %v2363 = vshrl.u32 683565275, %v2362
        %v2364 = vshll.u32 683565275, %v2361
        %v2365 = vshrl.u32 2475754826, %v2362
        %v2366 = vor.u32 %v2364, %v2365
        %v2367 = vshll.u32 2475754826, %v2361
        %v2368 = vshrl.u32 2131351028, %v2362
        %v2369 = vor.u32 %v2367, %v2368
        %v2370 = vshll.u32 2131351028, %v2361
        %v2371 = vshrl.u32 2102212464, %v2362
        %v2372 = vor.u32 %v2370, %v2371
        %v2373 = vshll.u32 2102212464, %v2361
        %v2374 = vshrl.u32 920167782, %v2362
        %v2375 = vor.u32 %v2373, %v2374
        %v2376 = vshll.u32 920167782, %v2361
        %v2377 = vshrl.u32 1326507024, %v2362
        %v2378 = vor.u32 %v2376, %v2377
        %vm2379 = vcmp.lt.s32.totalorder %v2360, 1
        %vm2380 = vcmp.lt.s32.totalorder %v2360, 2
        %vm2381 = vcmp.lt.s32.totalorder %v2360, 3
        %vm2382 = vcmp.lt.s32.totalorder %v2360, 4
        %v2383 = vsel %vm2379, %v2363, %v2366
        %v2384 = vsel %vm2382, %v2372, 2102212464
        %v2385 = vsel %vm2381, %v2369, %v2384
        %v2386 = vsel %vm2380, %v2383, %v2385
        %v2387 = vsel %vm2379, %v2366, %v2369
        %v2388 = vsel %vm2382, %v2375, 920167782
        %v2389 = vsel %vm2381, %v2372, %v2388
        %v2390 = vsel %vm2380, %v2387, %v2389
        %v2391 = vsel %vm2379, %v2369, %v2372
        %v2392 = vsel %vm2382, %v2378, 1326507024
        %v2393 = vsel %vm2381, %v2375, %v2392
        %v2394 = vsel %vm2380, %v2391, %v2393
        %v2395 = vshll.u32 %v2355, 8
        %v2396 = vand.u32 %v2395, 65535
        %v2397 = vshrl.u32 %v2395, 16
        %v2398 = vand.u32 %v2394, 65535
        %v2399 = vshrl.u32 %v2394, 16
        %v2400 = vmul.u32 %v2396, %v2398
        %v2401 = vmul.u32 %v2396, %v2399
        %v2402 = vmul.u32 %v2397, %v2398
        %v2403 = vmul.u32 %v2397, %v2399
        %v2404 = vshll.u32 %v2401, 16
        %v2405 = vshrl.u32 %v2401, 16
        %v2406 = vshll.u32 %v2402, 16
        %v2407 = vshrl.u32 %v2402, 16
        %vm2408 = vc.u32 %v2400, %v2404
        %v2409 = vsel %vm2408, 1, 0
        %v2410 = vadd.s32 %v2400, %v2404
        %v2411 = vadd.s32 %v2403, %v2409
        %vm2412 = vc.u32 %v2410, %v2406
        %v2413 = vsel %vm2412, 1, 0
        %v2414 = vadd.s32 %v2410, %v2406
        %v2415 = vadd.s32 %v2411, %v2413
        %v2416 = vadd.s32 %v2415, %v2405
        %v2417 = vadd.s32 %v2416, %v2407
        %v2418 = vand.u32 %v2395, 65535
        %v2419 = vshrl.u32 %v2395, 16
        %v2420 = vand.u32 %v2390, 65535
        %v2421 = vshrl.u32 %v2390, 16
        %v2422 = vmul.u32 %v2418, %v2420
        %v2423 = vmul.u32 %v2418, %v2421
        %v2424 = vmul.u32 %v2419, %v2420
        %v2425 = vmul.u32 %v2419, %v2421
        %v2426 = vshll.u32 %v2423, 16
        %v2427 = vshrl.u32 %v2423, 16
        %v2428 = vshll.u32 %v2424, 16
        %v2429 = vshrl.u32 %v2424, 16
        %vm2430 = vc.u32 %v2422, %v2426
        %v2431 = vsel %vm2430, 1, 0
        %v2432 = vadd.s32 %v2422, %v2426
        %v2433 = vadd.s32 %v2425, %v2431
        %vm2434 = vc.u32 %v2432, %v2428
        %v2435 = vsel %vm2434, 1, 0
        %v2436 = vadd.s32 %v2432, %v2428
        %v2437 = vadd.s32 %v2433, %v2435
        %v2438 = vadd.s32 %v2437, %v2427
        %v2439 = vadd.s32 %v2438, %v2429
        %v2440 = vmul.u32 %v2395, %v2386
        %v2441 = vadd.s32 %v2417, %v2436
        %vm2442 = vc.u32 %v2417, %v2436
        %v2443 = vadd.s32 %v2439, 1
        %v2444 = vsel %vm2442, %v2443, %v2439
        %v2445 = vadd.s32 %v2440, %v2444
        %v2446 = vadd.s32 %v2445, 536870912
        %v2447 = vshrl.u32 %v2446, 30
        %v2448 = vshll.u32 %v2447, 30
        %v2449 = vsub.s32 %v2445, %v2448
        %vm2450 = vcmp.lt.s32.totalorder %v2449, 0
        %v2451 = vsub.s32 0, %v2449
        %v2452 = vsel %vm2450, %v2451, %v2449
        %v2453 = vclz %v2452
        %v2454 = vsub.s32 %v2453, 2
        %vm2455 = vcmp.gt.s32.totalorder 0, %v2454
        %v2456 = vsel %vm2455, 0, %v2454
        %v2457 = vsub.s32 32, %v2456
        %v2458 = vshll.u32 %v2449, %v2456
        %v2459 = vshrl.u32 %v2441, %v2457
        %v2460 = vor.u32 %v2458, %v2459
        %v2461 = vsub.s32 4294967266, %v2456
        %v2462 = vadd.s32 %v2461, 127
        %v2463 = vshll.u32 %v2462, 23
        %v2464 = vor.u32 4788187, %v2463
        %v2465 = vand.u32 2147483647, %v2464
        %v2467 = vcvt.s32.f32 %v2460
        %v2468 = vmul.f32 %v2467, %v2465
        %v2469 = vxor.u32 %v2468, 2147483648
        %v2470 = vsel %vm2349, %v2469, %v2468
        %v2471 = vsub.s32 4, %v2447
        %v2472 = vsel %vm2349, %v2471, %v2447
        %v2473 = vsel %vm2348, %v342, %v2470
        %v2474 = vsel %vm2348, 0, %v2472
        %v2475 = vmul.f32 %v2473, %v2473
        %v2476 = vmul.f32 %v2475, -0.001358992
        %v2477 = vadd.f32 %v2476, 0.041655596
        %v2478 = vmul.f32 %v2475, %v2477
        %v2479 = vadd.f32 %v2478, -0.4999988
        %v2480 = vmul.f32 %v2475, %v2479
        %v2481 = vadd.f32 1.0, %v2480
        %v2482 = vmul.f32 %v2473, %v2473
        %v2483 = vmul.f32 %v2482, -0.00019511016
        %v2484 = vadd.f32 %v2483, 0.008332121
        %v2485 = vmul.f32 %v2482, %v2484
        %v2486 = vadd.f32 %v2485, -0.16666654
        %v2487 = vmul.f32 %v2482, %v2486
        %v2488 = vadd.f32 %v2487, 1.0
        %v2489 = vmul.f32 %v2488, %v2473
        %vm2490 = vweird.f32 %v342
        %v2491 = vand.u32 %v2474, 3
        %vm2492 = vcmp.lt.s32.totalorder %v2491, 2
        %vm2493 = vcmp.eq.s32.totalorder %v2491, 0
        %v2494 = vxor.u32 %v2489, 2147483648
        %v2495 = vsel %vm2493, %v2481, %v2494
        %vm2496 = vcmp.eq.s32.totalorder %v2491, 2
        %v2497 = vxor.u32 %v2481, 2147483648
        %v2498 = vsel %vm2496, %v2497, %v2489
        %v2499 = vsel %vm2492, %v2495, %v2498
        %v2500 = vsel %vm2490, nan, %v2499
        %v2501 = vand.u32 2147483647, %v343
        %vm2502 = vcmp.le.f32.partialorder %v2501, 0.7853982
        %vm2503 = vcmp.lt.s32.totalorder %v343, 0
        %v2504 = vand.u32 %v343, 2139095040
        %v2505 = vshrl.u32 %v2504, 23
        %v2506 = vsub.s32 %v2505, 127
        %v2507 = vand.u32 2147483647, %v343
        %v2508 = vand.u32 %v2507, 8388607
        %v2509 = vor.u32 %v2508, 8388608
        %v2510 = vsub.s32 0, %v2509
        %v2511 = vadd.s32 %v2506, 1
        %vm2512 = vcmp.gt.s32.totalorder %v2511, 0
        %v2513 = vsel %vm2512, %v2511, 0
        %v2514 = vshrl.u32 %v2513, 5
        %v2515 = vand.u32 %v2513, 31
        %v2516 = vsub.s32 32, %v2515
        %v2517 = vshrl.u32 683565275, %v2516
        %v2518 = vshll.u32 683565275, %v2515
        %v2519 = vshrl.u32 2475754826, %v2516
        %v2520 = vor.u32 %v2518, %v2519
        %v2521 = vshll.u32 2475754826, %v2515
        %v2522 = vshrl.u32 2131351028, %v2516
        %v2523 = vor.u32 %v2521, %v2522
        %v2524 = vshll.u32 2131351028, %v2515
        %v2525 = vshrl.u32 2102212464, %v2516
        %v2526 = vor.u32 %v2524, %v2525
        %v2527 = vshll.u32 2102212464, %v2515
        %v2528 = vshrl.u32 920167782, %v2516
        %v2529 = vor.u32 %v2527, %v2528
        %v2530 = vshll.u32 920167782, %v2515
        %v2531 = vshrl.u32 1326507024, %v2516
        %v2532 = vor.u32 %v2530, %v2531
        %vm2533 = vcmp.lt.s32.totalorder %v2514, 1
        %vm2534 = vcmp.lt.s32.totalorder %v2514, 2
        %vm2535 = vcmp.lt.s32.totalorder %v2514, 3
        %vm2536 = vcmp.lt.s32.totalorder %v2514, 4
        %v2537 = vsel %vm2533, %v2517, %v2520
        %v2538 = vsel %vm2536, %v2526, 2102212464
        %v2539 = vsel %vm2535, %v2523, %v2538
        %v2540 = vsel %vm2534, %v2537, %v2539
        %v2541 = vsel %vm2533, %v2520, %v2523
        %v2542 = vsel %vm2536, %v2529, 920167782
        %v2543 = vsel %vm2535, %v2526, %v2542
        %v2544 = vsel %vm2534, %v2541, %v2543
        %v2545 = vsel %vm2533, %v2523, %v2526
        %v2546 = vsel %vm2536, %v2532, 1326507024
        %v2547 = vsel %vm2535, %v2529, %v2546
        %v2548 = vsel %vm2534, %v2545, %v2547
        %v2549 = vshll.u32 %v2509, 8
        %v2550 = vand.u32 %v2549, 65535
        %v2551 = vshrl.u32 %v2549, 16
        %v2552 = vand.u32 %v2548, 65535
        %v2553 = vshrl.u32 %v2548, 16
        %v2554 = vmul.u32 %v2550, %v2552
        %v2555 = vmul.u32 %v2550, %v2553
        %v2556 = vmul.u32 %v2551, %v2552
        %v2557 = vmul.u32 %v2551, %v2553
        %v2558 = vshll.u32 %v2555, 16
        %v2559 = vshrl.u32 %v2555, 16
        %v2560 = vshll.u32 %v2556, 16
        %v2561 = vshrl.u32 %v2556, 16
        %vm2562 = vc.u32 %v2554, %v2558
        %v2563 = vsel %vm2562, 1, 0
        %v2564 = vadd.s32 %v2554, %v2558
        %v2565 = vadd.s32 %v2557, %v2563
        %vm2566 = vc.u32 %v2564, %v2560
        %v2567 = vsel %vm2566, 1, 0
        %v2568 = vadd.s32 %v2564, %v2560
        %v2569 = vadd.s32 %v2565, %v2567
        %v2570 = vadd.s32 %v2569, %v2559
        %v2571 = vadd.s32 %v2570, %v2561
        %v2572 = vand.u32 %v2549, 65535
        %v2573 = vshrl.u32 %v2549, 16
        %v2574 = vand.u32 %v2544, 65535
        %v2575 = vshrl.u32 %v2544, 16
        %v2576 = vmul.u32 %v2572, %v2574
        %v2577 = vmul.u32 %v2572, %v2575
        %v2578 = vmul.u32 %v2573, %v2574
        %v2579 = vmul.u32 %v2573, %v2575
        %v2580 = vshll.u32 %v2577, 16
        %v2581 = vshrl.u32 %v2577, 16
        %v2582 = vshll.u32 %v2578, 16
        %v2583 = vshrl.u32 %v2578, 16
        %vm2584 = vc.u32 %v2576, %v2580
        %v2585 = vsel %vm2584, 1, 0
        %v2586 = vadd.s32 %v2576, %v2580
        %v2587 = vadd.s32 %v2579, %v2585
        %vm2588 = vc.u32 %v2586, %v2582
        %v2589 = vsel %vm2588, 1, 0
        %v2590 = vadd.s32 %v2586, %v2582
        %v2591 = vadd.s32 %v2587, %v2589
        %v2592 = vadd.s32 %v2591, %v2581
        %v2593 = vadd.s32 %v2592, %v2583
        %v2594 = vmul.u32 %v2549, %v2540
        %v2595 = vadd.s32 %v2571, %v2590
        %vm2596 = vc.u32 %v2571, %v2590
        %v2597 = vadd.s32 %v2593, 1
        %v2598 = vsel %vm2596, %v2597, %v2593
        %v2599 = vadd.s32 %v2594, %v2598
        %v2600 = vadd.s32 %v2599, 536870912
        %v2601 = vshrl.u32 %v2600, 30
        %v2602 = vshll.u32 %v2601, 30
        %v2603 = vsub.s32 %v2599, %v2602
        %vm2604 = vcmp.lt.s32.totalorder %v2603, 0
        %v2605 = vsub.s32 0, %v2603
        %v2606 = vsel %vm2604, %v2605, %v2603
        %v2607 = vclz %v2606
        %v2608 = vsub.s32 %v2607, 2
        %vm2609 = vcmp.gt.s32.totalorder 0, %v2608
        %v2610 = vsel %vm2609, 0, %v2608
        %v2611 = vsub.s32 32, %v2610
        %v2612 = vshll.u32 %v2603, %v2610
        %v2613 = vshrl.u32 %v2595, %v2611
        %v2614 = vor.u32 %v2612, %v2613
        %v2615 = vsub.s32 4294967266, %v2610
        %v2616 = vadd.s32 %v2615, 127
        %v2617 = vshll.u32 %v2616, 23
        %v2618 = vor.u32 4788187, %v2617
        %v2619 = vand.u32 2147483647, %v2618
        %v2621 = vcvt.s32.f32 %v2614
        %v2622 = vmul.f32 %v2621, %v2619
        %v2623 = vxor.u32 %v2622, 2147483648
        %v2624 = vsel %vm2503, %v2623, %v2622
        %v2625 = vsub.s32 4, %v2601
        %v2626 = vsel %vm2503, %v2625, %v2601
        %v2627 = vsel %vm2502, %v343, %v2624
        %v2628 = vsel %vm2502, 0, %v2626
        %v2629 = vmul.f32 %v2627, %v2627
        %v2630 = vmul.f32 %v2629, -0.001358992
        %v2631 = vadd.f32 %v2630, 0.041655596
        %v2632 = vmul.f32 %v2629, %v2631
        %v2633 = vadd.f32 %v2632, -0.4999988
        %v2634 = vmul.f32 %v2629, %v2633
        %v2635 = vadd.f32 1.0, %v2634
        %v2636 = vmul.f32 %v2627, %v2627
        %v2637 = vmul.f32 %v2636, -0.00019511016
        %v2638 = vadd.f32 %v2637, 0.008332121
        %v2639 = vmul.f32 %v2636, %v2638
        %v2640 = vadd.f32 %v2639, -0.16666654
        %v2641 = vmul.f32 %v2636, %v2640
        %v2642 = vadd.f32 %v2641, 1.0
        %v2643 = vmul.f32 %v2642, %v2627
        %vm2644 = vweird.f32 %v343
        %v2645 = vand.u32 %v2628, 3
        %vm2646 = vcmp.lt.s32.totalorder %v2645, 2
        %vm2647 = vcmp.eq.s32.totalorder %v2645, 0
        %v2648 = vxor.u32 %v2643, 2147483648
        %v2649 = vsel %vm2647, %v2635, %v2648
        %vm2650 = vcmp.eq.s32.totalorder %v2645, 2
        %v2651 = vxor.u32 %v2635, 2147483648
        %v2652 = vsel %vm2650, %v2651, %v2643
        %v2653 = vsel %vm2646, %v2649, %v2652
        %v2654 = vsel %vm2644, nan, %v2653
        %v2655 = vand.u32 2147483647, %v344
        %vm2656 = vcmp.le.f32.partialorder %v2655, 0.7853982
        %vm2657 = vcmp.lt.s32.totalorder %v344, 0
        %v2658 = vand.u32 %v344, 2139095040
        %v2659 = vshrl.u32 %v2658, 23
        %v2660 = vsub.s32 %v2659, 127
        %v2661 = vand.u32 2147483647, %v344
        %v2662 = vand.u32 %v2661, 8388607
        %v2663 = vor.u32 %v2662, 8388608
        %v2664 = vsub.s32 0, %v2663
        %v2665 = vadd.s32 %v2660, 1
        %vm2666 = vcmp.gt.s32.totalorder %v2665, 0
        %v2667 = vsel %vm2666, %v2665, 0
        %v2668 = vshrl.u32 %v2667, 5
        %v2669 = vand.u32 %v2667, 31
        %v2670 = vsub.s32 32, %v2669
        %v2671 = vshrl.u32 683565275, %v2670
        %v2672 = vshll.u32 683565275, %v2669
        %v2673 = vshrl.u32 2475754826, %v2670
        %v2674 = vor.u32 %v2672, %v2673
        %v2675 = vshll.u32 2475754826, %v2669
        %v2676 = vshrl.u32 2131351028, %v2670
        %v2677 = vor.u32 %v2675, %v2676
        %v2678 = vshll.u32 2131351028, %v2669
        %v2679 = vshrl.u32 2102212464, %v2670
        %v2680 = vor.u32 %v2678, %v2679
        %v2681 = vshll.u32 2102212464, %v2669
        %v2682 = vshrl.u32 920167782, %v2670
        %v2683 = vor.u32 %v2681, %v2682
        %v2684 = vshll.u32 920167782, %v2669
        %v2685 = vshrl.u32 1326507024, %v2670
        %v2686 = vor.u32 %v2684, %v2685
        %vm2687 = vcmp.lt.s32.totalorder %v2668, 1
        %vm2688 = vcmp.lt.s32.totalorder %v2668, 2
        %vm2689 = vcmp.lt.s32.totalorder %v2668, 3
        %vm2690 = vcmp.lt.s32.totalorder %v2668, 4
        %v2691 = vsel %vm2687, %v2671, %v2674
        %v2692 = vsel %vm2690, %v2680, 2102212464
        %v2693 = vsel %vm2689, %v2677, %v2692
        %v2694 = vsel %vm2688, %v2691, %v2693
        %v2695 = vsel %vm2687, %v2674, %v2677
        %v2696 = vsel %vm2690, %v2683, 920167782
        %v2697 = vsel %vm2689, %v2680, %v2696
        %v2698 = vsel %vm2688, %v2695, %v2697
        %v2699 = vsel %vm2687, %v2677, %v2680
        %v2700 = vsel %vm2690, %v2686, 1326507024
        %v2701 = vsel %vm2689, %v2683, %v2700
        %v2702 = vsel %vm2688, %v2699, %v2701
        %v2703 = vshll.u32 %v2663, 8
        %v2704 = vand.u32 %v2703, 65535
        %v2705 = vshrl.u32 %v2703, 16
        %v2706 = vand.u32 %v2702, 65535
        %v2707 = vshrl.u32 %v2702, 16
        %v2708 = vmul.u32 %v2704, %v2706
        %v2709 = vmul.u32 %v2704, %v2707
        %v2710 = vmul.u32 %v2705, %v2706
        %v2711 = vmul.u32 %v2705, %v2707
        %v2712 = vshll.u32 %v2709, 16
        %v2713 = vshrl.u32 %v2709, 16
        %v2714 = vshll.u32 %v2710, 16
        %v2715 = vshrl.u32 %v2710, 16
        %vm2716 = vc.u32 %v2708, %v2712
        %v2717 = vsel %vm2716, 1, 0
        %v2718 = vadd.s32 %v2708, %v2712
        %v2719 = vadd.s32 %v2711, %v2717
        %vm2720 = vc.u32 %v2718, %v2714
        %v2721 = vsel %vm2720, 1, 0
        %v2722 = vadd.s32 %v2718, %v2714
        %v2723 = vadd.s32 %v2719, %v2721
        %v2724 = vadd.s32 %v2723, %v2713
        %v2725 = vadd.s32 %v2724, %v2715
        %v2726 = vand.u32 %v2703, 65535
        %v2727 = vshrl.u32 %v2703, 16
        %v2728 = vand.u32 %v2698, 65535
        %v2729 = vshrl.u32 %v2698, 16
        %v2730 = vmul.u32 %v2726, %v2728
        %v2731 = vmul.u32 %v2726, %v2729
        %v2732 = vmul.u32 %v2727, %v2728
        %v2733 = vmul.u32 %v2727, %v2729
        %v2734 = vshll.u32 %v2731, 16
        %v2735 = vshrl.u32 %v2731, 16
        %v2736 = vshll.u32 %v2732, 16
        %v2737 = vshrl.u32 %v2732, 16
        %vm2738 = vc.u32 %v2730, %v2734
        %v2739 = vsel %vm2738, 1, 0
        %v2740 = vadd.s32 %v2730, %v2734
        %v2741 = vadd.s32 %v2733, %v2739
        %vm2742 = vc.u32 %v2740, %v2736
        %v2743 = vsel %vm2742, 1, 0
        %v2744 = vadd.s32 %v2740, %v2736
        %v2745 = vadd.s32 %v2741, %v2743
        %v2746 = vadd.s32 %v2745, %v2735
        %v2747 = vadd.s32 %v2746, %v2737
        %v2748 = vmul.u32 %v2703, %v2694
        %v2749 = vadd.s32 %v2725, %v2744
        %vm2750 = vc.u32 %v2725, %v2744
        %v2751 = vadd.s32 %v2747, 1
        %v2752 = vsel %vm2750, %v2751, %v2747
        %v2753 = vadd.s32 %v2748, %v2752
        %v2754 = vadd.s32 %v2753, 536870912
        %v2755 = vshrl.u32 %v2754, 30
        %v2756 = vshll.u32 %v2755, 30
        %v2757 = vsub.s32 %v2753, %v2756
        %vm2758 = vcmp.lt.s32.totalorder %v2757, 0
        %v2759 = vsub.s32 0, %v2757
        %v2760 = vsel %vm2758, %v2759, %v2757
        %v2761 = vclz %v2760
        %v2762 = vsub.s32 %v2761, 2
        %vm2763 = vcmp.gt.s32.totalorder 0, %v2762
        %v2764 = vsel %vm2763, 0, %v2762
        %v2765 = vsub.s32 32, %v2764
        %v2766 = vshll.u32 %v2757, %v2764
        %v2767 = vshrl.u32 %v2749, %v2765
        %v2768 = vor.u32 %v2766, %v2767
        %v2769 = vsub.s32 4294967266, %v2764
        %v2770 = vadd.s32 %v2769, 127
        %v2771 = vshll.u32 %v2770, 23
        %v2772 = vor.u32 4788187, %v2771
        %v2773 = vand.u32 2147483647, %v2772
        %v2775 = vcvt.s32.f32 %v2768
        %v2776 = vmul.f32 %v2775, %v2773
        %v2777 = vxor.u32 %v2776, 2147483648
        %v2778 = vsel %vm2657, %v2777, %v2776
        %v2779 = vsub.s32 4, %v2755
        %v2780 = vsel %vm2657, %v2779, %v2755
        %v2781 = vsel %vm2656, %v344, %v2778
        %v2782 = vsel %vm2656, 0, %v2780
        %v2783 = vmul.f32 %v2781, %v2781
        %v2784 = vmul.f32 %v2783, -0.001358992
        %v2785 = vadd.f32 %v2784, 0.041655596
        %v2786 = vmul.f32 %v2783, %v2785
        %v2787 = vadd.f32 %v2786, -0.4999988
        %v2788 = vmul.f32 %v2783, %v2787
        %v2789 = vadd.f32 1.0, %v2788
        %v2790 = vmul.f32 %v2781, %v2781
        %v2791 = vmul.f32 %v2790, -0.00019511016
        %v2792 = vadd.f32 %v2791, 0.008332121
        %v2793 = vmul.f32 %v2790, %v2792
        %v2794 = vadd.f32 %v2793, -0.16666654
        %v2795 = vmul.f32 %v2790, %v2794
        %v2796 = vadd.f32 %v2795, 1.0
        %v2797 = vmul.f32 %v2796, %v2781
        %vm2798 = vweird.f32 %v344
        %v2799 = vand.u32 %v2782, 3
        %vm2800 = vcmp.lt.s32.totalorder %v2799, 2
        %vm2801 = vcmp.eq.s32.totalorder %v2799, 0
        %v2802 = vxor.u32 %v2797, 2147483648
        %v2803 = vsel %vm2801, %v2789, %v2802
        %vm2804 = vcmp.eq.s32.totalorder %v2799, 2
        %v2805 = vxor.u32 %v2789, 2147483648
        %v2806 = vsel %vm2804, %v2805, %v2797
        %v2807 = vsel %vm2800, %v2803, %v2806
        %v2808 = vsel %vm2798, nan, %v2807
        %v2809 = vpack.c.bf16 %v498, %v498
        %v2810 = vpack.c.bf16 %v652, %v652
        %v2811 = vpack.c.bf16 %v806, %v806
        %v2812 = vpack.c.bf16 %v960, %v960
        %v2813 = vpack.c.bf16 %v1114, %v1114
        %v2814 = vpack.c.bf16 %v1268, %v1268
        %v2815 = vpack.c.bf16 %v1422, %v1422
        %v2816 = vpack.c.bf16 %v1576, %v1576
        %v2817 = vpack.c.bf16 %v1730, %v1730
        %v2818 = vpack.c.bf16 %v1884, %v1884
        %v2819 = vpack.c.bf16 %v2038, %v2038
        %v2820 = vpack.c.bf16 %v2192, %v2192
        %v2821 = vpack.c.bf16 %v2346, %v2346
        %v2822 = vpack.c.bf16 %v2500, %v2500
        %v2823 = vpack.c.bf16 %v2654, %v2654
        %v2824 = vpack.c.bf16 %v2808, %v2808
        %v2825 = vand.u32 2147483647, %v329
        %vm2826 = vcmp.le.f32.partialorder %v2825, 0.7853982
        %vm2827 = vcmp.lt.s32.totalorder %v329, 0
        %v2828 = vand.u32 %v329, 2139095040
        %v2829 = vshrl.u32 %v2828, 23
        %v2830 = vsub.s32 %v2829, 127
        %v2831 = vand.u32 2147483647, %v329
        %v2832 = vand.u32 %v2831, 8388607
        %v2833 = vor.u32 %v2832, 8388608
        %v2834 = vsub.s32 0, %v2833
        %v2835 = vadd.s32 %v2830, 1
        %vm2836 = vcmp.gt.s32.totalorder %v2835, 0
        %v2837 = vsel %vm2836, %v2835, 0
        %v2838 = vshrl.u32 %v2837, 5
        %v2839 = vand.u32 %v2837, 31
        %v2840 = vsub.s32 32, %v2839
        %v2841 = vshrl.u32 683565275, %v2840
        %v2842 = vshll.u32 683565275, %v2839
        %v2843 = vshrl.u32 2475754826, %v2840
        %v2844 = vor.u32 %v2842, %v2843
        %v2845 = vshll.u32 2475754826, %v2839
        %v2846 = vshrl.u32 2131351028, %v2840
        %v2847 = vor.u32 %v2845, %v2846
        %v2848 = vshll.u32 2131351028, %v2839
        %v2849 = vshrl.u32 2102212464, %v2840
        %v2850 = vor.u32 %v2848, %v2849
        %v2851 = vshll.u32 2102212464, %v2839
        %v2852 = vshrl.u32 920167782, %v2840
        %v2853 = vor.u32 %v2851, %v2852
        %v2854 = vshll.u32 920167782, %v2839
        %v2855 = vshrl.u32 1326507024, %v2840
        %v2856 = vor.u32 %v2854, %v2855
        %vm2857 = vcmp.lt.s32.totalorder %v2838, 1
        %vm2858 = vcmp.lt.s32.totalorder %v2838, 2
        %vm2859 = vcmp.lt.s32.totalorder %v2838, 3
        %vm2860 = vcmp.lt.s32.totalorder %v2838, 4
        %v2861 = vsel %vm2857, %v2841, %v2844
        %v2862 = vsel %vm2860, %v2850, 2102212464
        %v2863 = vsel %vm2859, %v2847, %v2862
        %v2864 = vsel %vm2858, %v2861, %v2863
        %v2865 = vsel %vm2857, %v2844, %v2847
        %v2866 = vsel %vm2860, %v2853, 920167782
        %v2867 = vsel %vm2859, %v2850, %v2866
        %v2868 = vsel %vm2858, %v2865, %v2867
        %v2869 = vsel %vm2857, %v2847, %v2850
        %v2870 = vsel %vm2860, %v2856, 1326507024
        %v2871 = vsel %vm2859, %v2853, %v2870
        %v2872 = vsel %vm2858, %v2869, %v2871
        %v2873 = vshll.u32 %v2833, 8
        %v2874 = vand.u32 %v2873, 65535
        %v2875 = vshrl.u32 %v2873, 16
        %v2876 = vand.u32 %v2872, 65535
        %v2877 = vshrl.u32 %v2872, 16
        %v2878 = vmul.u32 %v2874, %v2876
        %v2879 = vmul.u32 %v2874, %v2877
        %v2880 = vmul.u32 %v2875, %v2876
        %v2881 = vmul.u32 %v2875, %v2877
        %v2882 = vshll.u32 %v2879, 16
        %v2883 = vshrl.u32 %v2879, 16
        %v2884 = vshll.u32 %v2880, 16
        %v2885 = vshrl.u32 %v2880, 16
        %vm2886 = vc.u32 %v2878, %v2882
        %v2887 = vsel %vm2886, 1, 0
        %v2888 = vadd.s32 %v2878, %v2882
        %v2889 = vadd.s32 %v2881, %v2887
        %vm2890 = vc.u32 %v2888, %v2884
        %v2891 = vsel %vm2890, 1, 0
        %v2892 = vadd.s32 %v2888, %v2884
        %v2893 = vadd.s32 %v2889, %v2891
        %v2894 = vadd.s32 %v2893, %v2883
        %v2895 = vadd.s32 %v2894, %v2885
        %v2896 = vand.u32 %v2873, 65535
        %v2897 = vshrl.u32 %v2873, 16
        %v2898 = vand.u32 %v2868, 65535
        %v2899 = vshrl.u32 %v2868, 16
        %v2900 = vmul.u32 %v2896, %v2898
        %v2901 = vmul.u32 %v2896, %v2899
        %v2902 = vmul.u32 %v2897, %v2898
        %v2903 = vmul.u32 %v2897, %v2899
        %v2904 = vshll.u32 %v2901, 16
        %v2905 = vshrl.u32 %v2901, 16
        %v2906 = vshll.u32 %v2902, 16
        %v2907 = vshrl.u32 %v2902, 16
        %vm2908 = vc.u32 %v2900, %v2904
        %v2909 = vsel %vm2908, 1, 0
        %v2910 = vadd.s32 %v2900, %v2904
        %v2911 = vadd.s32 %v2903, %v2909
        %vm2912 = vc.u32 %v2910, %v2906
        %v2913 = vsel %vm2912, 1, 0
        %v2914 = vadd.s32 %v2910, %v2906
        %v2915 = vadd.s32 %v2911, %v2913
        %v2916 = vadd.s32 %v2915, %v2905
        %v2917 = vadd.s32 %v2916, %v2907
        %v2918 = vmul.u32 %v2873, %v2864
        %v2919 = vadd.s32 %v2895, %v2914
        %vm2920 = vc.u32 %v2895, %v2914
        %v2921 = vadd.s32 %v2917, 1
        %v2922 = vsel %vm2920, %v2921, %v2917
        %v2923 = vadd.s32 %v2918, %v2922
        %v2924 = vadd.s32 %v2923, 536870912
        %v2925 = vshrl.u32 %v2924, 30
        %v2926 = vshll.u32 %v2925, 30
        %v2927 = vsub.s32 %v2923, %v2926
        %vm2928 = vcmp.lt.s32.totalorder %v2927, 0
        %v2929 = vsub.s32 0, %v2927
        %v2930 = vsel %vm2928, %v2929, %v2927
        %v2931 = vclz %v2930
        %v2932 = vsub.s32 %v2931, 2
        %vm2933 = vcmp.gt.s32.totalorder 0, %v2932
        %v2934 = vsel %vm2933, 0, %v2932
        %v2935 = vsub.s32 32, %v2934
        %v2936 = vshll.u32 %v2927, %v2934
        %v2937 = vshrl.u32 %v2919, %v2935
        %v2938 = vor.u32 %v2936, %v2937
        %v2939 = vsub.s32 4294967266, %v2934
        %v2940 = vadd.s32 %v2939, 127
        %v2941 = vshll.u32 %v2940, 23
        %v2942 = vor.u32 4788187, %v2941
        %v2943 = vand.u32 2147483647, %v2942
        %v2945 = vcvt.s32.f32 %v2938
        %v2946 = vmul.f32 %v2945, %v2943
        %v2947 = vxor.u32 %v2946, 2147483648
        %v2948 = vsel %vm2827, %v2947, %v2946
        %v2949 = vsub.s32 4, %v2925
        %v2950 = vsel %vm2827, %v2949, %v2925
        %v2951 = vsel %vm2826, %v329, %v2948
        %v2952 = vsel %vm2826, 0, %v2950
        %v2953 = vmul.f32 %v2951, %v2951
        %v2954 = vmul.f32 %v2953, -0.001358992
        %v2955 = vadd.f32 %v2954, 0.041655596
        %v2956 = vmul.f32 %v2953, %v2955
        %v2957 = vadd.f32 %v2956, -0.4999988
        %v2958 = vmul.f32 %v2953, %v2957
        %v2959 = vadd.f32 1.0, %v2958
        %v2960 = vmul.f32 %v2951, %v2951
        %v2961 = vmul.f32 %v2960, -0.00019511016
        %v2962 = vadd.f32 %v2961, 0.008332121
        %v2963 = vmul.f32 %v2960, %v2962
        %v2964 = vadd.f32 %v2963, -0.16666654
        %v2965 = vmul.f32 %v2960, %v2964
        %v2966 = vadd.f32 %v2965, 1.0
        %v2967 = vmul.f32 %v2966, %v2951
        %vm2968 = vweird.f32 %v329
        %v2969 = vadd.s32 %v2952, 3
        %v2970 = vand.u32 %v2969, 3
        %vm2971 = vcmp.lt.s32.totalorder %v2970, 2
        %vm2972 = vcmp.eq.s32.totalorder %v2970, 0
        %v2973 = vxor.u32 %v2967, 2147483648
        %v2974 = vsel %vm2972, %v2959, %v2973
        %vm2975 = vcmp.eq.s32.totalorder %v2970, 2
        %v2976 = vxor.u32 %v2959, 2147483648
        %v2977 = vsel %vm2975, %v2976, %v2967
        %v2978 = vsel %vm2971, %v2974, %v2977
        %v2979 = vsel %vm2968, nan, %v2978
        %v2980 = vand.u32 2147483647, %v330
        %vm2981 = vcmp.le.f32.partialorder %v2980, 0.7853982
        %vm2982 = vcmp.lt.s32.totalorder %v330, 0
        %v2983 = vand.u32 %v330, 2139095040
        %v2984 = vshrl.u32 %v2983, 23
        %v2985 = vsub.s32 %v2984, 127
        %v2986 = vand.u32 2147483647, %v330
        %v2987 = vand.u32 %v2986, 8388607
        %v2988 = vor.u32 %v2987, 8388608
        %v2989 = vsub.s32 0, %v2988
        %v2990 = vadd.s32 %v2985, 1
        %vm2991 = vcmp.gt.s32.totalorder %v2990, 0
        %v2992 = vsel %vm2991, %v2990, 0
        %v2993 = vshrl.u32 %v2992, 5
        %v2994 = vand.u32 %v2992, 31
        %v2995 = vsub.s32 32, %v2994
        %v2996 = vshrl.u32 683565275, %v2995
        %v2997 = vshll.u32 683565275, %v2994
        %v2998 = vshrl.u32 2475754826, %v2995
        %v2999 = vor.u32 %v2997, %v2998
        %v3000 = vshll.u32 2475754826, %v2994
        %v3001 = vshrl.u32 2131351028, %v2995
        %v3002 = vor.u32 %v3000, %v3001
        %v3003 = vshll.u32 2131351028, %v2994
        %v3004 = vshrl.u32 2102212464, %v2995
        %v3005 = vor.u32 %v3003, %v3004
        %v3006 = vshll.u32 2102212464, %v2994
        %v3007 = vshrl.u32 920167782, %v2995
        %v3008 = vor.u32 %v3006, %v3007
        %v3009 = vshll.u32 920167782, %v2994
        %v3010 = vshrl.u32 1326507024, %v2995
        %v3011 = vor.u32 %v3009, %v3010
        %vm3012 = vcmp.lt.s32.totalorder %v2993, 1
        %vm3013 = vcmp.lt.s32.totalorder %v2993, 2
        %vm3014 = vcmp.lt.s32.totalorder %v2993, 3
        %vm3015 = vcmp.lt.s32.totalorder %v2993, 4
        %v3016 = vsel %vm3012, %v2996, %v2999
        %v3017 = vsel %vm3015, %v3005, 2102212464
        %v3018 = vsel %vm3014, %v3002, %v3017
        %v3019 = vsel %vm3013, %v3016, %v3018
        %v3020 = vsel %vm3012, %v2999, %v3002
        %v3021 = vsel %vm3015, %v3008, 920167782
        %v3022 = vsel %vm3014, %v3005, %v3021
        %v3023 = vsel %vm3013, %v3020, %v3022
        %v3024 = vsel %vm3012, %v3002, %v3005
        %v3025 = vsel %vm3015, %v3011, 1326507024
        %v3026 = vsel %vm3014, %v3008, %v3025
        %v3027 = vsel %vm3013, %v3024, %v3026
        %v3028 = vshll.u32 %v2988, 8
        %v3029 = vand.u32 %v3028, 65535
        %v3030 = vshrl.u32 %v3028, 16
        %v3031 = vand.u32 %v3027, 65535
        %v3032 = vshrl.u32 %v3027, 16
        %v3033 = vmul.u32 %v3029, %v3031
        %v3034 = vmul.u32 %v3029, %v3032
        %v3035 = vmul.u32 %v3030, %v3031
        %v3036 = vmul.u32 %v3030, %v3032
        %v3037 = vshll.u32 %v3034, 16
        %v3038 = vshrl.u32 %v3034, 16
        %v3039 = vshll.u32 %v3035, 16
        %v3040 = vshrl.u32 %v3035, 16
        %vm3041 = vc.u32 %v3033, %v3037
        %v3042 = vsel %vm3041, 1, 0
        %v3043 = vadd.s32 %v3033, %v3037
        %v3044 = vadd.s32 %v3036, %v3042
        %vm3045 = vc.u32 %v3043, %v3039
        %v3046 = vsel %vm3045, 1, 0
        %v3047 = vadd.s32 %v3043, %v3039
        %v3048 = vadd.s32 %v3044, %v3046
        %v3049 = vadd.s32 %v3048, %v3038
        %v3050 = vadd.s32 %v3049, %v3040
        %v3051 = vand.u32 %v3028, 65535
        %v3052 = vshrl.u32 %v3028, 16
        %v3053 = vand.u32 %v3023, 65535
        %v3054 = vshrl.u32 %v3023, 16
        %v3055 = vmul.u32 %v3051, %v3053
        %v3056 = vmul.u32 %v3051, %v3054
        %v3057 = vmul.u32 %v3052, %v3053
        %v3058 = vmul.u32 %v3052, %v3054
        %v3059 = vshll.u32 %v3056, 16
        %v3060 = vshrl.u32 %v3056, 16
        %v3061 = vshll.u32 %v3057, 16
        %v3062 = vshrl.u32 %v3057, 16
        %vm3063 = vc.u32 %v3055, %v3059
        %v3064 = vsel %vm3063, 1, 0
        %v3065 = vadd.s32 %v3055, %v3059
        %v3066 = vadd.s32 %v3058, %v3064
        %vm3067 = vc.u32 %v3065, %v3061
        %v3068 = vsel %vm3067, 1, 0
        %v3069 = vadd.s32 %v3065, %v3061
        %v3070 = vadd.s32 %v3066, %v3068
        %v3071 = vadd.s32 %v3070, %v3060
        %v3072 = vadd.s32 %v3071, %v3062
        %v3073 = vmul.u32 %v3028, %v3019
        %v3074 = vadd.s32 %v3050, %v3069
        %vm3075 = vc.u32 %v3050, %v3069
        %v3076 = vadd.s32 %v3072, 1
        %v3077 = vsel %vm3075, %v3076, %v3072
        %v3078 = vadd.s32 %v3073, %v3077
        %v3079 = vadd.s32 %v3078, 536870912
        %v3080 = vshrl.u32 %v3079, 30
        %v3081 = vshll.u32 %v3080, 30
        %v3082 = vsub.s32 %v3078, %v3081
        %vm3083 = vcmp.lt.s32.totalorder %v3082, 0
        %v3084 = vsub.s32 0, %v3082
        %v3085 = vsel %vm3083, %v3084, %v3082
        %v3086 = vclz %v3085
        %v3087 = vsub.s32 %v3086, 2
        %vm3088 = vcmp.gt.s32.totalorder 0, %v3087
        %v3089 = vsel %vm3088, 0, %v3087
        %v3090 = vsub.s32 32, %v3089
        %v3091 = vshll.u32 %v3082, %v3089
        %v3092 = vshrl.u32 %v3074, %v3090
        %v3093 = vor.u32 %v3091, %v3092
        %v3094 = vsub.s32 4294967266, %v3089
        %v3095 = vadd.s32 %v3094, 127
        %v3096 = vshll.u32 %v3095, 23
        %v3097 = vor.u32 4788187, %v3096
        %v3098 = vand.u32 2147483647, %v3097
        %v3100 = vcvt.s32.f32 %v3093
        %v3101 = vmul.f32 %v3100, %v3098
        %v3102 = vxor.u32 %v3101, 2147483648
        %v3103 = vsel %vm2982, %v3102, %v3101
        %v3104 = vsub.s32 4, %v3080
        %v3105 = vsel %vm2982, %v3104, %v3080
        %v3106 = vsel %vm2981, %v330, %v3103
        %v3107 = vsel %vm2981, 0, %v3105
        %v3108 = vmul.f32 %v3106, %v3106
        %v3109 = vmul.f32 %v3108, -0.001358992
        %v3110 = vadd.f32 %v3109, 0.041655596
        %v3111 = vmul.f32 %v3108, %v3110
        %v3112 = vadd.f32 %v3111, -0.4999988
        %v3113 = vmul.f32 %v3108, %v3112
        %v3114 = vadd.f32 1.0, %v3113
        %v3115 = vmul.f32 %v3106, %v3106
        %v3116 = vmul.f32 %v3115, -0.00019511016
        %v3117 = vadd.f32 %v3116, 0.008332121
        %v3118 = vmul.f32 %v3115, %v3117
        %v3119 = vadd.f32 %v3118, -0.16666654
        %v3120 = vmul.f32 %v3115, %v3119
        %v3121 = vadd.f32 %v3120, 1.0
        %v3122 = vmul.f32 %v3121, %v3106
        %vm3123 = vweird.f32 %v330
        %v3124 = vadd.s32 %v3107, 3
        %v3125 = vand.u32 %v3124, 3
        %vm3126 = vcmp.lt.s32.totalorder %v3125, 2
        %vm3127 = vcmp.eq.s32.totalorder %v3125, 0
        %v3128 = vxor.u32 %v3122, 2147483648
        %v3129 = vsel %vm3127, %v3114, %v3128
        %vm3130 = vcmp.eq.s32.totalorder %v3125, 2
        %v3131 = vxor.u32 %v3114, 2147483648
        %v3132 = vsel %vm3130, %v3131, %v3122
        %v3133 = vsel %vm3126, %v3129, %v3132
        %v3134 = vsel %vm3123, nan, %v3133
        %v3135 = vand.u32 2147483647, %v331
        %vm3136 = vcmp.le.f32.partialorder %v3135, 0.7853982
        %vm3137 = vcmp.lt.s32.totalorder %v331, 0
        %v3138 = vand.u32 %v331, 2139095040
        %v3139 = vshrl.u32 %v3138, 23
        %v3140 = vsub.s32 %v3139, 127
        %v3141 = vand.u32 2147483647, %v331
        %v3142 = vand.u32 %v3141, 8388607
        %v3143 = vor.u32 %v3142, 8388608
        %v3144 = vsub.s32 0, %v3143
        %v3145 = vadd.s32 %v3140, 1
        %vm3146 = vcmp.gt.s32.totalorder %v3145, 0
        %v3147 = vsel %vm3146, %v3145, 0
        %v3148 = vshrl.u32 %v3147, 5
        %v3149 = vand.u32 %v3147, 31
        %v3150 = vsub.s32 32, %v3149
        %v3151 = vshrl.u32 683565275, %v3150
        %v3152 = vshll.u32 683565275, %v3149
        %v3153 = vshrl.u32 2475754826, %v3150
        %v3154 = vor.u32 %v3152, %v3153
        %v3155 = vshll.u32 2475754826, %v3149
        %v3156 = vshrl.u32 2131351028, %v3150
        %v3157 = vor.u32 %v3155, %v3156
        %v3158 = vshll.u32 2131351028, %v3149
        %v3159 = vshrl.u32 2102212464, %v3150
        %v3160 = vor.u32 %v3158, %v3159
        %v3161 = vshll.u32 2102212464, %v3149
        %v3162 = vshrl.u32 920167782, %v3150
        %v3163 = vor.u32 %v3161, %v3162
        %v3164 = vshll.u32 920167782, %v3149
        %v3165 = vshrl.u32 1326507024, %v3150
        %v3166 = vor.u32 %v3164, %v3165
        %vm3167 = vcmp.lt.s32.totalorder %v3148, 1
        %vm3168 = vcmp.lt.s32.totalorder %v3148, 2
        %vm3169 = vcmp.lt.s32.totalorder %v3148, 3
        %vm3170 = vcmp.lt.s32.totalorder %v3148, 4
        %v3171 = vsel %vm3167, %v3151, %v3154
        %v3172 = vsel %vm3170, %v3160, 2102212464
        %v3173 = vsel %vm3169, %v3157, %v3172
        %v3174 = vsel %vm3168, %v3171, %v3173
        %v3175 = vsel %vm3167, %v3154, %v3157
        %v3176 = vsel %vm3170, %v3163, 920167782
        %v3177 = vsel %vm3169, %v3160, %v3176
        %v3178 = vsel %vm3168, %v3175, %v3177
        %v3179 = vsel %vm3167, %v3157, %v3160
        %v3180 = vsel %vm3170, %v3166, 1326507024
        %v3181 = vsel %vm3169, %v3163, %v3180
        %v3182 = vsel %vm3168, %v3179, %v3181
        %v3183 = vshll.u32 %v3143, 8
        %v3184 = vand.u32 %v3183, 65535
        %v3185 = vshrl.u32 %v3183, 16
        %v3186 = vand.u32 %v3182, 65535
        %v3187 = vshrl.u32 %v3182, 16
        %v3188 = vmul.u32 %v3184, %v3186
        %v3189 = vmul.u32 %v3184, %v3187
        %v3190 = vmul.u32 %v3185, %v3186
        %v3191 = vmul.u32 %v3185, %v3187
        %v3192 = vshll.u32 %v3189, 16
        %v3193 = vshrl.u32 %v3189, 16
        %v3194 = vshll.u32 %v3190, 16
        %v3195 = vshrl.u32 %v3190, 16
        %vm3196 = vc.u32 %v3188, %v3192
        %v3197 = vsel %vm3196, 1, 0
        %v3198 = vadd.s32 %v3188, %v3192
        %v3199 = vadd.s32 %v3191, %v3197
        %vm3200 = vc.u32 %v3198, %v3194
        %v3201 = vsel %vm3200, 1, 0
        %v3202 = vadd.s32 %v3198, %v3194
        %v3203 = vadd.s32 %v3199, %v3201
        %v3204 = vadd.s32 %v3203, %v3193
        %v3205 = vadd.s32 %v3204, %v3195
        %v3206 = vand.u32 %v3183, 65535
        %v3207 = vshrl.u32 %v3183, 16
        %v3208 = vand.u32 %v3178, 65535
        %v3209 = vshrl.u32 %v3178, 16
        %v3210 = vmul.u32 %v3206, %v3208
        %v3211 = vmul.u32 %v3206, %v3209
        %v3212 = vmul.u32 %v3207, %v3208
        %v3213 = vmul.u32 %v3207, %v3209
        %v3214 = vshll.u32 %v3211, 16
        %v3215 = vshrl.u32 %v3211, 16
        %v3216 = vshll.u32 %v3212, 16
        %v3217 = vshrl.u32 %v3212, 16
        %vm3218 = vc.u32 %v3210, %v3214
        %v3219 = vsel %vm3218, 1, 0
        %v3220 = vadd.s32 %v3210, %v3214
        %v3221 = vadd.s32 %v3213, %v3219
        %vm3222 = vc.u32 %v3220, %v3216
        %v3223 = vsel %vm3222, 1, 0
        %v3224 = vadd.s32 %v3220, %v3216
        %v3225 = vadd.s32 %v3221, %v3223
        %v3226 = vadd.s32 %v3225, %v3215
        %v3227 = vadd.s32 %v3226, %v3217
        %v3228 = vmul.u32 %v3183, %v3174
        %v3229 = vadd.s32 %v3205, %v3224
        %vm3230 = vc.u32 %v3205, %v3224
        %v3231 = vadd.s32 %v3227, 1
        %v3232 = vsel %vm3230, %v3231, %v3227
        %v3233 = vadd.s32 %v3228, %v3232
        %v3234 = vadd.s32 %v3233, 536870912
        %v3235 = vshrl.u32 %v3234, 30
        %v3236 = vshll.u32 %v3235, 30
        %v3237 = vsub.s32 %v3233, %v3236
        %vm3238 = vcmp.lt.s32.totalorder %v3237, 0
        %v3239 = vsub.s32 0, %v3237
        %v3240 = vsel %vm3238, %v3239, %v3237
        %v3241 = vclz %v3240
        %v3242 = vsub.s32 %v3241, 2
        %vm3243 = vcmp.gt.s32.totalorder 0, %v3242
        %v3244 = vsel %vm3243, 0, %v3242
        %v3245 = vsub.s32 32, %v3244
        %v3246 = vshll.u32 %v3237, %v3244
        %v3247 = vshrl.u32 %v3229, %v3245
        %v3248 = vor.u32 %v3246, %v3247
        %v3249 = vsub.s32 4294967266, %v3244
        %v3250 = vadd.s32 %v3249, 127
        %v3251 = vshll.u32 %v3250, 23
        %v3252 = vor.u32 4788187, %v3251
        %v3253 = vand.u32 2147483647, %v3252
        %v3255 = vcvt.s32.f32 %v3248
        %v3256 = vmul.f32 %v3255, %v3253
        %v3257 = vxor.u32 %v3256, 2147483648
        %v3258 = vsel %vm3137, %v3257, %v3256
        %v3259 = vsub.s32 4, %v3235
        %v3260 = vsel %vm3137, %v3259, %v3235
        %v3261 = vsel %vm3136, %v331, %v3258
        %v3262 = vsel %vm3136, 0, %v3260
        %v3263 = vmul.f32 %v3261, %v3261
        %v3264 = vmul.f32 %v3263, -0.001358992
        %v3265 = vadd.f32 %v3264, 0.041655596
        %v3266 = vmul.f32 %v3263, %v3265
        %v3267 = vadd.f32 %v3266, -0.4999988
        %v3268 = vmul.f32 %v3263, %v3267
        %v3269 = vadd.f32 1.0, %v3268
        %v3270 = vmul.f32 %v3261, %v3261
        %v3271 = vmul.f32 %v3270, -0.00019511016
        %v3272 = vadd.f32 %v3271, 0.008332121
        %v3273 = vmul.f32 %v3270, %v3272
        %v3274 = vadd.f32 %v3273, -0.16666654
        %v3275 = vmul.f32 %v3270, %v3274
        %v3276 = vadd.f32 %v3275, 1.0
        %v3277 = vmul.f32 %v3276, %v3261
        %vm3278 = vweird.f32 %v331
        %v3279 = vadd.s32 %v3262, 3
        %v3280 = vand.u32 %v3279, 3
        %vm3281 = vcmp.lt.s32.totalorder %v3280, 2
        %vm3282 = vcmp.eq.s32.totalorder %v3280, 0
        %v3283 = vxor.u32 %v3277, 2147483648
        %v3284 = vsel %vm3282, %v3269, %v3283
        %vm3285 = vcmp.eq.s32.totalorder %v3280, 2
        %v3286 = vxor.u32 %v3269, 2147483648
        %v3287 = vsel %vm3285, %v3286, %v3277
        %v3288 = vsel %vm3281, %v3284, %v3287
        %v3289 = vsel %vm3278, nan, %v3288
        %v3290 = vand.u32 2147483647, %v332
        %vm3291 = vcmp.le.f32.partialorder %v3290, 0.7853982
        %vm3292 = vcmp.lt.s32.totalorder %v332, 0
        %v3293 = vand.u32 %v332, 2139095040
        %v3294 = vshrl.u32 %v3293, 23
        %v3295 = vsub.s32 %v3294, 127
        %v3296 = vand.u32 2147483647, %v332
        %v3297 = vand.u32 %v3296, 8388607
        %v3298 = vor.u32 %v3297, 8388608
        %v3299 = vsub.s32 0, %v3298
        %v3300 = vadd.s32 %v3295, 1
        %vm3301 = vcmp.gt.s32.totalorder %v3300, 0
        %v3302 = vsel %vm3301, %v3300, 0
        %v3303 = vshrl.u32 %v3302, 5
        %v3304 = vand.u32 %v3302, 31
        %v3305 = vsub.s32 32, %v3304
        %v3306 = vshrl.u32 683565275, %v3305
        %v3307 = vshll.u32 683565275, %v3304
        %v3308 = vshrl.u32 2475754826, %v3305
        %v3309 = vor.u32 %v3307, %v3308
        %v3310 = vshll.u32 2475754826, %v3304
        %v3311 = vshrl.u32 2131351028, %v3305
        %v3312 = vor.u32 %v3310, %v3311
        %v3313 = vshll.u32 2131351028, %v3304
        %v3314 = vshrl.u32 2102212464, %v3305
        %v3315 = vor.u32 %v3313, %v3314
        %v3316 = vshll.u32 2102212464, %v3304
        %v3317 = vshrl.u32 920167782, %v3305
        %v3318 = vor.u32 %v3316, %v3317
        %v3319 = vshll.u32 920167782, %v3304
        %v3320 = vshrl.u32 1326507024, %v3305
        %v3321 = vor.u32 %v3319, %v3320
        %vm3322 = vcmp.lt.s32.totalorder %v3303, 1
        %vm3323 = vcmp.lt.s32.totalorder %v3303, 2
        %vm3324 = vcmp.lt.s32.totalorder %v3303, 3
        %vm3325 = vcmp.lt.s32.totalorder %v3303, 4
        %v3326 = vsel %vm3322, %v3306, %v3309
        %v3327 = vsel %vm3325, %v3315, 2102212464
        %v3328 = vsel %vm3324, %v3312, %v3327
        %v3329 = vsel %vm3323, %v3326, %v3328
        %v3330 = vsel %vm3322, %v3309, %v3312
        %v3331 = vsel %vm3325, %v3318, 920167782
        %v3332 = vsel %vm3324, %v3315, %v3331
        %v3333 = vsel %vm3323, %v3330, %v3332
        %v3334 = vsel %vm3322, %v3312, %v3315
        %v3335 = vsel %vm3325, %v3321, 1326507024
        %v3336 = vsel %vm3324, %v3318, %v3335
        %v3337 = vsel %vm3323, %v3334, %v3336
        %v3338 = vshll.u32 %v3298, 8
        %v3339 = vand.u32 %v3338, 65535
        %v3340 = vshrl.u32 %v3338, 16
        %v3341 = vand.u32 %v3337, 65535
        %v3342 = vshrl.u32 %v3337, 16
        %v3343 = vmul.u32 %v3339, %v3341
        %v3344 = vmul.u32 %v3339, %v3342
        %v3345 = vmul.u32 %v3340, %v3341
        %v3346 = vmul.u32 %v3340, %v3342
        %v3347 = vshll.u32 %v3344, 16
        %v3348 = vshrl.u32 %v3344, 16
        %v3349 = vshll.u32 %v3345, 16
        %v3350 = vshrl.u32 %v3345, 16
        %vm3351 = vc.u32 %v3343, %v3347
        %v3352 = vsel %vm3351, 1, 0
        %v3353 = vadd.s32 %v3343, %v3347
        %v3354 = vadd.s32 %v3346, %v3352
        %vm3355 = vc.u32 %v3353, %v3349
        %v3356 = vsel %vm3355, 1, 0
        %v3357 = vadd.s32 %v3353, %v3349
        %v3358 = vadd.s32 %v3354, %v3356
        %v3359 = vadd.s32 %v3358, %v3348
        %v3360 = vadd.s32 %v3359, %v3350
        %v3361 = vand.u32 %v3338, 65535
        %v3362 = vshrl.u32 %v3338, 16
        %v3363 = vand.u32 %v3333, 65535
        %v3364 = vshrl.u32 %v3333, 16
        %v3365 = vmul.u32 %v3361, %v3363
        %v3366 = vmul.u32 %v3361, %v3364
        %v3367 = vmul.u32 %v3362, %v3363
        %v3368 = vmul.u32 %v3362, %v3364
        %v3369 = vshll.u32 %v3366, 16
        %v3370 = vshrl.u32 %v3366, 16
        %v3371 = vshll.u32 %v3367, 16
        %v3372 = vshrl.u32 %v3367, 16
        %vm3373 = vc.u32 %v3365, %v3369
        %v3374 = vsel %vm3373, 1, 0
        %v3375 = vadd.s32 %v3365, %v3369
        %v3376 = vadd.s32 %v3368, %v3374
        %vm3377 = vc.u32 %v3375, %v3371
        %v3378 = vsel %vm3377, 1, 0
        %v3379 = vadd.s32 %v3375, %v3371
        %v3380 = vadd.s32 %v3376, %v3378
        %v3381 = vadd.s32 %v3380, %v3370
        %v3382 = vadd.s32 %v3381, %v3372
        %v3383 = vmul.u32 %v3338, %v3329
        %v3384 = vadd.s32 %v3360, %v3379
        %vm3385 = vc.u32 %v3360, %v3379
        %v3386 = vadd.s32 %v3382, 1
        %v3387 = vsel %vm3385, %v3386, %v3382
        %v3388 = vadd.s32 %v3383, %v3387
        %v3389 = vadd.s32 %v3388, 536870912
        %v3390 = vshrl.u32 %v3389, 30
        %v3391 = vshll.u32 %v3390, 30
        %v3392 = vsub.s32 %v3388, %v3391
        %vm3393 = vcmp.lt.s32.totalorder %v3392, 0
        %v3394 = vsub.s32 0, %v3392
        %v3395 = vsel %vm3393, %v3394, %v3392
        %v3396 = vclz %v3395
        %v3397 = vsub.s32 %v3396, 2
        %vm3398 = vcmp.gt.s32.totalorder 0, %v3397
        %v3399 = vsel %vm3398, 0, %v3397
        %v3400 = vsub.s32 32, %v3399
        %v3401 = vshll.u32 %v3392, %v3399
        %v3402 = vshrl.u32 %v3384, %v3400
        %v3403 = vor.u32 %v3401, %v3402
        %v3404 = vsub.s32 4294967266, %v3399
        %v3405 = vadd.s32 %v3404, 127
        %v3406 = vshll.u32 %v3405, 23
        %v3407 = vor.u32 4788187, %v3406
        %v3408 = vand.u32 2147483647, %v3407
        %v3410 = vcvt.s32.f32 %v3403
        %v3411 = vmul.f32 %v3410, %v3408
        %v3412 = vxor.u32 %v3411, 2147483648
        %v3413 = vsel %vm3292, %v3412, %v3411
        %v3414 = vsub.s32 4, %v3390
        %v3415 = vsel %vm3292, %v3414, %v3390
        %v3416 = vsel %vm3291, %v332, %v3413
        %v3417 = vsel %vm3291, 0, %v3415
        %v3418 = vmul.f32 %v3416, %v3416
        %v3419 = vmul.f32 %v3418, -0.001358992
        %v3420 = vadd.f32 %v3419, 0.041655596
        %v3421 = vmul.f32 %v3418, %v3420
        %v3422 = vadd.f32 %v3421, -0.4999988
        %v3423 = vmul.f32 %v3418, %v3422
        %v3424 = vadd.f32 1.0, %v3423
        %v3425 = vmul.f32 %v3416, %v3416
        %v3426 = vmul.f32 %v3425, -0.00019511016
        %v3427 = vadd.f32 %v3426, 0.008332121
        %v3428 = vmul.f32 %v3425, %v3427
        %v3429 = vadd.f32 %v3428, -0.16666654
        %v3430 = vmul.f32 %v3425, %v3429
        %v3431 = vadd.f32 %v3430, 1.0
        %v3432 = vmul.f32 %v3431, %v3416
        %vm3433 = vweird.f32 %v332
        %v3434 = vadd.s32 %v3417, 3
        %v3435 = vand.u32 %v3434, 3
        %vm3436 = vcmp.lt.s32.totalorder %v3435, 2
        %vm3437 = vcmp.eq.s32.totalorder %v3435, 0
        %v3438 = vxor.u32 %v3432, 2147483648
        %v3439 = vsel %vm3437, %v3424, %v3438
        %vm3440 = vcmp.eq.s32.totalorder %v3435, 2
        %v3441 = vxor.u32 %v3424, 2147483648
        %v3442 = vsel %vm3440, %v3441, %v3432
        %v3443 = vsel %vm3436, %v3439, %v3442
        %v3444 = vsel %vm3433, nan, %v3443
        %v3445 = vand.u32 2147483647, %v333
        %vm3446 = vcmp.le.f32.partialorder %v3445, 0.7853982
        %vm3447 = vcmp.lt.s32.totalorder %v333, 0
        %v3448 = vand.u32 %v333, 2139095040
        %v3449 = vshrl.u32 %v3448, 23
        %v3450 = vsub.s32 %v3449, 127
        %v3451 = vand.u32 2147483647, %v333
        %v3452 = vand.u32 %v3451, 8388607
        %v3453 = vor.u32 %v3452, 8388608
        %v3454 = vsub.s32 0, %v3453
        %v3455 = vadd.s32 %v3450, 1
        %vm3456 = vcmp.gt.s32.totalorder %v3455, 0
        %v3457 = vsel %vm3456, %v3455, 0
        %v3458 = vshrl.u32 %v3457, 5
        %v3459 = vand.u32 %v3457, 31
        %v3460 = vsub.s32 32, %v3459
        %v3461 = vshrl.u32 683565275, %v3460
        %v3462 = vshll.u32 683565275, %v3459
        %v3463 = vshrl.u32 2475754826, %v3460
        %v3464 = vor.u32 %v3462, %v3463
        %v3465 = vshll.u32 2475754826, %v3459
        %v3466 = vshrl.u32 2131351028, %v3460
        %v3467 = vor.u32 %v3465, %v3466
        %v3468 = vshll.u32 2131351028, %v3459
        %v3469 = vshrl.u32 2102212464, %v3460
        %v3470 = vor.u32 %v3468, %v3469
        %v3471 = vshll.u32 2102212464, %v3459
        %v3472 = vshrl.u32 920167782, %v3460
        %v3473 = vor.u32 %v3471, %v3472
        %v3474 = vshll.u32 920167782, %v3459
        %v3475 = vshrl.u32 1326507024, %v3460
        %v3476 = vor.u32 %v3474, %v3475
        %vm3477 = vcmp.lt.s32.totalorder %v3458, 1
        %vm3478 = vcmp.lt.s32.totalorder %v3458, 2
        %vm3479 = vcmp.lt.s32.totalorder %v3458, 3
        %vm3480 = vcmp.lt.s32.totalorder %v3458, 4
        %v3481 = vsel %vm3477, %v3461, %v3464
        %v3482 = vsel %vm3480, %v3470, 2102212464
        %v3483 = vsel %vm3479, %v3467, %v3482
        %v3484 = vsel %vm3478, %v3481, %v3483
        %v3485 = vsel %vm3477, %v3464, %v3467
        %v3486 = vsel %vm3480, %v3473, 920167782
        %v3487 = vsel %vm3479, %v3470, %v3486
        %v3488 = vsel %vm3478, %v3485, %v3487
        %v3489 = vsel %vm3477, %v3467, %v3470
        %v3490 = vsel %vm3480, %v3476, 1326507024
        %v3491 = vsel %vm3479, %v3473, %v3490
        %v3492 = vsel %vm3478, %v3489, %v3491
        %v3493 = vshll.u32 %v3453, 8
        %v3494 = vand.u32 %v3493, 65535
        %v3495 = vshrl.u32 %v3493, 16
        %v3496 = vand.u32 %v3492, 65535
        %v3497 = vshrl.u32 %v3492, 16
        %v3498 = vmul.u32 %v3494, %v3496
        %v3499 = vmul.u32 %v3494, %v3497
        %v3500 = vmul.u32 %v3495, %v3496
        %v3501 = vmul.u32 %v3495, %v3497
        %v3502 = vshll.u32 %v3499, 16
        %v3503 = vshrl.u32 %v3499, 16
        %v3504 = vshll.u32 %v3500, 16
        %v3505 = vshrl.u32 %v3500, 16
        %vm3506 = vc.u32 %v3498, %v3502
        %v3507 = vsel %vm3506, 1, 0
        %v3508 = vadd.s32 %v3498, %v3502
        %v3509 = vadd.s32 %v3501, %v3507
        %vm3510 = vc.u32 %v3508, %v3504
        %v3511 = vsel %vm3510, 1, 0
        %v3512 = vadd.s32 %v3508, %v3504
        %v3513 = vadd.s32 %v3509, %v3511
        %v3514 = vadd.s32 %v3513, %v3503
        %v3515 = vadd.s32 %v3514, %v3505
        %v3516 = vand.u32 %v3493, 65535
        %v3517 = vshrl.u32 %v3493, 16
        %v3518 = vand.u32 %v3488, 65535
        %v3519 = vshrl.u32 %v3488, 16
        %v3520 = vmul.u32 %v3516, %v3518
        %v3521 = vmul.u32 %v3516, %v3519
        %v3522 = vmul.u32 %v3517, %v3518
        %v3523 = vmul.u32 %v3517, %v3519
        %v3524 = vshll.u32 %v3521, 16
        %v3525 = vshrl.u32 %v3521, 16
        %v3526 = vshll.u32 %v3522, 16
        %v3527 = vshrl.u32 %v3522, 16
        %vm3528 = vc.u32 %v3520, %v3524
        %v3529 = vsel %vm3528, 1, 0
        %v3530 = vadd.s32 %v3520, %v3524
        %v3531 = vadd.s32 %v3523, %v3529
        %vm3532 = vc.u32 %v3530, %v3526
        %v3533 = vsel %vm3532, 1, 0
        %v3534 = vadd.s32 %v3530, %v3526
        %v3535 = vadd.s32 %v3531, %v3533
        %v3536 = vadd.s32 %v3535, %v3525
        %v3537 = vadd.s32 %v3536, %v3527
        %v3538 = vmul.u32 %v3493, %v3484
        %v3539 = vadd.s32 %v3515, %v3534
        %vm3540 = vc.u32 %v3515, %v3534
        %v3541 = vadd.s32 %v3537, 1
        %v3542 = vsel %vm3540, %v3541, %v3537
        %v3543 = vadd.s32 %v3538, %v3542
        %v3544 = vadd.s32 %v3543, 536870912
        %v3545 = vshrl.u32 %v3544, 30
        %v3546 = vshll.u32 %v3545, 30
        %v3547 = vsub.s32 %v3543, %v3546
        %vm3548 = vcmp.lt.s32.totalorder %v3547, 0
        %v3549 = vsub.s32 0, %v3547
        %v3550 = vsel %vm3548, %v3549, %v3547
        %v3551 = vclz %v3550
        %v3552 = vsub.s32 %v3551, 2
        %vm3553 = vcmp.gt.s32.totalorder 0, %v3552
        %v3554 = vsel %vm3553, 0, %v3552
        %v3555 = vsub.s32 32, %v3554
        %v3556 = vshll.u32 %v3547, %v3554
        %v3557 = vshrl.u32 %v3539, %v3555
        %v3558 = vor.u32 %v3556, %v3557
        %v3559 = vsub.s32 4294967266, %v3554
        %v3560 = vadd.s32 %v3559, 127
        %v3561 = vshll.u32 %v3560, 23
        %v3562 = vor.u32 4788187, %v3561
        %v3563 = vand.u32 2147483647, %v3562
        %v3565 = vcvt.s32.f32 %v3558
        %v3566 = vmul.f32 %v3565, %v3563
        %v3567 = vxor.u32 %v3566, 2147483648
        %v3568 = vsel %vm3447, %v3567, %v3566
        %v3569 = vsub.s32 4, %v3545
        %v3570 = vsel %vm3447, %v3569, %v3545
        %v3571 = vsel %vm3446, %v333, %v3568
        %v3572 = vsel %vm3446, 0, %v3570
        %v3573 = vmul.f32 %v3571, %v3571
        %v3574 = vmul.f32 %v3573, -0.001358992
        %v3575 = vadd.f32 %v3574, 0.041655596
        %v3576 = vmul.f32 %v3573, %v3575
        %v3577 = vadd.f32 %v3576, -0.4999988
        %v3578 = vmul.f32 %v3573, %v3577
        %v3579 = vadd.f32 1.0, %v3578
        %v3580 = vmul.f32 %v3571, %v3571
        %v3581 = vmul.f32 %v3580, -0.00019511016
        %v3582 = vadd.f32 %v3581, 0.008332121
        %v3583 = vmul.f32 %v3580, %v3582
        %v3584 = vadd.f32 %v3583, -0.16666654
        %v3585 = vmul.f32 %v3580, %v3584
        %v3586 = vadd.f32 %v3585, 1.0
        %v3587 = vmul.f32 %v3586, %v3571
        %vm3588 = vweird.f32 %v333
        %v3589 = vadd.s32 %v3572, 3
        %v3590 = vand.u32 %v3589, 3
        %vm3591 = vcmp.lt.s32.totalorder %v3590, 2
        %vm3592 = vcmp.eq.s32.totalorder %v3590, 0
        %v3593 = vxor.u32 %v3587, 2147483648
        %v3594 = vsel %vm3592, %v3579, %v3593
        %vm3595 = vcmp.eq.s32.totalorder %v3590, 2
        %v3596 = vxor.u32 %v3579, 2147483648
        %v3597 = vsel %vm3595, %v3596, %v3587
        %v3598 = vsel %vm3591, %v3594, %v3597
        %v3599 = vsel %vm3588, nan, %v3598
        %v3600 = vand.u32 2147483647, %v334
        %vm3601 = vcmp.le.f32.partialorder %v3600, 0.7853982
        %vm3602 = vcmp.lt.s32.totalorder %v334, 0
        %v3603 = vand.u32 %v334, 2139095040
        %v3604 = vshrl.u32 %v3603, 23
        %v3605 = vsub.s32 %v3604, 127
        %v3606 = vand.u32 2147483647, %v334
        %v3607 = vand.u32 %v3606, 8388607
        %v3608 = vor.u32 %v3607, 8388608
        %v3609 = vsub.s32 0, %v3608
        %v3610 = vadd.s32 %v3605, 1
        %vm3611 = vcmp.gt.s32.totalorder %v3610, 0
        %v3612 = vsel %vm3611, %v3610, 0
        %v3613 = vshrl.u32 %v3612, 5
        %v3614 = vand.u32 %v3612, 31
        %v3615 = vsub.s32 32, %v3614
        %v3616 = vshrl.u32 683565275, %v3615
        %v3617 = vshll.u32 683565275, %v3614
        %v3618 = vshrl.u32 2475754826, %v3615
        %v3619 = vor.u32 %v3617, %v3618
        %v3620 = vshll.u32 2475754826, %v3614
        %v3621 = vshrl.u32 2131351028, %v3615
        %v3622 = vor.u32 %v3620, %v3621
        %v3623 = vshll.u32 2131351028, %v3614
        %v3624 = vshrl.u32 2102212464, %v3615
        %v3625 = vor.u32 %v3623, %v3624
        %v3626 = vshll.u32 2102212464, %v3614
        %v3627 = vshrl.u32 920167782, %v3615
        %v3628 = vor.u32 %v3626, %v3627
        %v3629 = vshll.u32 920167782, %v3614
        %v3630 = vshrl.u32 1326507024, %v3615
        %v3631 = vor.u32 %v3629, %v3630
        %vm3632 = vcmp.lt.s32.totalorder %v3613, 1
        %vm3633 = vcmp.lt.s32.totalorder %v3613, 2
        %vm3634 = vcmp.lt.s32.totalorder %v3613, 3
        %vm3635 = vcmp.lt.s32.totalorder %v3613, 4
        %v3636 = vsel %vm3632, %v3616, %v3619
        %v3637 = vsel %vm3635, %v3625, 2102212464
        %v3638 = vsel %vm3634, %v3622, %v3637
        %v3639 = vsel %vm3633, %v3636, %v3638
        %v3640 = vsel %vm3632, %v3619, %v3622
        %v3641 = vsel %vm3635, %v3628, 920167782
        %v3642 = vsel %vm3634, %v3625, %v3641
        %v3643 = vsel %vm3633, %v3640, %v3642
        %v3644 = vsel %vm3632, %v3622, %v3625
        %v3645 = vsel %vm3635, %v3631, 1326507024
        %v3646 = vsel %vm3634, %v3628, %v3645
        %v3647 = vsel %vm3633, %v3644, %v3646
        %v3648 = vshll.u32 %v3608, 8
        %v3649 = vand.u32 %v3648, 65535
        %v3650 = vshrl.u32 %v3648, 16
        %v3651 = vand.u32 %v3647, 65535
        %v3652 = vshrl.u32 %v3647, 16
        %v3653 = vmul.u32 %v3649, %v3651
        %v3654 = vmul.u32 %v3649, %v3652
        %v3655 = vmul.u32 %v3650, %v3651
        %v3656 = vmul.u32 %v3650, %v3652
        %v3657 = vshll.u32 %v3654, 16
        %v3658 = vshrl.u32 %v3654, 16
        %v3659 = vshll.u32 %v3655, 16
        %v3660 = vshrl.u32 %v3655, 16
        %vm3661 = vc.u32 %v3653, %v3657
        %v3662 = vsel %vm3661, 1, 0
        %v3663 = vadd.s32 %v3653, %v3657
        %v3664 = vadd.s32 %v3656, %v3662
        %vm3665 = vc.u32 %v3663, %v3659
        %v3666 = vsel %vm3665, 1, 0
        %v3667 = vadd.s32 %v3663, %v3659
        %v3668 = vadd.s32 %v3664, %v3666
        %v3669 = vadd.s32 %v3668, %v3658
        %v3670 = vadd.s32 %v3669, %v3660
        %v3671 = vand.u32 %v3648, 65535
        %v3672 = vshrl.u32 %v3648, 16
        %v3673 = vand.u32 %v3643, 65535
        %v3674 = vshrl.u32 %v3643, 16
        %v3675 = vmul.u32 %v3671, %v3673
        %v3676 = vmul.u32 %v3671, %v3674
        %v3677 = vmul.u32 %v3672, %v3673
        %v3678 = vmul.u32 %v3672, %v3674
        %v3679 = vshll.u32 %v3676, 16
        %v3680 = vshrl.u32 %v3676, 16
        %v3681 = vshll.u32 %v3677, 16
        %v3682 = vshrl.u32 %v3677, 16
        %vm3683 = vc.u32 %v3675, %v3679
        %v3684 = vsel %vm3683, 1, 0
        %v3685 = vadd.s32 %v3675, %v3679
        %v3686 = vadd.s32 %v3678, %v3684
        %vm3687 = vc.u32 %v3685, %v3681
        %v3688 = vsel %vm3687, 1, 0
        %v3689 = vadd.s32 %v3685, %v3681
        %v3690 = vadd.s32 %v3686, %v3688
        %v3691 = vadd.s32 %v3690, %v3680
        %v3692 = vadd.s32 %v3691, %v3682
        %v3693 = vmul.u32 %v3648, %v3639
        %v3694 = vadd.s32 %v3670, %v3689
        %vm3695 = vc.u32 %v3670, %v3689
        %v3696 = vadd.s32 %v3692, 1
        %v3697 = vsel %vm3695, %v3696, %v3692
        %v3698 = vadd.s32 %v3693, %v3697
        %v3699 = vadd.s32 %v3698, 536870912
        %v3700 = vshrl.u32 %v3699, 30
        %v3701 = vshll.u32 %v3700, 30
        %v3702 = vsub.s32 %v3698, %v3701
        %vm3703 = vcmp.lt.s32.totalorder %v3702, 0
        %v3704 = vsub.s32 0, %v3702
        %v3705 = vsel %vm3703, %v3704, %v3702
        %v3706 = vclz %v3705
        %v3707 = vsub.s32 %v3706, 2
        %vm3708 = vcmp.gt.s32.totalorder 0, %v3707
        %v3709 = vsel %vm3708, 0, %v3707
        %v3710 = vsub.s32 32, %v3709
        %v3711 = vshll.u32 %v3702, %v3709
        %v3712 = vshrl.u32 %v3694, %v3710
        %v3713 = vor.u32 %v3711, %v3712
        %v3714 = vsub.s32 4294967266, %v3709
        %v3715 = vadd.s32 %v3714, 127
        %v3716 = vshll.u32 %v3715, 23
        %v3717 = vor.u32 4788187, %v3716
        %v3718 = vand.u32 2147483647, %v3717
        %v3720 = vcvt.s32.f32 %v3713
        %v3721 = vmul.f32 %v3720, %v3718
        %v3722 = vxor.u32 %v3721, 2147483648
        %v3723 = vsel %vm3602, %v3722, %v3721
        %v3724 = vsub.s32 4, %v3700
        %v3725 = vsel %vm3602, %v3724, %v3700
        %v3726 = vsel %vm3601, %v334, %v3723
        %v3727 = vsel %vm3601, 0, %v3725
        %v3728 = vmul.f32 %v3726, %v3726
        %v3729 = vmul.f32 %v3728, -0.001358992
        %v3730 = vadd.f32 %v3729, 0.041655596
        %v3731 = vmul.f32 %v3728, %v3730
        %v3732 = vadd.f32 %v3731, -0.4999988
        %v3733 = vmul.f32 %v3728, %v3732
        %v3734 = vadd.f32 1.0, %v3733
        %v3735 = vmul.f32 %v3726, %v3726
        %v3736 = vmul.f32 %v3735, -0.00019511016
        %v3737 = vadd.f32 %v3736, 0.008332121
        %v3738 = vmul.f32 %v3735, %v3737
        %v3739 = vadd.f32 %v3738, -0.16666654
        %v3740 = vmul.f32 %v3735, %v3739
        %v3741 = vadd.f32 %v3740, 1.0
        %v3742 = vmul.f32 %v3741, %v3726
        %vm3743 = vweird.f32 %v334
        %v3744 = vadd.s32 %v3727, 3
        %v3745 = vand.u32 %v3744, 3
        %vm3746 = vcmp.lt.s32.totalorder %v3745, 2
        %vm3747 = vcmp.eq.s32.totalorder %v3745, 0
        %v3748 = vxor.u32 %v3742, 2147483648
        %v3749 = vsel %vm3747, %v3734, %v3748
        %vm3750 = vcmp.eq.s32.totalorder %v3745, 2
        %v3751 = vxor.u32 %v3734, 2147483648
        %v3752 = vsel %vm3750, %v3751, %v3742
        %v3753 = vsel %vm3746, %v3749, %v3752
        %v3754 = vsel %vm3743, nan, %v3753
        %v3755 = vand.u32 2147483647, %v335
        %vm3756 = vcmp.le.f32.partialorder %v3755, 0.7853982
        %vm3757 = vcmp.lt.s32.totalorder %v335, 0
        %v3758 = vand.u32 %v335, 2139095040
        %v3759 = vshrl.u32 %v3758, 23
        %v3760 = vsub.s32 %v3759, 127
        %v3761 = vand.u32 2147483647, %v335
        %v3762 = vand.u32 %v3761, 8388607
        %v3763 = vor.u32 %v3762, 8388608
        %v3764 = vsub.s32 0, %v3763
        %v3765 = vadd.s32 %v3760, 1
        %vm3766 = vcmp.gt.s32.totalorder %v3765, 0
        %v3767 = vsel %vm3766, %v3765, 0
        %v3768 = vshrl.u32 %v3767, 5
        %v3769 = vand.u32 %v3767, 31
        %v3770 = vsub.s32 32, %v3769
        %v3771 = vshrl.u32 683565275, %v3770
        %v3772 = vshll.u32 683565275, %v3769
        %v3773 = vshrl.u32 2475754826, %v3770
        %v3774 = vor.u32 %v3772, %v3773
        %v3775 = vshll.u32 2475754826, %v3769
        %v3776 = vshrl.u32 2131351028, %v3770
        %v3777 = vor.u32 %v3775, %v3776
        %v3778 = vshll.u32 2131351028, %v3769
        %v3779 = vshrl.u32 2102212464, %v3770
        %v3780 = vor.u32 %v3778, %v3779
        %v3781 = vshll.u32 2102212464, %v3769
        %v3782 = vshrl.u32 920167782, %v3770
        %v3783 = vor.u32 %v3781, %v3782
        %v3784 = vshll.u32 920167782, %v3769
        %v3785 = vshrl.u32 1326507024, %v3770
        %v3786 = vor.u32 %v3784, %v3785
        %vm3787 = vcmp.lt.s32.totalorder %v3768, 1
        %vm3788 = vcmp.lt.s32.totalorder %v3768, 2
        %vm3789 = vcmp.lt.s32.totalorder %v3768, 3
        %vm3790 = vcmp.lt.s32.totalorder %v3768, 4
        %v3791 = vsel %vm3787, %v3771, %v3774
        %v3792 = vsel %vm3790, %v3780, 2102212464
        %v3793 = vsel %vm3789, %v3777, %v3792
        %v3794 = vsel %vm3788, %v3791, %v3793
        %v3795 = vsel %vm3787, %v3774, %v3777
        %v3796 = vsel %vm3790, %v3783, 920167782
        %v3797 = vsel %vm3789, %v3780, %v3796
        %v3798 = vsel %vm3788, %v3795, %v3797
        %v3799 = vsel %vm3787, %v3777, %v3780
        %v3800 = vsel %vm3790, %v3786, 1326507024
        %v3801 = vsel %vm3789, %v3783, %v3800
        %v3802 = vsel %vm3788, %v3799, %v3801
        %v3803 = vshll.u32 %v3763, 8
        %v3804 = vand.u32 %v3803, 65535
        %v3805 = vshrl.u32 %v3803, 16
        %v3806 = vand.u32 %v3802, 65535
        %v3807 = vshrl.u32 %v3802, 16
        %v3808 = vmul.u32 %v3804, %v3806
        %v3809 = vmul.u32 %v3804, %v3807
        %v3810 = vmul.u32 %v3805, %v3806
        %v3811 = vmul.u32 %v3805, %v3807
        %v3812 = vshll.u32 %v3809, 16
        %v3813 = vshrl.u32 %v3809, 16
        %v3814 = vshll.u32 %v3810, 16
        %v3815 = vshrl.u32 %v3810, 16
        %vm3816 = vc.u32 %v3808, %v3812
        %v3817 = vsel %vm3816, 1, 0
        %v3818 = vadd.s32 %v3808, %v3812
        %v3819 = vadd.s32 %v3811, %v3817
        %vm3820 = vc.u32 %v3818, %v3814
        %v3821 = vsel %vm3820, 1, 0
        %v3822 = vadd.s32 %v3818, %v3814
        %v3823 = vadd.s32 %v3819, %v3821
        %v3824 = vadd.s32 %v3823, %v3813
        %v3825 = vadd.s32 %v3824, %v3815
        %v3826 = vand.u32 %v3803, 65535
        %v3827 = vshrl.u32 %v3803, 16
        %v3828 = vand.u32 %v3798, 65535
        %v3829 = vshrl.u32 %v3798, 16
        %v3830 = vmul.u32 %v3826, %v3828
        %v3831 = vmul.u32 %v3826, %v3829
        %v3832 = vmul.u32 %v3827, %v3828
        %v3833 = vmul.u32 %v3827, %v3829
        %v3834 = vshll.u32 %v3831, 16
        %v3835 = vshrl.u32 %v3831, 16
        %v3836 = vshll.u32 %v3832, 16
        %v3837 = vshrl.u32 %v3832, 16
        %vm3838 = vc.u32 %v3830, %v3834
        %v3839 = vsel %vm3838, 1, 0
        %v3840 = vadd.s32 %v3830, %v3834
        %v3841 = vadd.s32 %v3833, %v3839
        %vm3842 = vc.u32 %v3840, %v3836
        %v3843 = vsel %vm3842, 1, 0
        %v3844 = vadd.s32 %v3840, %v3836
        %v3845 = vadd.s32 %v3841, %v3843
        %v3846 = vadd.s32 %v3845, %v3835
        %v3847 = vadd.s32 %v3846, %v3837
        %v3848 = vmul.u32 %v3803, %v3794
        %v3849 = vadd.s32 %v3825, %v3844
        %vm3850 = vc.u32 %v3825, %v3844
        %v3851 = vadd.s32 %v3847, 1
        %v3852 = vsel %vm3850, %v3851, %v3847
        %v3853 = vadd.s32 %v3848, %v3852
        %v3854 = vadd.s32 %v3853, 536870912
        %v3855 = vshrl.u32 %v3854, 30
        %v3856 = vshll.u32 %v3855, 30
        %v3857 = vsub.s32 %v3853, %v3856
        %vm3858 = vcmp.lt.s32.totalorder %v3857, 0
        %v3859 = vsub.s32 0, %v3857
        %v3860 = vsel %vm3858, %v3859, %v3857
        %v3861 = vclz %v3860
        %v3862 = vsub.s32 %v3861, 2
        %vm3863 = vcmp.gt.s32.totalorder 0, %v3862
        %v3864 = vsel %vm3863, 0, %v3862
        %v3865 = vsub.s32 32, %v3864
        %v3866 = vshll.u32 %v3857, %v3864
        %v3867 = vshrl.u32 %v3849, %v3865
        %v3868 = vor.u32 %v3866, %v3867
        %v3869 = vsub.s32 4294967266, %v3864
        %v3870 = vadd.s32 %v3869, 127
        %v3871 = vshll.u32 %v3870, 23
        %v3872 = vor.u32 4788187, %v3871
        %v3873 = vand.u32 2147483647, %v3872
        %v3875 = vcvt.s32.f32 %v3868
        %v3876 = vmul.f32 %v3875, %v3873
        %v3877 = vxor.u32 %v3876, 2147483648
        %v3878 = vsel %vm3757, %v3877, %v3876
        %v3879 = vsub.s32 4, %v3855
        %v3880 = vsel %vm3757, %v3879, %v3855
        %v3881 = vsel %vm3756, %v335, %v3878
        %v3882 = vsel %vm3756, 0, %v3880
        %v3883 = vmul.f32 %v3881, %v3881
        %v3884 = vmul.f32 %v3883, -0.001358992
        %v3885 = vadd.f32 %v3884, 0.041655596
        %v3886 = vmul.f32 %v3883, %v3885
        %v3887 = vadd.f32 %v3886, -0.4999988
        %v3888 = vmul.f32 %v3883, %v3887
        %v3889 = vadd.f32 1.0, %v3888
        %v3890 = vmul.f32 %v3881, %v3881
        %v3891 = vmul.f32 %v3890, -0.00019511016
        %v3892 = vadd.f32 %v3891, 0.008332121
        %v3893 = vmul.f32 %v3890, %v3892
        %v3894 = vadd.f32 %v3893, -0.16666654
        %v3895 = vmul.f32 %v3890, %v3894
        %v3896 = vadd.f32 %v3895, 1.0
        %v3897 = vmul.f32 %v3896, %v3881
        %vm3898 = vweird.f32 %v335
        %v3899 = vadd.s32 %v3882, 3
        %v3900 = vand.u32 %v3899, 3
        %vm3901 = vcmp.lt.s32.totalorder %v3900, 2
        %vm3902 = vcmp.eq.s32.totalorder %v3900, 0
        %v3903 = vxor.u32 %v3897, 2147483648
        %v3904 = vsel %vm3902, %v3889, %v3903
        %vm3905 = vcmp.eq.s32.totalorder %v3900, 2
        %v3906 = vxor.u32 %v3889, 2147483648
        %v3907 = vsel %vm3905, %v3906, %v3897
        %v3908 = vsel %vm3901, %v3904, %v3907
        %v3909 = vsel %vm3898, nan, %v3908
        %v3910 = vand.u32 2147483647, %v336
        %vm3911 = vcmp.le.f32.partialorder %v3910, 0.7853982
        %vm3912 = vcmp.lt.s32.totalorder %v336, 0
        %v3913 = vand.u32 %v336, 2139095040
        %v3914 = vshrl.u32 %v3913, 23
        %v3915 = vsub.s32 %v3914, 127
        %v3916 = vand.u32 2147483647, %v336
        %v3917 = vand.u32 %v3916, 8388607
        %v3918 = vor.u32 %v3917, 8388608
        %v3919 = vsub.s32 0, %v3918
        %v3920 = vadd.s32 %v3915, 1
        %vm3921 = vcmp.gt.s32.totalorder %v3920, 0
        %v3922 = vsel %vm3921, %v3920, 0
        %v3923 = vshrl.u32 %v3922, 5
        %v3924 = vand.u32 %v3922, 31
        %v3925 = vsub.s32 32, %v3924
        %v3926 = vshrl.u32 683565275, %v3925
        %v3927 = vshll.u32 683565275, %v3924
        %v3928 = vshrl.u32 2475754826, %v3925
        %v3929 = vor.u32 %v3927, %v3928
        %v3930 = vshll.u32 2475754826, %v3924
        %v3931 = vshrl.u32 2131351028, %v3925
        %v3932 = vor.u32 %v3930, %v3931
        %v3933 = vshll.u32 2131351028, %v3924
        %v3934 = vshrl.u32 2102212464, %v3925
        %v3935 = vor.u32 %v3933, %v3934
        %v3936 = vshll.u32 2102212464, %v3924
        %v3937 = vshrl.u32 920167782, %v3925
        %v3938 = vor.u32 %v3936, %v3937
        %v3939 = vshll.u32 920167782, %v3924
        %v3940 = vshrl.u32 1326507024, %v3925
        %v3941 = vor.u32 %v3939, %v3940
        %vm3942 = vcmp.lt.s32.totalorder %v3923, 1
        %vm3943 = vcmp.lt.s32.totalorder %v3923, 2
        %vm3944 = vcmp.lt.s32.totalorder %v3923, 3
        %vm3945 = vcmp.lt.s32.totalorder %v3923, 4
        %v3946 = vsel %vm3942, %v3926, %v3929
        %v3947 = vsel %vm3945, %v3935, 2102212464
        %v3948 = vsel %vm3944, %v3932, %v3947
        %v3949 = vsel %vm3943, %v3946, %v3948
        %v3950 = vsel %vm3942, %v3929, %v3932
        %v3951 = vsel %vm3945, %v3938, 920167782
        %v3952 = vsel %vm3944, %v3935, %v3951
        %v3953 = vsel %vm3943, %v3950, %v3952
        %v3954 = vsel %vm3942, %v3932, %v3935
        %v3955 = vsel %vm3945, %v3941, 1326507024
        %v3956 = vsel %vm3944, %v3938, %v3955
        %v3957 = vsel %vm3943, %v3954, %v3956
        %v3958 = vshll.u32 %v3918, 8
        %v3959 = vand.u32 %v3958, 65535
        %v3960 = vshrl.u32 %v3958, 16
        %v3961 = vand.u32 %v3957, 65535
        %v3962 = vshrl.u32 %v3957, 16
        %v3963 = vmul.u32 %v3959, %v3961
        %v3964 = vmul.u32 %v3959, %v3962
        %v3965 = vmul.u32 %v3960, %v3961
        %v3966 = vmul.u32 %v3960, %v3962
        %v3967 = vshll.u32 %v3964, 16
        %v3968 = vshrl.u32 %v3964, 16
        %v3969 = vshll.u32 %v3965, 16
        %v3970 = vshrl.u32 %v3965, 16
        %vm3971 = vc.u32 %v3963, %v3967
        %v3972 = vsel %vm3971, 1, 0
        %v3973 = vadd.s32 %v3963, %v3967
        %v3974 = vadd.s32 %v3966, %v3972
        %vm3975 = vc.u32 %v3973, %v3969
        %v3976 = vsel %vm3975, 1, 0
        %v3977 = vadd.s32 %v3973, %v3969
        %v3978 = vadd.s32 %v3974, %v3976
        %v3979 = vadd.s32 %v3978, %v3968
        %v3980 = vadd.s32 %v3979, %v3970
        %v3981 = vand.u32 %v3958, 65535
        %v3982 = vshrl.u32 %v3958, 16
        %v3983 = vand.u32 %v3953, 65535
        %v3984 = vshrl.u32 %v3953, 16
        %v3985 = vmul.u32 %v3981, %v3983
        %v3986 = vmul.u32 %v3981, %v3984
        %v3987 = vmul.u32 %v3982, %v3983
        %v3988 = vmul.u32 %v3982, %v3984
        %v3989 = vshll.u32 %v3986, 16
        %v3990 = vshrl.u32 %v3986, 16
        %v3991 = vshll.u32 %v3987, 16
        %v3992 = vshrl.u32 %v3987, 16
        %vm3993 = vc.u32 %v3985, %v3989
        %v3994 = vsel %vm3993, 1, 0
        %v3995 = vadd.s32 %v3985, %v3989
        %v3996 = vadd.s32 %v3988, %v3994
        %vm3997 = vc.u32 %v3995, %v3991
        %v3998 = vsel %vm3997, 1, 0
        %v3999 = vadd.s32 %v3995, %v3991
        %v4000 = vadd.s32 %v3996, %v3998
        %v4001 = vadd.s32 %v4000, %v3990
        %v4002 = vadd.s32 %v4001, %v3992
        %v4003 = vmul.u32 %v3958, %v3949
        %v4004 = vadd.s32 %v3980, %v3999
        %vm4005 = vc.u32 %v3980, %v3999
        %v4006 = vadd.s32 %v4002, 1
        %v4007 = vsel %vm4005, %v4006, %v4002
        %v4008 = vadd.s32 %v4003, %v4007
        %v4009 = vadd.s32 %v4008, 536870912
        %v4010 = vshrl.u32 %v4009, 30
        %v4011 = vshll.u32 %v4010, 30
        %v4012 = vsub.s32 %v4008, %v4011
        %vm4013 = vcmp.lt.s32.totalorder %v4012, 0
        %v4014 = vsub.s32 0, %v4012
        %v4015 = vsel %vm4013, %v4014, %v4012
        %v4016 = vclz %v4015
        %v4017 = vsub.s32 %v4016, 2
        %vm4018 = vcmp.gt.s32.totalorder 0, %v4017
        %v4019 = vsel %vm4018, 0, %v4017
        %v4020 = vsub.s32 32, %v4019
        %v4021 = vshll.u32 %v4012, %v4019
        %v4022 = vshrl.u32 %v4004, %v4020
        %v4023 = vor.u32 %v4021, %v4022
        %v4024 = vsub.s32 4294967266, %v4019
        %v4025 = vadd.s32 %v4024, 127
        %v4026 = vshll.u32 %v4025, 23
        %v4027 = vor.u32 4788187, %v4026
        %v4028 = vand.u32 2147483647, %v4027
        %v4030 = vcvt.s32.f32 %v4023
        %v4031 = vmul.f32 %v4030, %v4028
        %v4032 = vxor.u32 %v4031, 2147483648
        %v4033 = vsel %vm3912, %v4032, %v4031
        %v4034 = vsub.s32 4, %v4010
        %v4035 = vsel %vm3912, %v4034, %v4010
        %v4036 = vsel %vm3911, %v336, %v4033
        %v4037 = vsel %vm3911, 0, %v4035
        %v4038 = vmul.f32 %v4036, %v4036
        %v4039 = vmul.f32 %v4038, -0.001358992
        %v4040 = vadd.f32 %v4039, 0.041655596
        %v4041 = vmul.f32 %v4038, %v4040
        %v4042 = vadd.f32 %v4041, -0.4999988
        %v4043 = vmul.f32 %v4038, %v4042
        %v4044 = vadd.f32 1.0, %v4043
        %v4045 = vmul.f32 %v4036, %v4036
        %v4046 = vmul.f32 %v4045, -0.00019511016
        %v4047 = vadd.f32 %v4046, 0.008332121
        %v4048 = vmul.f32 %v4045, %v4047
        %v4049 = vadd.f32 %v4048, -0.16666654
        %v4050 = vmul.f32 %v4045, %v4049
        %v4051 = vadd.f32 %v4050, 1.0
        %v4052 = vmul.f32 %v4051, %v4036
        %vm4053 = vweird.f32 %v336
        %v4054 = vadd.s32 %v4037, 3
        %v4055 = vand.u32 %v4054, 3
        %vm4056 = vcmp.lt.s32.totalorder %v4055, 2
        %vm4057 = vcmp.eq.s32.totalorder %v4055, 0
        %v4058 = vxor.u32 %v4052, 2147483648
        %v4059 = vsel %vm4057, %v4044, %v4058
        %vm4060 = vcmp.eq.s32.totalorder %v4055, 2
        %v4061 = vxor.u32 %v4044, 2147483648
        %v4062 = vsel %vm4060, %v4061, %v4052
        %v4063 = vsel %vm4056, %v4059, %v4062
        %v4064 = vsel %vm4053, nan, %v4063
        %v4065 = vand.u32 2147483647, %v337
        %vm4066 = vcmp.le.f32.partialorder %v4065, 0.7853982
        %vm4067 = vcmp.lt.s32.totalorder %v337, 0
        %v4068 = vand.u32 %v337, 2139095040
        %v4069 = vshrl.u32 %v4068, 23
        %v4070 = vsub.s32 %v4069, 127
        %v4071 = vand.u32 2147483647, %v337
        %v4072 = vand.u32 %v4071, 8388607
        %v4073 = vor.u32 %v4072, 8388608
        %v4074 = vsub.s32 0, %v4073
        %v4075 = vadd.s32 %v4070, 1
        %vm4076 = vcmp.gt.s32.totalorder %v4075, 0
        %v4077 = vsel %vm4076, %v4075, 0
        %v4078 = vshrl.u32 %v4077, 5
        %v4079 = vand.u32 %v4077, 31
        %v4080 = vsub.s32 32, %v4079
        %v4081 = vshrl.u32 683565275, %v4080
        %v4082 = vshll.u32 683565275, %v4079
        %v4083 = vshrl.u32 2475754826, %v4080
        %v4084 = vor.u32 %v4082, %v4083
        %v4085 = vshll.u32 2475754826, %v4079
        %v4086 = vshrl.u32 2131351028, %v4080
        %v4087 = vor.u32 %v4085, %v4086
        %v4088 = vshll.u32 2131351028, %v4079
        %v4089 = vshrl.u32 2102212464, %v4080
        %v4090 = vor.u32 %v4088, %v4089
        %v4091 = vshll.u32 2102212464, %v4079
        %v4092 = vshrl.u32 920167782, %v4080
        %v4093 = vor.u32 %v4091, %v4092
        %v4094 = vshll.u32 920167782, %v4079
        %v4095 = vshrl.u32 1326507024, %v4080
        %v4096 = vor.u32 %v4094, %v4095
        %vm4097 = vcmp.lt.s32.totalorder %v4078, 1
        %vm4098 = vcmp.lt.s32.totalorder %v4078, 2
        %vm4099 = vcmp.lt.s32.totalorder %v4078, 3
        %vm4100 = vcmp.lt.s32.totalorder %v4078, 4
        %v4101 = vsel %vm4097, %v4081, %v4084
        %v4102 = vsel %vm4100, %v4090, 2102212464
        %v4103 = vsel %vm4099, %v4087, %v4102
        %v4104 = vsel %vm4098, %v4101, %v4103
        %v4105 = vsel %vm4097, %v4084, %v4087
        %v4106 = vsel %vm4100, %v4093, 920167782
        %v4107 = vsel %vm4099, %v4090, %v4106
        %v4108 = vsel %vm4098, %v4105, %v4107
        %v4109 = vsel %vm4097, %v4087, %v4090
        %v4110 = vsel %vm4100, %v4096, 1326507024
        %v4111 = vsel %vm4099, %v4093, %v4110
        %v4112 = vsel %vm4098, %v4109, %v4111
        %v4113 = vshll.u32 %v4073, 8
        %v4114 = vand.u32 %v4113, 65535
        %v4115 = vshrl.u32 %v4113, 16
        %v4116 = vand.u32 %v4112, 65535
        %v4117 = vshrl.u32 %v4112, 16
        %v4118 = vmul.u32 %v4114, %v4116
        %v4119 = vmul.u32 %v4114, %v4117
        %v4120 = vmul.u32 %v4115, %v4116
        %v4121 = vmul.u32 %v4115, %v4117
        %v4122 = vshll.u32 %v4119, 16
        %v4123 = vshrl.u32 %v4119, 16
        %v4124 = vshll.u32 %v4120, 16
        %v4125 = vshrl.u32 %v4120, 16
        %vm4126 = vc.u32 %v4118, %v4122
        %v4127 = vsel %vm4126, 1, 0
        %v4128 = vadd.s32 %v4118, %v4122
        %v4129 = vadd.s32 %v4121, %v4127
        %vm4130 = vc.u32 %v4128, %v4124
        %v4131 = vsel %vm4130, 1, 0
        %v4132 = vadd.s32 %v4128, %v4124
        %v4133 = vadd.s32 %v4129, %v4131
        %v4134 = vadd.s32 %v4133, %v4123
        %v4135 = vadd.s32 %v4134, %v4125
        %v4136 = vand.u32 %v4113, 65535
        %v4137 = vshrl.u32 %v4113, 16
        %v4138 = vand.u32 %v4108, 65535
        %v4139 = vshrl.u32 %v4108, 16
        %v4140 = vmul.u32 %v4136, %v4138
        %v4141 = vmul.u32 %v4136, %v4139
        %v4142 = vmul.u32 %v4137, %v4138
        %v4143 = vmul.u32 %v4137, %v4139
        %v4144 = vshll.u32 %v4141, 16
        %v4145 = vshrl.u32 %v4141, 16
        %v4146 = vshll.u32 %v4142, 16
        %v4147 = vshrl.u32 %v4142, 16
        %vm4148 = vc.u32 %v4140, %v4144
        %v4149 = vsel %vm4148, 1, 0
        %v4150 = vadd.s32 %v4140, %v4144
        %v4151 = vadd.s32 %v4143, %v4149
        %vm4152 = vc.u32 %v4150, %v4146
        %v4153 = vsel %vm4152, 1, 0
        %v4154 = vadd.s32 %v4150, %v4146
        %v4155 = vadd.s32 %v4151, %v4153
        %v4156 = vadd.s32 %v4155, %v4145
        %v4157 = vadd.s32 %v4156, %v4147
        %v4158 = vmul.u32 %v4113, %v4104
        %v4159 = vadd.s32 %v4135, %v4154
        %vm4160 = vc.u32 %v4135, %v4154
        %v4161 = vadd.s32 %v4157, 1
        %v4162 = vsel %vm4160, %v4161, %v4157
        %v4163 = vadd.s32 %v4158, %v4162
        %v4164 = vadd.s32 %v4163, 536870912
        %v4165 = vshrl.u32 %v4164, 30
        %v4166 = vshll.u32 %v4165, 30
        %v4167 = vsub.s32 %v4163, %v4166
        %vm4168 = vcmp.lt.s32.totalorder %v4167, 0
        %v4169 = vsub.s32 0, %v4167
        %v4170 = vsel %vm4168, %v4169, %v4167
        %v4171 = vclz %v4170
        %v4172 = vsub.s32 %v4171, 2
        %vm4173 = vcmp.gt.s32.totalorder 0, %v4172
        %v4174 = vsel %vm4173, 0, %v4172
        %v4175 = vsub.s32 32, %v4174
        %v4176 = vshll.u32 %v4167, %v4174
        %v4177 = vshrl.u32 %v4159, %v4175
        %v4178 = vor.u32 %v4176, %v4177
        %v4179 = vsub.s32 4294967266, %v4174
        %v4180 = vadd.s32 %v4179, 127
        %v4181 = vshll.u32 %v4180, 23
        %v4182 = vor.u32 4788187, %v4181
        %v4183 = vand.u32 2147483647, %v4182
        %v4185 = vcvt.s32.f32 %v4178
        %v4186 = vmul.f32 %v4185, %v4183
        %v4187 = vxor.u32 %v4186, 2147483648
        %v4188 = vsel %vm4067, %v4187, %v4186
        %v4189 = vsub.s32 4, %v4165
        %v4190 = vsel %vm4067, %v4189, %v4165
        %v4191 = vsel %vm4066, %v337, %v4188
        %v4192 = vsel %vm4066, 0, %v4190
        %v4193 = vmul.f32 %v4191, %v4191
        %v4194 = vmul.f32 %v4193, -0.001358992
        %v4195 = vadd.f32 %v4194, 0.041655596
        %v4196 = vmul.f32 %v4193, %v4195
        %v4197 = vadd.f32 %v4196, -0.4999988
        %v4198 = vmul.f32 %v4193, %v4197
        %v4199 = vadd.f32 1.0, %v4198
        %v4200 = vmul.f32 %v4191, %v4191
        %v4201 = vmul.f32 %v4200, -0.00019511016
        %v4202 = vadd.f32 %v4201, 0.008332121
        %v4203 = vmul.f32 %v4200, %v4202
        %v4204 = vadd.f32 %v4203, -0.16666654
        %v4205 = vmul.f32 %v4200, %v4204
        %v4206 = vadd.f32 %v4205, 1.0
        %v4207 = vmul.f32 %v4206, %v4191
        %vm4208 = vweird.f32 %v337
        %v4209 = vadd.s32 %v4192, 3
        %v4210 = vand.u32 %v4209, 3
        %vm4211 = vcmp.lt.s32.totalorder %v4210, 2
        %vm4212 = vcmp.eq.s32.totalorder %v4210, 0
        %v4213 = vxor.u32 %v4207, 2147483648
        %v4214 = vsel %vm4212, %v4199, %v4213
        %vm4215 = vcmp.eq.s32.totalorder %v4210, 2
        %v4216 = vxor.u32 %v4199, 2147483648
        %v4217 = vsel %vm4215, %v4216, %v4207
        %v4218 = vsel %vm4211, %v4214, %v4217
        %v4219 = vsel %vm4208, nan, %v4218
        %v4220 = vand.u32 2147483647, %v338
        %vm4221 = vcmp.le.f32.partialorder %v4220, 0.7853982
        %vm4222 = vcmp.lt.s32.totalorder %v338, 0
        %v4223 = vand.u32 %v338, 2139095040
        %v4224 = vshrl.u32 %v4223, 23
        %v4225 = vsub.s32 %v4224, 127
        %v4226 = vand.u32 2147483647, %v338
        %v4227 = vand.u32 %v4226, 8388607
        %v4228 = vor.u32 %v4227, 8388608
        %v4229 = vsub.s32 0, %v4228
        %v4230 = vadd.s32 %v4225, 1
        %vm4231 = vcmp.gt.s32.totalorder %v4230, 0
        %v4232 = vsel %vm4231, %v4230, 0
        %v4233 = vshrl.u32 %v4232, 5
        %v4234 = vand.u32 %v4232, 31
        %v4235 = vsub.s32 32, %v4234
        %v4236 = vshrl.u32 683565275, %v4235
        %v4237 = vshll.u32 683565275, %v4234
        %v4238 = vshrl.u32 2475754826, %v4235
        %v4239 = vor.u32 %v4237, %v4238
        %v4240 = vshll.u32 2475754826, %v4234
        %v4241 = vshrl.u32 2131351028, %v4235
        %v4242 = vor.u32 %v4240, %v4241
        %v4243 = vshll.u32 2131351028, %v4234
        %v4244 = vshrl.u32 2102212464, %v4235
        %v4245 = vor.u32 %v4243, %v4244
        %v4246 = vshll.u32 2102212464, %v4234
        %v4247 = vshrl.u32 920167782, %v4235
        %v4248 = vor.u32 %v4246, %v4247
        %v4249 = vshll.u32 920167782, %v4234
        %v4250 = vshrl.u32 1326507024, %v4235
        %v4251 = vor.u32 %v4249, %v4250
        %vm4252 = vcmp.lt.s32.totalorder %v4233, 1
        %vm4253 = vcmp.lt.s32.totalorder %v4233, 2
        %vm4254 = vcmp.lt.s32.totalorder %v4233, 3
        %vm4255 = vcmp.lt.s32.totalorder %v4233, 4
        %v4256 = vsel %vm4252, %v4236, %v4239
        %v4257 = vsel %vm4255, %v4245, 2102212464
        %v4258 = vsel %vm4254, %v4242, %v4257
        %v4259 = vsel %vm4253, %v4256, %v4258
        %v4260 = vsel %vm4252, %v4239, %v4242
        %v4261 = vsel %vm4255, %v4248, 920167782
        %v4262 = vsel %vm4254, %v4245, %v4261
        %v4263 = vsel %vm4253, %v4260, %v4262
        %v4264 = vsel %vm4252, %v4242, %v4245
        %v4265 = vsel %vm4255, %v4251, 1326507024
        %v4266 = vsel %vm4254, %v4248, %v4265
        %v4267 = vsel %vm4253, %v4264, %v4266
        %v4268 = vshll.u32 %v4228, 8
        %v4269 = vand.u32 %v4268, 65535
        %v4270 = vshrl.u32 %v4268, 16
        %v4271 = vand.u32 %v4267, 65535
        %v4272 = vshrl.u32 %v4267, 16
        %v4273 = vmul.u32 %v4269, %v4271
        %v4274 = vmul.u32 %v4269, %v4272
        %v4275 = vmul.u32 %v4270, %v4271
        %v4276 = vmul.u32 %v4270, %v4272
        %v4277 = vshll.u32 %v4274, 16
        %v4278 = vshrl.u32 %v4274, 16
        %v4279 = vshll.u32 %v4275, 16
        %v4280 = vshrl.u32 %v4275, 16
        %vm4281 = vc.u32 %v4273, %v4277
        %v4282 = vsel %vm4281, 1, 0
        %v4283 = vadd.s32 %v4273, %v4277
        %v4284 = vadd.s32 %v4276, %v4282
        %vm4285 = vc.u32 %v4283, %v4279
        %v4286 = vsel %vm4285, 1, 0
        %v4287 = vadd.s32 %v4283, %v4279
        %v4288 = vadd.s32 %v4284, %v4286
        %v4289 = vadd.s32 %v4288, %v4278
        %v4290 = vadd.s32 %v4289, %v4280
        %v4291 = vand.u32 %v4268, 65535
        %v4292 = vshrl.u32 %v4268, 16
        %v4293 = vand.u32 %v4263, 65535
        %v4294 = vshrl.u32 %v4263, 16
        %v4295 = vmul.u32 %v4291, %v4293
        %v4296 = vmul.u32 %v4291, %v4294
        %v4297 = vmul.u32 %v4292, %v4293
        %v4298 = vmul.u32 %v4292, %v4294
        %v4299 = vshll.u32 %v4296, 16
        %v4300 = vshrl.u32 %v4296, 16
        %v4301 = vshll.u32 %v4297, 16
        %v4302 = vshrl.u32 %v4297, 16
        %vm4303 = vc.u32 %v4295, %v4299
        %v4304 = vsel %vm4303, 1, 0
        %v4305 = vadd.s32 %v4295, %v4299
        %v4306 = vadd.s32 %v4298, %v4304
        %vm4307 = vc.u32 %v4305, %v4301
        %v4308 = vsel %vm4307, 1, 0
        %v4309 = vadd.s32 %v4305, %v4301
        %v4310 = vadd.s32 %v4306, %v4308
        %v4311 = vadd.s32 %v4310, %v4300
        %v4312 = vadd.s32 %v4311, %v4302
        %v4313 = vmul.u32 %v4268, %v4259
        %v4314 = vadd.s32 %v4290, %v4309
        %vm4315 = vc.u32 %v4290, %v4309
        %v4316 = vadd.s32 %v4312, 1
        %v4317 = vsel %vm4315, %v4316, %v4312
        %v4318 = vadd.s32 %v4313, %v4317
        %v4319 = vadd.s32 %v4318, 536870912
        %v4320 = vshrl.u32 %v4319, 30
        %v4321 = vshll.u32 %v4320, 30
        %v4322 = vsub.s32 %v4318, %v4321
        %vm4323 = vcmp.lt.s32.totalorder %v4322, 0
        %v4324 = vsub.s32 0, %v4322
        %v4325 = vsel %vm4323, %v4324, %v4322
        %v4326 = vclz %v4325
        %v4327 = vsub.s32 %v4326, 2
        %vm4328 = vcmp.gt.s32.totalorder 0, %v4327
        %v4329 = vsel %vm4328, 0, %v4327
        %v4330 = vsub.s32 32, %v4329
        %v4331 = vshll.u32 %v4322, %v4329
        %v4332 = vshrl.u32 %v4314, %v4330
        %v4333 = vor.u32 %v4331, %v4332
        %v4334 = vsub.s32 4294967266, %v4329
        %v4335 = vadd.s32 %v4334, 127
        %v4336 = vshll.u32 %v4335, 23
        %v4337 = vor.u32 4788187, %v4336
        %v4338 = vand.u32 2147483647, %v4337
        %v4340 = vcvt.s32.f32 %v4333
        %v4341 = vmul.f32 %v4340, %v4338
        %v4342 = vxor.u32 %v4341, 2147483648
        %v4343 = vsel %vm4222, %v4342, %v4341
        %v4344 = vsub.s32 4, %v4320
        %v4345 = vsel %vm4222, %v4344, %v4320
        %v4346 = vsel %vm4221, %v338, %v4343
        %v4347 = vsel %vm4221, 0, %v4345
        %v4348 = vmul.f32 %v4346, %v4346
        %v4349 = vmul.f32 %v4348, -0.001358992
        %v4350 = vadd.f32 %v4349, 0.041655596
        %v4351 = vmul.f32 %v4348, %v4350
        %v4352 = vadd.f32 %v4351, -0.4999988
        %v4353 = vmul.f32 %v4348, %v4352
        %v4354 = vadd.f32 1.0, %v4353
        %v4355 = vmul.f32 %v4346, %v4346
        %v4356 = vmul.f32 %v4355, -0.00019511016
        %v4357 = vadd.f32 %v4356, 0.008332121
        %v4358 = vmul.f32 %v4355, %v4357
        %v4359 = vadd.f32 %v4358, -0.16666654
        %v4360 = vmul.f32 %v4355, %v4359
        %v4361 = vadd.f32 %v4360, 1.0
        %v4362 = vmul.f32 %v4361, %v4346
        %vm4363 = vweird.f32 %v338
        %v4364 = vadd.s32 %v4347, 3
        %v4365 = vand.u32 %v4364, 3
        %vm4366 = vcmp.lt.s32.totalorder %v4365, 2
        %vm4367 = vcmp.eq.s32.totalorder %v4365, 0
        %v4368 = vxor.u32 %v4362, 2147483648
        %v4369 = vsel %vm4367, %v4354, %v4368
        %vm4370 = vcmp.eq.s32.totalorder %v4365, 2
        %v4371 = vxor.u32 %v4354, 2147483648
        %v4372 = vsel %vm4370, %v4371, %v4362
        %v4373 = vsel %vm4366, %v4369, %v4372
        %v4374 = vsel %vm4363, nan, %v4373
        %v4375 = vand.u32 2147483647, %v339
        %vm4376 = vcmp.le.f32.partialorder %v4375, 0.7853982
        %vm4377 = vcmp.lt.s32.totalorder %v339, 0
        %v4378 = vand.u32 %v339, 2139095040
        %v4379 = vshrl.u32 %v4378, 23
        %v4380 = vsub.s32 %v4379, 127
        %v4381 = vand.u32 2147483647, %v339
        %v4382 = vand.u32 %v4381, 8388607
        %v4383 = vor.u32 %v4382, 8388608
        %v4384 = vsub.s32 0, %v4383
        %v4385 = vadd.s32 %v4380, 1
        %vm4386 = vcmp.gt.s32.totalorder %v4385, 0
        %v4387 = vsel %vm4386, %v4385, 0
        %v4388 = vshrl.u32 %v4387, 5
        %v4389 = vand.u32 %v4387, 31
        %v4390 = vsub.s32 32, %v4389
        %v4391 = vshrl.u32 683565275, %v4390
        %v4392 = vshll.u32 683565275, %v4389
        %v4393 = vshrl.u32 2475754826, %v4390
        %v4394 = vor.u32 %v4392, %v4393
        %v4395 = vshll.u32 2475754826, %v4389
        %v4396 = vshrl.u32 2131351028, %v4390
        %v4397 = vor.u32 %v4395, %v4396
        %v4398 = vshll.u32 2131351028, %v4389
        %v4399 = vshrl.u32 2102212464, %v4390
        %v4400 = vor.u32 %v4398, %v4399
        %v4401 = vshll.u32 2102212464, %v4389
        %v4402 = vshrl.u32 920167782, %v4390
        %v4403 = vor.u32 %v4401, %v4402
        %v4404 = vshll.u32 920167782, %v4389
        %v4405 = vshrl.u32 1326507024, %v4390
        %v4406 = vor.u32 %v4404, %v4405
        %vm4407 = vcmp.lt.s32.totalorder %v4388, 1
        %vm4408 = vcmp.lt.s32.totalorder %v4388, 2
        %vm4409 = vcmp.lt.s32.totalorder %v4388, 3
        %vm4410 = vcmp.lt.s32.totalorder %v4388, 4
        %v4411 = vsel %vm4407, %v4391, %v4394
        %v4412 = vsel %vm4410, %v4400, 2102212464
        %v4413 = vsel %vm4409, %v4397, %v4412
        %v4414 = vsel %vm4408, %v4411, %v4413
        %v4415 = vsel %vm4407, %v4394, %v4397
        %v4416 = vsel %vm4410, %v4403, 920167782
        %v4417 = vsel %vm4409, %v4400, %v4416
        %v4418 = vsel %vm4408, %v4415, %v4417
        %v4419 = vsel %vm4407, %v4397, %v4400
        %v4420 = vsel %vm4410, %v4406, 1326507024
        %v4421 = vsel %vm4409, %v4403, %v4420
        %v4422 = vsel %vm4408, %v4419, %v4421
        %v4423 = vshll.u32 %v4383, 8
        %v4424 = vand.u32 %v4423, 65535
        %v4425 = vshrl.u32 %v4423, 16
        %v4426 = vand.u32 %v4422, 65535
        %v4427 = vshrl.u32 %v4422, 16
        %v4428 = vmul.u32 %v4424, %v4426
        %v4429 = vmul.u32 %v4424, %v4427
        %v4430 = vmul.u32 %v4425, %v4426
        %v4431 = vmul.u32 %v4425, %v4427
        %v4432 = vshll.u32 %v4429, 16
        %v4433 = vshrl.u32 %v4429, 16
        %v4434 = vshll.u32 %v4430, 16
        %v4435 = vshrl.u32 %v4430, 16
        %vm4436 = vc.u32 %v4428, %v4432
        %v4437 = vsel %vm4436, 1, 0
        %v4438 = vadd.s32 %v4428, %v4432
        %v4439 = vadd.s32 %v4431, %v4437
        %vm4440 = vc.u32 %v4438, %v4434
        %v4441 = vsel %vm4440, 1, 0
        %v4442 = vadd.s32 %v4438, %v4434
        %v4443 = vadd.s32 %v4439, %v4441
        %v4444 = vadd.s32 %v4443, %v4433
        %v4445 = vadd.s32 %v4444, %v4435
        %v4446 = vand.u32 %v4423, 65535
        %v4447 = vshrl.u32 %v4423, 16
        %v4448 = vand.u32 %v4418, 65535
        %v4449 = vshrl.u32 %v4418, 16
        %v4450 = vmul.u32 %v4446, %v4448
        %v4451 = vmul.u32 %v4446, %v4449
        %v4452 = vmul.u32 %v4447, %v4448
        %v4453 = vmul.u32 %v4447, %v4449
        %v4454 = vshll.u32 %v4451, 16
        %v4455 = vshrl.u32 %v4451, 16
        %v4456 = vshll.u32 %v4452, 16
        %v4457 = vshrl.u32 %v4452, 16
        %vm4458 = vc.u32 %v4450, %v4454
        %v4459 = vsel %vm4458, 1, 0
        %v4460 = vadd.s32 %v4450, %v4454
        %v4461 = vadd.s32 %v4453, %v4459
        %vm4462 = vc.u32 %v4460, %v4456
        %v4463 = vsel %vm4462, 1, 0
        %v4464 = vadd.s32 %v4460, %v4456
        %v4465 = vadd.s32 %v4461, %v4463
        %v4466 = vadd.s32 %v4465, %v4455
        %v4467 = vadd.s32 %v4466, %v4457
        %v4468 = vmul.u32 %v4423, %v4414
        %v4469 = vadd.s32 %v4445, %v4464
        %vm4470 = vc.u32 %v4445, %v4464
        %v4471 = vadd.s32 %v4467, 1
        %v4472 = vsel %vm4470, %v4471, %v4467
        %v4473 = vadd.s32 %v4468, %v4472
        %v4474 = vadd.s32 %v4473, 536870912
        %v4475 = vshrl.u32 %v4474, 30
        %v4476 = vshll.u32 %v4475, 30
        %v4477 = vsub.s32 %v4473, %v4476
        %vm4478 = vcmp.lt.s32.totalorder %v4477, 0
        %v4479 = vsub.s32 0, %v4477
        %v4480 = vsel %vm4478, %v4479, %v4477
        %v4481 = vclz %v4480
        %v4482 = vsub.s32 %v4481, 2
        %vm4483 = vcmp.gt.s32.totalorder 0, %v4482
        %v4484 = vsel %vm4483, 0, %v4482
        %v4485 = vsub.s32 32, %v4484
        %v4486 = vshll.u32 %v4477, %v4484
        %v4487 = vshrl.u32 %v4469, %v4485
        %v4488 = vor.u32 %v4486, %v4487
        %v4489 = vsub.s32 4294967266, %v4484
        %v4490 = vadd.s32 %v4489, 127
        %v4491 = vshll.u32 %v4490, 23
        %v4492 = vor.u32 4788187, %v4491
        %v4493 = vand.u32 2147483647, %v4492
        %v4495 = vcvt.s32.f32 %v4488
        %v4496 = vmul.f32 %v4495, %v4493
        %v4497 = vxor.u32 %v4496, 2147483648
        %v4498 = vsel %vm4377, %v4497, %v4496
        %v4499 = vsub.s32 4, %v4475
        %v4500 = vsel %vm4377, %v4499, %v4475
        %v4501 = vsel %vm4376, %v339, %v4498
        %v4502 = vsel %vm4376, 0, %v4500
        %v4503 = vmul.f32 %v4501, %v4501
        %v4504 = vmul.f32 %v4503, -0.001358992
        %v4505 = vadd.f32 %v4504, 0.041655596
        %v4506 = vmul.f32 %v4503, %v4505
        %v4507 = vadd.f32 %v4506, -0.4999988
        %v4508 = vmul.f32 %v4503, %v4507
        %v4509 = vadd.f32 1.0, %v4508
        %v4510 = vmul.f32 %v4501, %v4501
        %v4511 = vmul.f32 %v4510, -0.00019511016
        %v4512 = vadd.f32 %v4511, 0.008332121
        %v4513 = vmul.f32 %v4510, %v4512
        %v4514 = vadd.f32 %v4513, -0.16666654
        %v4515 = vmul.f32 %v4510, %v4514
        %v4516 = vadd.f32 %v4515, 1.0
        %v4517 = vmul.f32 %v4516, %v4501
        %vm4518 = vweird.f32 %v339
        %v4519 = vadd.s32 %v4502, 3
        %v4520 = vand.u32 %v4519, 3
        %vm4521 = vcmp.lt.s32.totalorder %v4520, 2
        %vm4522 = vcmp.eq.s32.totalorder %v4520, 0
        %v4523 = vxor.u32 %v4517, 2147483648
        %v4524 = vsel %vm4522, %v4509, %v4523
        %vm4525 = vcmp.eq.s32.totalorder %v4520, 2
        %v4526 = vxor.u32 %v4509, 2147483648
        %v4527 = vsel %vm4525, %v4526, %v4517
        %v4528 = vsel %vm4521, %v4524, %v4527
        %v4529 = vsel %vm4518, nan, %v4528
        %v4530 = vand.u32 2147483647, %v340
        %vm4531 = vcmp.le.f32.partialorder %v4530, 0.7853982
        %vm4532 = vcmp.lt.s32.totalorder %v340, 0
        %v4533 = vand.u32 %v340, 2139095040
        %v4534 = vshrl.u32 %v4533, 23
        %v4535 = vsub.s32 %v4534, 127
        %v4536 = vand.u32 2147483647, %v340
        %v4537 = vand.u32 %v4536, 8388607
        %v4538 = vor.u32 %v4537, 8388608
        %v4539 = vsub.s32 0, %v4538
        %v4540 = vadd.s32 %v4535, 1
        %vm4541 = vcmp.gt.s32.totalorder %v4540, 0
        %v4542 = vsel %vm4541, %v4540, 0
        %v4543 = vshrl.u32 %v4542, 5
        %v4544 = vand.u32 %v4542, 31
        %v4545 = vsub.s32 32, %v4544
        %v4546 = vshrl.u32 683565275, %v4545
        %v4547 = vshll.u32 683565275, %v4544
        %v4548 = vshrl.u32 2475754826, %v4545
        %v4549 = vor.u32 %v4547, %v4548
        %v4550 = vshll.u32 2475754826, %v4544
        %v4551 = vshrl.u32 2131351028, %v4545
        %v4552 = vor.u32 %v4550, %v4551
        %v4553 = vshll.u32 2131351028, %v4544
        %v4554 = vshrl.u32 2102212464, %v4545
        %v4555 = vor.u32 %v4553, %v4554
        %v4556 = vshll.u32 2102212464, %v4544
        %v4557 = vshrl.u32 920167782, %v4545
        %v4558 = vor.u32 %v4556, %v4557
        %v4559 = vshll.u32 920167782, %v4544
        %v4560 = vshrl.u32 1326507024, %v4545
        %v4561 = vor.u32 %v4559, %v4560
        %vm4562 = vcmp.lt.s32.totalorder %v4543, 1
        %vm4563 = vcmp.lt.s32.totalorder %v4543, 2
        %vm4564 = vcmp.lt.s32.totalorder %v4543, 3
        %vm4565 = vcmp.lt.s32.totalorder %v4543, 4
        %v4566 = vsel %vm4562, %v4546, %v4549
        %v4567 = vsel %vm4565, %v4555, 2102212464
        %v4568 = vsel %vm4564, %v4552, %v4567
        %v4569 = vsel %vm4563, %v4566, %v4568
        %v4570 = vsel %vm4562, %v4549, %v4552
        %v4571 = vsel %vm4565, %v4558, 920167782
        %v4572 = vsel %vm4564, %v4555, %v4571
        %v4573 = vsel %vm4563, %v4570, %v4572
        %v4574 = vsel %vm4562, %v4552, %v4555
        %v4575 = vsel %vm4565, %v4561, 1326507024
        %v4576 = vsel %vm4564, %v4558, %v4575
        %v4577 = vsel %vm4563, %v4574, %v4576
        %v4578 = vshll.u32 %v4538, 8
        %v4579 = vand.u32 %v4578, 65535
        %v4580 = vshrl.u32 %v4578, 16
        %v4581 = vand.u32 %v4577, 65535
        %v4582 = vshrl.u32 %v4577, 16
        %v4583 = vmul.u32 %v4579, %v4581
        %v4584 = vmul.u32 %v4579, %v4582
        %v4585 = vmul.u32 %v4580, %v4581
        %v4586 = vmul.u32 %v4580, %v4582
        %v4587 = vshll.u32 %v4584, 16
        %v4588 = vshrl.u32 %v4584, 16
        %v4589 = vshll.u32 %v4585, 16
        %v4590 = vshrl.u32 %v4585, 16
        %vm4591 = vc.u32 %v4583, %v4587
        %v4592 = vsel %vm4591, 1, 0
        %v4593 = vadd.s32 %v4583, %v4587
        %v4594 = vadd.s32 %v4586, %v4592
        %vm4595 = vc.u32 %v4593, %v4589
        %v4596 = vsel %vm4595, 1, 0
        %v4597 = vadd.s32 %v4593, %v4589
        %v4598 = vadd.s32 %v4594, %v4596
        %v4599 = vadd.s32 %v4598, %v4588
        %v4600 = vadd.s32 %v4599, %v4590
        %v4601 = vand.u32 %v4578, 65535
        %v4602 = vshrl.u32 %v4578, 16
        %v4603 = vand.u32 %v4573, 65535
        %v4604 = vshrl.u32 %v4573, 16
        %v4605 = vmul.u32 %v4601, %v4603
        %v4606 = vmul.u32 %v4601, %v4604
        %v4607 = vmul.u32 %v4602, %v4603
        %v4608 = vmul.u32 %v4602, %v4604
        %v4609 = vshll.u32 %v4606, 16
        %v4610 = vshrl.u32 %v4606, 16
        %v4611 = vshll.u32 %v4607, 16
        %v4612 = vshrl.u32 %v4607, 16
        %vm4613 = vc.u32 %v4605, %v4609
        %v4614 = vsel %vm4613, 1, 0
        %v4615 = vadd.s32 %v4605, %v4609
        %v4616 = vadd.s32 %v4608, %v4614
        %vm4617 = vc.u32 %v4615, %v4611
        %v4618 = vsel %vm4617, 1, 0
        %v4619 = vadd.s32 %v4615, %v4611
        %v4620 = vadd.s32 %v4616, %v4618
        %v4621 = vadd.s32 %v4620, %v4610
        %v4622 = vadd.s32 %v4621, %v4612
        %v4623 = vmul.u32 %v4578, %v4569
        %v4624 = vadd.s32 %v4600, %v4619
        %vm4625 = vc.u32 %v4600, %v4619
        %v4626 = vadd.s32 %v4622, 1
        %v4627 = vsel %vm4625, %v4626, %v4622
        %v4628 = vadd.s32 %v4623, %v4627
        %v4629 = vadd.s32 %v4628, 536870912
        %v4630 = vshrl.u32 %v4629, 30
        %v4631 = vshll.u32 %v4630, 30
        %v4632 = vsub.s32 %v4628, %v4631
        %vm4633 = vcmp.lt.s32.totalorder %v4632, 0
        %v4634 = vsub.s32 0, %v4632
        %v4635 = vsel %vm4633, %v4634, %v4632
        %v4636 = vclz %v4635
        %v4637 = vsub.s32 %v4636, 2
        %vm4638 = vcmp.gt.s32.totalorder 0, %v4637
        %v4639 = vsel %vm4638, 0, %v4637
        %v4640 = vsub.s32 32, %v4639
        %v4641 = vshll.u32 %v4632, %v4639
        %v4642 = vshrl.u32 %v4624, %v4640
        %v4643 = vor.u32 %v4641, %v4642
        %v4644 = vsub.s32 4294967266, %v4639
        %v4645 = vadd.s32 %v4644, 127
        %v4646 = vshll.u32 %v4645, 23
        %v4647 = vor.u32 4788187, %v4646
        %v4648 = vand.u32 2147483647, %v4647
        %v4650 = vcvt.s32.f32 %v4643
        %v4651 = vmul.f32 %v4650, %v4648
        %v4652 = vxor.u32 %v4651, 2147483648
        %v4653 = vsel %vm4532, %v4652, %v4651
        %v4654 = vsub.s32 4, %v4630
        %v4655 = vsel %vm4532, %v4654, %v4630
        %v4656 = vsel %vm4531, %v340, %v4653
        %v4657 = vsel %vm4531, 0, %v4655
        %v4658 = vmul.f32 %v4656, %v4656
        %v4659 = vmul.f32 %v4658, -0.001358992
        %v4660 = vadd.f32 %v4659, 0.041655596
        %v4661 = vmul.f32 %v4658, %v4660
        %v4662 = vadd.f32 %v4661, -0.4999988
        %v4663 = vmul.f32 %v4658, %v4662
        %v4664 = vadd.f32 1.0, %v4663
        %v4665 = vmul.f32 %v4656, %v4656
        %v4666 = vmul.f32 %v4665, -0.00019511016
        %v4667 = vadd.f32 %v4666, 0.008332121
        %v4668 = vmul.f32 %v4665, %v4667
        %v4669 = vadd.f32 %v4668, -0.16666654
        %v4670 = vmul.f32 %v4665, %v4669
        %v4671 = vadd.f32 %v4670, 1.0
        %v4672 = vmul.f32 %v4671, %v4656
        %vm4673 = vweird.f32 %v340
        %v4674 = vadd.s32 %v4657, 3
        %v4675 = vand.u32 %v4674, 3
        %vm4676 = vcmp.lt.s32.totalorder %v4675, 2
        %vm4677 = vcmp.eq.s32.totalorder %v4675, 0
        %v4678 = vxor.u32 %v4672, 2147483648
        %v4679 = vsel %vm4677, %v4664, %v4678
        %vm4680 = vcmp.eq.s32.totalorder %v4675, 2
        %v4681 = vxor.u32 %v4664, 2147483648
        %v4682 = vsel %vm4680, %v4681, %v4672
        %v4683 = vsel %vm4676, %v4679, %v4682
        %v4684 = vsel %vm4673, nan, %v4683
        %v4685 = vand.u32 2147483647, %v341
        %vm4686 = vcmp.le.f32.partialorder %v4685, 0.7853982
        %vm4687 = vcmp.lt.s32.totalorder %v341, 0
        %v4688 = vand.u32 %v341, 2139095040
        %v4689 = vshrl.u32 %v4688, 23
        %v4690 = vsub.s32 %v4689, 127
        %v4691 = vand.u32 2147483647, %v341
        %v4692 = vand.u32 %v4691, 8388607
        %v4693 = vor.u32 %v4692, 8388608
        %v4694 = vsub.s32 0, %v4693
        %v4695 = vadd.s32 %v4690, 1
        %vm4696 = vcmp.gt.s32.totalorder %v4695, 0
        %v4697 = vsel %vm4696, %v4695, 0
        %v4698 = vshrl.u32 %v4697, 5
        %v4699 = vand.u32 %v4697, 31
        %v4700 = vsub.s32 32, %v4699
        %v4701 = vshrl.u32 683565275, %v4700
        %v4702 = vshll.u32 683565275, %v4699
        %v4703 = vshrl.u32 2475754826, %v4700
        %v4704 = vor.u32 %v4702, %v4703
        %v4705 = vshll.u32 2475754826, %v4699
        %v4706 = vshrl.u32 2131351028, %v4700
        %v4707 = vor.u32 %v4705, %v4706
        %v4708 = vshll.u32 2131351028, %v4699
        %v4709 = vshrl.u32 2102212464, %v4700
        %v4710 = vor.u32 %v4708, %v4709
        %v4711 = vshll.u32 2102212464, %v4699
        %v4712 = vshrl.u32 920167782, %v4700
        %v4713 = vor.u32 %v4711, %v4712
        %v4714 = vshll.u32 920167782, %v4699
        %v4715 = vshrl.u32 1326507024, %v4700
        %v4716 = vor.u32 %v4714, %v4715
        %vm4717 = vcmp.lt.s32.totalorder %v4698, 1
        %vm4718 = vcmp.lt.s32.totalorder %v4698, 2
        %vm4719 = vcmp.lt.s32.totalorder %v4698, 3
        %vm4720 = vcmp.lt.s32.totalorder %v4698, 4
        %v4721 = vsel %vm4717, %v4701, %v4704
        %v4722 = vsel %vm4720, %v4710, 2102212464
        %v4723 = vsel %vm4719, %v4707, %v4722
        %v4724 = vsel %vm4718, %v4721, %v4723
        %v4725 = vsel %vm4717, %v4704, %v4707
        %v4726 = vsel %vm4720, %v4713, 920167782
        %v4727 = vsel %vm4719, %v4710, %v4726
        %v4728 = vsel %vm4718, %v4725, %v4727
        %v4729 = vsel %vm4717, %v4707, %v4710
        %v4730 = vsel %vm4720, %v4716, 1326507024
        %v4731 = vsel %vm4719, %v4713, %v4730
        %v4732 = vsel %vm4718, %v4729, %v4731
        %v4733 = vshll.u32 %v4693, 8
        %v4734 = vand.u32 %v4733, 65535
        %v4735 = vshrl.u32 %v4733, 16
        %v4736 = vand.u32 %v4732, 65535
        %v4737 = vshrl.u32 %v4732, 16
        %v4738 = vmul.u32 %v4734, %v4736
        %v4739 = vmul.u32 %v4734, %v4737
        %v4740 = vmul.u32 %v4735, %v4736
        %v4741 = vmul.u32 %v4735, %v4737
        %v4742 = vshll.u32 %v4739, 16
        %v4743 = vshrl.u32 %v4739, 16
        %v4744 = vshll.u32 %v4740, 16
        %v4745 = vshrl.u32 %v4740, 16
        %vm4746 = vc.u32 %v4738, %v4742
        %v4747 = vsel %vm4746, 1, 0
        %v4748 = vadd.s32 %v4738, %v4742
        %v4749 = vadd.s32 %v4741, %v4747
        %vm4750 = vc.u32 %v4748, %v4744
        %v4751 = vsel %vm4750, 1, 0
        %v4752 = vadd.s32 %v4748, %v4744
        %v4753 = vadd.s32 %v4749, %v4751
        %v4754 = vadd.s32 %v4753, %v4743
        %v4755 = vadd.s32 %v4754, %v4745
        %v4756 = vand.u32 %v4733, 65535
        %v4757 = vshrl.u32 %v4733, 16
        %v4758 = vand.u32 %v4728, 65535
        %v4759 = vshrl.u32 %v4728, 16
        %v4760 = vmul.u32 %v4756, %v4758
        %v4761 = vmul.u32 %v4756, %v4759
        %v4762 = vmul.u32 %v4757, %v4758
        %v4763 = vmul.u32 %v4757, %v4759
        %v4764 = vshll.u32 %v4761, 16
        %v4765 = vshrl.u32 %v4761, 16
        %v4766 = vshll.u32 %v4762, 16
        %v4767 = vshrl.u32 %v4762, 16
        %vm4768 = vc.u32 %v4760, %v4764
        %v4769 = vsel %vm4768, 1, 0
        %v4770 = vadd.s32 %v4760, %v4764
        %v4771 = vadd.s32 %v4763, %v4769
        %vm4772 = vc.u32 %v4770, %v4766
        %v4773 = vsel %vm4772, 1, 0
        %v4774 = vadd.s32 %v4770, %v4766
        %v4775 = vadd.s32 %v4771, %v4773
        %v4776 = vadd.s32 %v4775, %v4765
        %v4777 = vadd.s32 %v4776, %v4767
        %v4778 = vmul.u32 %v4733, %v4724
        %v4779 = vadd.s32 %v4755, %v4774
        %vm4780 = vc.u32 %v4755, %v4774
        %v4781 = vadd.s32 %v4777, 1
        %v4782 = vsel %vm4780, %v4781, %v4777
        %v4783 = vadd.s32 %v4778, %v4782
        %v4784 = vadd.s32 %v4783, 536870912
        %v4785 = vshrl.u32 %v4784, 30
        %v4786 = vshll.u32 %v4785, 30
        %v4787 = vsub.s32 %v4783, %v4786
        %vm4788 = vcmp.lt.s32.totalorder %v4787, 0
        %v4789 = vsub.s32 0, %v4787
        %v4790 = vsel %vm4788, %v4789, %v4787
        %v4791 = vclz %v4790
        %v4792 = vsub.s32 %v4791, 2
        %vm4793 = vcmp.gt.s32.totalorder 0, %v4792
        %v4794 = vsel %vm4793, 0, %v4792
        %v4795 = vsub.s32 32, %v4794
        %v4796 = vshll.u32 %v4787, %v4794
        %v4797 = vshrl.u32 %v4779, %v4795
        %v4798 = vor.u32 %v4796, %v4797
        %v4799 = vsub.s32 4294967266, %v4794
        %v4800 = vadd.s32 %v4799, 127
        %v4801 = vshll.u32 %v4800, 23
        %v4802 = vor.u32 4788187, %v4801
        %v4803 = vand.u32 2147483647, %v4802
        %v4805 = vcvt.s32.f32 %v4798
        %v4806 = vmul.f32 %v4805, %v4803
        %v4807 = vxor.u32 %v4806, 2147483648
        %v4808 = vsel %vm4687, %v4807, %v4806
        %v4809 = vsub.s32 4, %v4785
        %v4810 = vsel %vm4687, %v4809, %v4785
        %v4811 = vsel %vm4686, %v341, %v4808
        %v4812 = vsel %vm4686, 0, %v4810
        %v4813 = vmul.f32 %v4811, %v4811
        %v4814 = vmul.f32 %v4813, -0.001358992
        %v4815 = vadd.f32 %v4814, 0.041655596
        %v4816 = vmul.f32 %v4813, %v4815
        %v4817 = vadd.f32 %v4816, -0.4999988
        %v4818 = vmul.f32 %v4813, %v4817
        %v4819 = vadd.f32 1.0, %v4818
        %v4820 = vmul.f32 %v4811, %v4811
        %v4821 = vmul.f32 %v4820, -0.00019511016
        %v4822 = vadd.f32 %v4821, 0.008332121
        %v4823 = vmul.f32 %v4820, %v4822
        %v4824 = vadd.f32 %v4823, -0.16666654
        %v4825 = vmul.f32 %v4820, %v4824
        %v4826 = vadd.f32 %v4825, 1.0
        %v4827 = vmul.f32 %v4826, %v4811
        %vm4828 = vweird.f32 %v341
        %v4829 = vadd.s32 %v4812, 3
        %v4830 = vand.u32 %v4829, 3
        %vm4831 = vcmp.lt.s32.totalorder %v4830, 2
        %vm4832 = vcmp.eq.s32.totalorder %v4830, 0
        %v4833 = vxor.u32 %v4827, 2147483648
        %v4834 = vsel %vm4832, %v4819, %v4833
        %vm4835 = vcmp.eq.s32.totalorder %v4830, 2
        %v4836 = vxor.u32 %v4819, 2147483648
        %v4837 = vsel %vm4835, %v4836, %v4827
        %v4838 = vsel %vm4831, %v4834, %v4837
        %v4839 = vsel %vm4828, nan, %v4838
        %v4840 = vand.u32 2147483647, %v342
        %vm4841 = vcmp.le.f32.partialorder %v4840, 0.7853982
        %vm4842 = vcmp.lt.s32.totalorder %v342, 0
        %v4843 = vand.u32 %v342, 2139095040
        %v4844 = vshrl.u32 %v4843, 23
        %v4845 = vsub.s32 %v4844, 127
        %v4846 = vand.u32 2147483647, %v342
        %v4847 = vand.u32 %v4846, 8388607
        %v4848 = vor.u32 %v4847, 8388608
        %v4849 = vsub.s32 0, %v4848
        %v4850 = vadd.s32 %v4845, 1
        %vm4851 = vcmp.gt.s32.totalorder %v4850, 0
        %v4852 = vsel %vm4851, %v4850, 0
        %v4853 = vshrl.u32 %v4852, 5
        %v4854 = vand.u32 %v4852, 31
        %v4855 = vsub.s32 32, %v4854
        %v4856 = vshrl.u32 683565275, %v4855
        %v4857 = vshll.u32 683565275, %v4854
        %v4858 = vshrl.u32 2475754826, %v4855
        %v4859 = vor.u32 %v4857, %v4858
        %v4860 = vshll.u32 2475754826, %v4854
        %v4861 = vshrl.u32 2131351028, %v4855
        %v4862 = vor.u32 %v4860, %v4861
        %v4863 = vshll.u32 2131351028, %v4854
        %v4864 = vshrl.u32 2102212464, %v4855
        %v4865 = vor.u32 %v4863, %v4864
        %v4866 = vshll.u32 2102212464, %v4854
        %v4867 = vshrl.u32 920167782, %v4855
        %v4868 = vor.u32 %v4866, %v4867
        %v4869 = vshll.u32 920167782, %v4854
        %v4870 = vshrl.u32 1326507024, %v4855
        %v4871 = vor.u32 %v4869, %v4870
        %vm4872 = vcmp.lt.s32.totalorder %v4853, 1
        %vm4873 = vcmp.lt.s32.totalorder %v4853, 2
        %vm4874 = vcmp.lt.s32.totalorder %v4853, 3
        %vm4875 = vcmp.lt.s32.totalorder %v4853, 4
        %v4876 = vsel %vm4872, %v4856, %v4859
        %v4877 = vsel %vm4875, %v4865, 2102212464
        %v4878 = vsel %vm4874, %v4862, %v4877
        %v4879 = vsel %vm4873, %v4876, %v4878
        %v4880 = vsel %vm4872, %v4859, %v4862
        %v4881 = vsel %vm4875, %v4868, 920167782
        %v4882 = vsel %vm4874, %v4865, %v4881
        %v4883 = vsel %vm4873, %v4880, %v4882
        %v4884 = vsel %vm4872, %v4862, %v4865
        %v4885 = vsel %vm4875, %v4871, 1326507024
        %v4886 = vsel %vm4874, %v4868, %v4885
        %v4887 = vsel %vm4873, %v4884, %v4886
        %v4888 = vshll.u32 %v4848, 8
        %v4889 = vand.u32 %v4888, 65535
        %v4890 = vshrl.u32 %v4888, 16
        %v4891 = vand.u32 %v4887, 65535
        %v4892 = vshrl.u32 %v4887, 16
        %v4893 = vmul.u32 %v4889, %v4891
        %v4894 = vmul.u32 %v4889, %v4892
        %v4895 = vmul.u32 %v4890, %v4891
        %v4896 = vmul.u32 %v4890, %v4892
        %v4897 = vshll.u32 %v4894, 16
        %v4898 = vshrl.u32 %v4894, 16
        %v4899 = vshll.u32 %v4895, 16
        %v4900 = vshrl.u32 %v4895, 16
        %vm4901 = vc.u32 %v4893, %v4897
        %v4902 = vsel %vm4901, 1, 0
        %v4903 = vadd.s32 %v4893, %v4897
        %v4904 = vadd.s32 %v4896, %v4902
        %vm4905 = vc.u32 %v4903, %v4899
        %v4906 = vsel %vm4905, 1, 0
        %v4907 = vadd.s32 %v4903, %v4899
        %v4908 = vadd.s32 %v4904, %v4906
        %v4909 = vadd.s32 %v4908, %v4898
        %v4910 = vadd.s32 %v4909, %v4900
        %v4911 = vand.u32 %v4888, 65535
        %v4912 = vshrl.u32 %v4888, 16
        %v4913 = vand.u32 %v4883, 65535
        %v4914 = vshrl.u32 %v4883, 16
        %v4915 = vmul.u32 %v4911, %v4913
        %v4916 = vmul.u32 %v4911, %v4914
        %v4917 = vmul.u32 %v4912, %v4913
        %v4918 = vmul.u32 %v4912, %v4914
        %v4919 = vshll.u32 %v4916, 16
        %v4920 = vshrl.u32 %v4916, 16
        %v4921 = vshll.u32 %v4917, 16
        %v4922 = vshrl.u32 %v4917, 16
        %vm4923 = vc.u32 %v4915, %v4919
        %v4924 = vsel %vm4923, 1, 0
        %v4925 = vadd.s32 %v4915, %v4919
        %v4926 = vadd.s32 %v4918, %v4924
        %vm4927 = vc.u32 %v4925, %v4921
        %v4928 = vsel %vm4927, 1, 0
        %v4929 = vadd.s32 %v4925, %v4921
        %v4930 = vadd.s32 %v4926, %v4928
        %v4931 = vadd.s32 %v4930, %v4920
        %v4932 = vadd.s32 %v4931, %v4922
        %v4933 = vmul.u32 %v4888, %v4879
        %v4934 = vadd.s32 %v4910, %v4929
        %vm4935 = vc.u32 %v4910, %v4929
        %v4936 = vadd.s32 %v4932, 1
        %v4937 = vsel %vm4935, %v4936, %v4932
        %v4938 = vadd.s32 %v4933, %v4937
        %v4939 = vadd.s32 %v4938, 536870912
        %v4940 = vshrl.u32 %v4939, 30
        %v4941 = vshll.u32 %v4940, 30
        %v4942 = vsub.s32 %v4938, %v4941
        %vm4943 = vcmp.lt.s32.totalorder %v4942, 0
        %v4944 = vsub.s32 0, %v4942
        %v4945 = vsel %vm4943, %v4944, %v4942
        %v4946 = vclz %v4945
        %v4947 = vsub.s32 %v4946, 2
        %vm4948 = vcmp.gt.s32.totalorder 0, %v4947
        %v4949 = vsel %vm4948, 0, %v4947
        %v4950 = vsub.s32 32, %v4949
        %v4951 = vshll.u32 %v4942, %v4949
        %v4952 = vshrl.u32 %v4934, %v4950
        %v4953 = vor.u32 %v4951, %v4952
        %v4954 = vsub.s32 4294967266, %v4949
        %v4955 = vadd.s32 %v4954, 127
        %v4956 = vshll.u32 %v4955, 23
        %v4957 = vor.u32 4788187, %v4956
        %v4958 = vand.u32 2147483647, %v4957
        %v4960 = vcvt.s32.f32 %v4953
        %v4961 = vmul.f32 %v4960, %v4958
        %v4962 = vxor.u32 %v4961, 2147483648
        %v4963 = vsel %vm4842, %v4962, %v4961
        %v4964 = vsub.s32 4, %v4940
        %v4965 = vsel %vm4842, %v4964, %v4940
        %v4966 = vsel %vm4841, %v342, %v4963
        %v4967 = vsel %vm4841, 0, %v4965
        %v4968 = vmul.f32 %v4966, %v4966
        %v4969 = vmul.f32 %v4968, -0.001358992
        %v4970 = vadd.f32 %v4969, 0.041655596
        %v4971 = vmul.f32 %v4968, %v4970
        %v4972 = vadd.f32 %v4971, -0.4999988
        %v4973 = vmul.f32 %v4968, %v4972
        %v4974 = vadd.f32 1.0, %v4973
        %v4975 = vmul.f32 %v4966, %v4966
        %v4976 = vmul.f32 %v4975, -0.00019511016
        %v4977 = vadd.f32 %v4976, 0.008332121
        %v4978 = vmul.f32 %v4975, %v4977
        %v4979 = vadd.f32 %v4978, -0.16666654
        %v4980 = vmul.f32 %v4975, %v4979
        %v4981 = vadd.f32 %v4980, 1.0
        %v4982 = vmul.f32 %v4981, %v4966
        %vm4983 = vweird.f32 %v342
        %v4984 = vadd.s32 %v4967, 3
        %v4985 = vand.u32 %v4984, 3
        %vm4986 = vcmp.lt.s32.totalorder %v4985, 2
        %vm4987 = vcmp.eq.s32.totalorder %v4985, 0
        %v4988 = vxor.u32 %v4982, 2147483648
        %v4989 = vsel %vm4987, %v4974, %v4988
        %vm4990 = vcmp.eq.s32.totalorder %v4985, 2
        %v4991 = vxor.u32 %v4974, 2147483648
        %v4992 = vsel %vm4990, %v4991, %v4982
        %v4993 = vsel %vm4986, %v4989, %v4992
        %v4994 = vsel %vm4983, nan, %v4993
        %v4995 = vand.u32 2147483647, %v343
        %vm4996 = vcmp.le.f32.partialorder %v4995, 0.7853982
        %vm4997 = vcmp.lt.s32.totalorder %v343, 0
        %v4998 = vand.u32 %v343, 2139095040
        %v4999 = vshrl.u32 %v4998, 23
        %v5000 = vsub.s32 %v4999, 127
        %v5001 = vand.u32 2147483647, %v343
        %v5002 = vand.u32 %v5001, 8388607
        %v5003 = vor.u32 %v5002, 8388608
        %v5004 = vsub.s32 0, %v5003
        %v5005 = vadd.s32 %v5000, 1
        %vm5006 = vcmp.gt.s32.totalorder %v5005, 0
        %v5007 = vsel %vm5006, %v5005, 0
        %v5008 = vshrl.u32 %v5007, 5
        %v5009 = vand.u32 %v5007, 31
        %v5010 = vsub.s32 32, %v5009
        %v5011 = vshrl.u32 683565275, %v5010
        %v5012 = vshll.u32 683565275, %v5009
        %v5013 = vshrl.u32 2475754826, %v5010
        %v5014 = vor.u32 %v5012, %v5013
        %v5015 = vshll.u32 2475754826, %v5009
        %v5016 = vshrl.u32 2131351028, %v5010
        %v5017 = vor.u32 %v5015, %v5016
        %v5018 = vshll.u32 2131351028, %v5009
        %v5019 = vshrl.u32 2102212464, %v5010
        %v5020 = vor.u32 %v5018, %v5019
        %v5021 = vshll.u32 2102212464, %v5009
        %v5022 = vshrl.u32 920167782, %v5010
        %v5023 = vor.u32 %v5021, %v5022
        %v5024 = vshll.u32 920167782, %v5009
        %v5025 = vshrl.u32 1326507024, %v5010
        %v5026 = vor.u32 %v5024, %v5025
        %vm5027 = vcmp.lt.s32.totalorder %v5008, 1
        %vm5028 = vcmp.lt.s32.totalorder %v5008, 2
        %vm5029 = vcmp.lt.s32.totalorder %v5008, 3
        %vm5030 = vcmp.lt.s32.totalorder %v5008, 4
        %v5031 = vsel %vm5027, %v5011, %v5014
        %v5032 = vsel %vm5030, %v5020, 2102212464
        %v5033 = vsel %vm5029, %v5017, %v5032
        %v5034 = vsel %vm5028, %v5031, %v5033
        %v5035 = vsel %vm5027, %v5014, %v5017
        %v5036 = vsel %vm5030, %v5023, 920167782
        %v5037 = vsel %vm5029, %v5020, %v5036
        %v5038 = vsel %vm5028, %v5035, %v5037
        %v5039 = vsel %vm5027, %v5017, %v5020
        %v5040 = vsel %vm5030, %v5026, 1326507024
        %v5041 = vsel %vm5029, %v5023, %v5040
        %v5042 = vsel %vm5028, %v5039, %v5041
        %v5043 = vshll.u32 %v5003, 8
        %v5044 = vand.u32 %v5043, 65535
        %v5045 = vshrl.u32 %v5043, 16
        %v5046 = vand.u32 %v5042, 65535
        %v5047 = vshrl.u32 %v5042, 16
        %v5048 = vmul.u32 %v5044, %v5046
        %v5049 = vmul.u32 %v5044, %v5047
        %v5050 = vmul.u32 %v5045, %v5046
        %v5051 = vmul.u32 %v5045, %v5047
        %v5052 = vshll.u32 %v5049, 16
        %v5053 = vshrl.u32 %v5049, 16
        %v5054 = vshll.u32 %v5050, 16
        %v5055 = vshrl.u32 %v5050, 16
        %vm5056 = vc.u32 %v5048, %v5052
        %v5057 = vsel %vm5056, 1, 0
        %v5058 = vadd.s32 %v5048, %v5052
        %v5059 = vadd.s32 %v5051, %v5057
        %vm5060 = vc.u32 %v5058, %v5054
        %v5061 = vsel %vm5060, 1, 0
        %v5062 = vadd.s32 %v5058, %v5054
        %v5063 = vadd.s32 %v5059, %v5061
        %v5064 = vadd.s32 %v5063, %v5053
        %v5065 = vadd.s32 %v5064, %v5055
        %v5066 = vand.u32 %v5043, 65535
        %v5067 = vshrl.u32 %v5043, 16
        %v5068 = vand.u32 %v5038, 65535
        %v5069 = vshrl.u32 %v5038, 16
        %v5070 = vmul.u32 %v5066, %v5068
        %v5071 = vmul.u32 %v5066, %v5069
        %v5072 = vmul.u32 %v5067, %v5068
        %v5073 = vmul.u32 %v5067, %v5069
        %v5074 = vshll.u32 %v5071, 16
        %v5075 = vshrl.u32 %v5071, 16
        %v5076 = vshll.u32 %v5072, 16
        %v5077 = vshrl.u32 %v5072, 16
        %vm5078 = vc.u32 %v5070, %v5074
        %v5079 = vsel %vm5078, 1, 0
        %v5080 = vadd.s32 %v5070, %v5074
        %v5081 = vadd.s32 %v5073, %v5079
        %vm5082 = vc.u32 %v5080, %v5076
        %v5083 = vsel %vm5082, 1, 0
        %v5084 = vadd.s32 %v5080, %v5076
        %v5085 = vadd.s32 %v5081, %v5083
        %v5086 = vadd.s32 %v5085, %v5075
        %v5087 = vadd.s32 %v5086, %v5077
        %v5088 = vmul.u32 %v5043, %v5034
        %v5089 = vadd.s32 %v5065, %v5084
        %vm5090 = vc.u32 %v5065, %v5084
        %v5091 = vadd.s32 %v5087, 1
        %v5092 = vsel %vm5090, %v5091, %v5087
        %v5093 = vadd.s32 %v5088, %v5092
        %v5094 = vadd.s32 %v5093, 536870912
        %v5095 = vshrl.u32 %v5094, 30
        %v5096 = vshll.u32 %v5095, 30
        %v5097 = vsub.s32 %v5093, %v5096
        %vm5098 = vcmp.lt.s32.totalorder %v5097, 0
        %v5099 = vsub.s32 0, %v5097
        %v5100 = vsel %vm5098, %v5099, %v5097
        %v5101 = vclz %v5100
        %v5102 = vsub.s32 %v5101, 2
        %vm5103 = vcmp.gt.s32.totalorder 0, %v5102
        %v5104 = vsel %vm5103, 0, %v5102
        %v5105 = vsub.s32 32, %v5104
        %v5106 = vshll.u32 %v5097, %v5104
        %v5107 = vshrl.u32 %v5089, %v5105
        %v5108 = vor.u32 %v5106, %v5107
        %v5109 = vsub.s32 4294967266, %v5104
        %v5110 = vadd.s32 %v5109, 127
        %v5111 = vshll.u32 %v5110, 23
        %v5112 = vor.u32 4788187, %v5111
        %v5113 = vand.u32 2147483647, %v5112
        %v5115 = vcvt.s32.f32 %v5108
        %v5116 = vmul.f32 %v5115, %v5113
        %v5117 = vxor.u32 %v5116, 2147483648
        %v5118 = vsel %vm4997, %v5117, %v5116
        %v5119 = vsub.s32 4, %v5095
        %v5120 = vsel %vm4997, %v5119, %v5095
        %v5121 = vsel %vm4996, %v343, %v5118
        %v5122 = vsel %vm4996, 0, %v5120
        %v5123 = vmul.f32 %v5121, %v5121
        %v5124 = vmul.f32 %v5123, -0.001358992
        %v5125 = vadd.f32 %v5124, 0.041655596
        %v5126 = vmul.f32 %v5123, %v5125
        %v5127 = vadd.f32 %v5126, -0.4999988
        %v5128 = vmul.f32 %v5123, %v5127
        %v5129 = vadd.f32 1.0, %v5128
        %v5130 = vmul.f32 %v5121, %v5121
        %v5131 = vmul.f32 %v5130, -0.00019511016
        %v5132 = vadd.f32 %v5131, 0.008332121
        %v5133 = vmul.f32 %v5130, %v5132
        %v5134 = vadd.f32 %v5133, -0.16666654
        %v5135 = vmul.f32 %v5130, %v5134
        %v5136 = vadd.f32 %v5135, 1.0
        %v5137 = vmul.f32 %v5136, %v5121
        %vm5138 = vweird.f32 %v343
        %v5139 = vadd.s32 %v5122, 3
        %v5140 = vand.u32 %v5139, 3
        %vm5141 = vcmp.lt.s32.totalorder %v5140, 2
        %vm5142 = vcmp.eq.s32.totalorder %v5140, 0
        %v5143 = vxor.u32 %v5137, 2147483648
        %v5144 = vsel %vm5142, %v5129, %v5143
        %vm5145 = vcmp.eq.s32.totalorder %v5140, 2
        %v5146 = vxor.u32 %v5129, 2147483648
        %v5147 = vsel %vm5145, %v5146, %v5137
        %v5148 = vsel %vm5141, %v5144, %v5147
        %v5149 = vsel %vm5138, nan, %v5148
        %v5150 = vand.u32 2147483647, %v344
        %vm5151 = vcmp.le.f32.partialorder %v5150, 0.7853982
        %vm5152 = vcmp.lt.s32.totalorder %v344, 0
        %v5153 = vand.u32 %v344, 2139095040
        %v5154 = vshrl.u32 %v5153, 23
        %v5155 = vsub.s32 %v5154, 127
        %v5156 = vand.u32 2147483647, %v344
        %v5157 = vand.u32 %v5156, 8388607
        %v5158 = vor.u32 %v5157, 8388608
        %v5159 = vsub.s32 0, %v5158
        %v5160 = vadd.s32 %v5155, 1
        %vm5161 = vcmp.gt.s32.totalorder %v5160, 0
        %v5162 = vsel %vm5161, %v5160, 0
        %v5163 = vshrl.u32 %v5162, 5
        %v5164 = vand.u32 %v5162, 31
        %v5165 = vsub.s32 32, %v5164
        %v5166 = vshrl.u32 683565275, %v5165
        %v5167 = vshll.u32 683565275, %v5164
        %v5168 = vshrl.u32 2475754826, %v5165
        %v5169 = vor.u32 %v5167, %v5168
        %v5170 = vshll.u32 2475754826, %v5164
        %v5171 = vshrl.u32 2131351028, %v5165
        %v5172 = vor.u32 %v5170, %v5171
        %v5173 = vshll.u32 2131351028, %v5164
        %v5174 = vshrl.u32 2102212464, %v5165
        %v5175 = vor.u32 %v5173, %v5174
        %v5176 = vshll.u32 2102212464, %v5164
        %v5177 = vshrl.u32 920167782, %v5165
        %v5178 = vor.u32 %v5176, %v5177
        %v5179 = vshll.u32 920167782, %v5164
        %v5180 = vshrl.u32 1326507024, %v5165
        %v5181 = vor.u32 %v5179, %v5180
        %vm5182 = vcmp.lt.s32.totalorder %v5163, 1
        %vm5183 = vcmp.lt.s32.totalorder %v5163, 2
        %vm5184 = vcmp.lt.s32.totalorder %v5163, 3
        %vm5185 = vcmp.lt.s32.totalorder %v5163, 4
        %v5186 = vsel %vm5182, %v5166, %v5169
        %v5187 = vsel %vm5185, %v5175, 2102212464
        %v5188 = vsel %vm5184, %v5172, %v5187
        %v5189 = vsel %vm5183, %v5186, %v5188
        %v5190 = vsel %vm5182, %v5169, %v5172
        %v5191 = vsel %vm5185, %v5178, 920167782
        %v5192 = vsel %vm5184, %v5175, %v5191
        %v5193 = vsel %vm5183, %v5190, %v5192
        %v5194 = vsel %vm5182, %v5172, %v5175
        %v5195 = vsel %vm5185, %v5181, 1326507024
        %v5196 = vsel %vm5184, %v5178, %v5195
        %v5197 = vsel %vm5183, %v5194, %v5196
        %v5198 = vshll.u32 %v5158, 8
        %v5199 = vand.u32 %v5198, 65535
        %v5200 = vshrl.u32 %v5198, 16
        %v5201 = vand.u32 %v5197, 65535
        %v5202 = vshrl.u32 %v5197, 16
        %v5203 = vmul.u32 %v5199, %v5201
        %v5204 = vmul.u32 %v5199, %v5202
        %v5205 = vmul.u32 %v5200, %v5201
        %v5206 = vmul.u32 %v5200, %v5202
        %v5207 = vshll.u32 %v5204, 16
        %v5208 = vshrl.u32 %v5204, 16
        %v5209 = vshll.u32 %v5205, 16
        %v5210 = vshrl.u32 %v5205, 16
        %vm5211 = vc.u32 %v5203, %v5207
        %v5212 = vsel %vm5211, 1, 0
        %v5213 = vadd.s32 %v5203, %v5207
        %v5214 = vadd.s32 %v5206, %v5212
        %vm5215 = vc.u32 %v5213, %v5209
        %v5216 = vsel %vm5215, 1, 0
        %v5217 = vadd.s32 %v5213, %v5209
        %v5218 = vadd.s32 %v5214, %v5216
        %v5219 = vadd.s32 %v5218, %v5208
        %v5220 = vadd.s32 %v5219, %v5210
        %v5221 = vand.u32 %v5198, 65535
        %v5222 = vshrl.u32 %v5198, 16
        %v5223 = vand.u32 %v5193, 65535
        %v5224 = vshrl.u32 %v5193, 16
        %v5225 = vmul.u32 %v5221, %v5223
        %v5226 = vmul.u32 %v5221, %v5224
        %v5227 = vmul.u32 %v5222, %v5223
        %v5228 = vmul.u32 %v5222, %v5224
        %v5229 = vshll.u32 %v5226, 16
        %v5230 = vshrl.u32 %v5226, 16
        %v5231 = vshll.u32 %v5227, 16
        %v5232 = vshrl.u32 %v5227, 16
        %vm5233 = vc.u32 %v5225, %v5229
        %v5234 = vsel %vm5233, 1, 0
        %v5235 = vadd.s32 %v5225, %v5229
        %v5236 = vadd.s32 %v5228, %v5234
        %vm5237 = vc.u32 %v5235, %v5231
        %v5238 = vsel %vm5237, 1, 0
        %v5239 = vadd.s32 %v5235, %v5231
        %v5240 = vadd.s32 %v5236, %v5238
        %v5241 = vadd.s32 %v5240, %v5230
        %v5242 = vadd.s32 %v5241, %v5232
        %v5243 = vmul.u32 %v5198, %v5189
        %v5244 = vadd.s32 %v5220, %v5239
        %vm5245 = vc.u32 %v5220, %v5239
        %v5246 = vadd.s32 %v5242, 1
        %v5247 = vsel %vm5245, %v5246, %v5242
        %v5248 = vadd.s32 %v5243, %v5247
        %v5249 = vadd.s32 %v5248, 536870912
        %v5250 = vshrl.u32 %v5249, 30
        %v5251 = vshll.u32 %v5250, 30
        %v5252 = vsub.s32 %v5248, %v5251
        %vm5253 = vcmp.lt.s32.totalorder %v5252, 0
        %v5254 = vsub.s32 0, %v5252
        %v5255 = vsel %vm5253, %v5254, %v5252
        %v5256 = vclz %v5255
        %v5257 = vsub.s32 %v5256, 2
        %vm5258 = vcmp.gt.s32.totalorder 0, %v5257
        %v5259 = vsel %vm5258, 0, %v5257
        %v5260 = vsub.s32 32, %v5259
        %v5261 = vshll.u32 %v5252, %v5259
        %v5262 = vshrl.u32 %v5244, %v5260
        %v5263 = vor.u32 %v5261, %v5262
        %v5264 = vsub.s32 4294967266, %v5259
        %v5265 = vadd.s32 %v5264, 127
        %v5266 = vshll.u32 %v5265, 23
        %v5267 = vor.u32 4788187, %v5266
        %v5268 = vand.u32 2147483647, %v5267
        %v5270 = vcvt.s32.f32 %v5263
        %v5271 = vmul.f32 %v5270, %v5268
        %v5272 = vxor.u32 %v5271, 2147483648
        %v5273 = vsel %vm5152, %v5272, %v5271
        %v5274 = vsub.s32 4, %v5250
        %v5275 = vsel %vm5152, %v5274, %v5250
        %v5276 = vsel %vm5151, %v344, %v5273
        %v5277 = vsel %vm5151, 0, %v5275
        %v5278 = vmul.f32 %v5276, %v5276
        %v5279 = vmul.f32 %v5278, -0.001358992
        %v5280 = vadd.f32 %v5279, 0.041655596
        %v5281 = vmul.f32 %v5278, %v5280
        %v5282 = vadd.f32 %v5281, -0.4999988
        %v5283 = vmul.f32 %v5278, %v5282
        %v5284 = vadd.f32 1.0, %v5283
        %v5285 = vmul.f32 %v5276, %v5276
        %v5286 = vmul.f32 %v5285, -0.00019511016
        %v5287 = vadd.f32 %v5286, 0.008332121
        %v5288 = vmul.f32 %v5285, %v5287
        %v5289 = vadd.f32 %v5288, -0.16666654
        %v5290 = vmul.f32 %v5285, %v5289
        %v5291 = vadd.f32 %v5290, 1.0
        %v5292 = vmul.f32 %v5291, %v5276
        %vm5293 = vweird.f32 %v344
        %v5294 = vadd.s32 %v5277, 3
        %v5295 = vand.u32 %v5294, 3
        %vm5296 = vcmp.lt.s32.totalorder %v5295, 2
        %vm5297 = vcmp.eq.s32.totalorder %v5295, 0
        %v5298 = vxor.u32 %v5292, 2147483648
        %v5299 = vsel %vm5297, %v5284, %v5298
        %vm5300 = vcmp.eq.s32.totalorder %v5295, 2
        %v5301 = vxor.u32 %v5284, 2147483648
        %v5302 = vsel %vm5300, %v5301, %v5292
        %v5303 = vsel %vm5296, %v5299, %v5302
        %v5304 = vsel %vm5293, nan, %v5303
        %v5305 = vpack.c.bf16 %v2979, %v2979
        %v5306 = vpack.c.bf16 %v3134, %v3134
        %v5307 = vpack.c.bf16 %v3289, %v3289
        %v5308 = vpack.c.bf16 %v3444, %v3444
        %v5309 = vpack.c.bf16 %v3599, %v3599
        %v5310 = vpack.c.bf16 %v3754, %v3754
        %v5311 = vpack.c.bf16 %v3909, %v3909
        %v5312 = vpack.c.bf16 %v4064, %v4064
        %v5313 = vpack.c.bf16 %v4219, %v4219
        %v5314 = vpack.c.bf16 %v4374, %v4374
        %v5315 = vpack.c.bf16 %v4529, %v4529
        %v5316 = vpack.c.bf16 %v4684, %v4684
        %v5317 = vpack.c.bf16 %v4839, %v4839
        %v5318 = vpack.c.bf16 %v4994, %v4994
        %v5319 = vpack.c.bf16 %v5149, %v5149
        %v5320 = vpack.c.bf16 %v5304, %v5304
        %v5337 = vunpack.c.l.b16 %v2809
        %v5338 = vunpack.c.l.b16 %v2810
        %v5339 = vunpack.c.l.b16 %v2811
        %v5340 = vunpack.c.l.b16 %v2812
        %v5341 = vunpack.c.l.b16 %v2813
        %v5342 = vunpack.c.l.b16 %v2814
        %v5343 = vunpack.c.l.b16 %v2815
        %v5344 = vunpack.c.l.b16 %v2816
        %v5345 = vunpack.c.l.b16 %v2817
        %v5346 = vunpack.c.l.b16 %v2818
        %v5347 = vunpack.c.l.b16 %v2819
        %v5348 = vunpack.c.l.b16 %v2820
        %v5349 = vunpack.c.l.b16 %v2821
        %v5350 = vunpack.c.l.b16 %v2822
        %v5351 = vunpack.c.l.b16 %v2823
        %v5352 = vunpack.c.l.b16 %v2824
        %v5353 = vpack.c.b16 %v5338, %v5337
        %v5354 = vpack.c.b16 %v5340, %v5339
        %v5355 = vpack.c.b16 %v5342, %v5341
        %v5356 = vpack.c.b16 %v5344, %v5343
        %v5357 = vpack.c.b16 %v5346, %v5345
        %v5358 = vpack.c.b16 %v5348, %v5347
        %v5359 = vpack.c.b16 %v5350, %v5349
        %v5360 = vpack.c.b16 %v5352, %v5351
        %v5385 = vunpack.c.l.b16 %v5305
        %v5386 = vunpack.c.l.b16 %v5306
        %v5387 = vunpack.c.l.b16 %v5307
        %v5388 = vunpack.c.l.b16 %v5308
        %v5389 = vunpack.c.l.b16 %v5309
        %v5390 = vunpack.c.l.b16 %v5310
        %v5391 = vunpack.c.l.b16 %v5311
        %v5392 = vunpack.c.l.b16 %v5312
        %v5393 = vunpack.c.l.b16 %v5313
        %v5394 = vunpack.c.l.b16 %v5314
        %v5395 = vunpack.c.l.b16 %v5315
        %v5396 = vunpack.c.l.b16 %v5316
        %v5397 = vunpack.c.l.b16 %v5317
        %v5398 = vunpack.c.l.b16 %v5318
        %v5399 = vunpack.c.l.b16 %v5319
        %v5400 = vunpack.c.l.b16 %v5320
        %v5401 = vpack.c.b16 %v5386, %v5385
        %v5402 = vpack.c.b16 %v5388, %v5387
        %v5403 = vpack.c.b16 %v5390, %v5389
        %v5404 = vpack.c.b16 %v5392, %v5391
        %v5405 = vpack.c.b16 %v5394, %v5393
        %v5406 = vpack.c.b16 %v5396, %v5395
        %v5407 = vpack.c.b16 %v5398, %v5397
        %v5408 = vpack.c.b16 %v5400, %v5399
        %v5417 = vld [vmem:[%s1] sm:$0xf]
        %v5418 = vld [vmem:[%s1 + $0x4] sm:$0xf]
        %v5419 = vld [vmem:[%s1 + $0x8] sm:$0xf]
        %v5420 = vld [vmem:[%s1 + $0xc] sm:$0xf]
        %v5421 = vld [vmem:[%s1 + $0x10] sm:$0xf]
        %v5422 = vld [vmem:[%s1 + $0x14] sm:$0xf]
        %v5423 = vld [vmem:[%s1 + $0x18] sm:$0xf]
        %v5424 = vld [vmem:[%s1 + $0x1c] sm:$0xf]
        %v5425 = vld [vmem:[%s1 + $0x20] sm:$0xf]
        %v5426 = vld [vmem:[%s1 + $0x24] sm:$0xf]
        %v5427 = vld [vmem:[%s1 + $0x28] sm:$0xf]
        %v5428 = vld [vmem:[%s1 + $0x2c] sm:$0xf]
        %v5429 = vld [vmem:[%s1 + $0x30] sm:$0xf]
        %v5430 = vld [vmem:[%s1 + $0x34] sm:$0xf]
        %v5431 = vld [vmem:[%s1 + $0x38] sm:$0xf]
        %v5432 = vld [vmem:[%s1 + $0x3c] sm:$0xf]
        %v5433 = vld [vmem:[%s1 + $0x40] sm:$0xf]
        %v5434 = vld [vmem:[%s1 + $0x44] sm:$0xf]
        %v5435 = vld [vmem:[%s1 + $0x48] sm:$0xf]
        %v5436 = vld [vmem:[%s1 + $0x4c] sm:$0xf]
        %v5437 = vld [vmem:[%s1 + $0x50] sm:$0xf]
        %v5438 = vld [vmem:[%s1 + $0x54] sm:$0xf]
        %v5439 = vld [vmem:[%s1 + $0x58] sm:$0xf]
        %v5440 = vld [vmem:[%s1 + $0x5c] sm:$0xf]
        %v5441 = vld [vmem:[%s1 + $0x60] sm:$0xf]
        %v5442 = vld [vmem:[%s1 + $0x64] sm:$0xf]
        %v5443 = vld [vmem:[%s1 + $0x68] sm:$0xf]
        %v5444 = vld [vmem:[%s1 + $0x6c] sm:$0xf]
        %v5445 = vld [vmem:[%s1 + $0x70] sm:$0xf]
        %v5446 = vld [vmem:[%s1 + $0x74] sm:$0xf]
        %v5447 = vld [vmem:[%s1 + $0x78] sm:$0xf]
        %v5448 = vld [vmem:[%s1 + $0x7c] sm:$0xf]
        %v5449 = vld [vmem:[%s2] sm:$0x1]
        %v5451 = vperm.slane %v5449, 0
        %v5485 = vunpack.c.l.b16 %v5417
        %v5486 = vunpack.c.l.b16 %v5418
        %v5487 = vunpack.c.l.b16 %v5419
        %v5488 = vunpack.c.l.b16 %v5420
        %v5489 = vunpack.c.l.b16 %v5421
        %v5490 = vunpack.c.l.b16 %v5422
        %v5491 = vunpack.c.l.b16 %v5423
        %v5492 = vunpack.c.l.b16 %v5424
        %v5493 = vunpack.c.l.b16 %v5425
        %v5494 = vunpack.c.l.b16 %v5426
        %v5495 = vunpack.c.l.b16 %v5427
        %v5496 = vunpack.c.l.b16 %v5428
        %v5497 = vunpack.c.l.b16 %v5429
        %v5498 = vunpack.c.l.b16 %v5430
        %v5499 = vunpack.c.l.b16 %v5431
        %v5500 = vunpack.c.l.b16 %v5432
        %v5501 = vunpack.c.l.b16 %v5433
        %v5502 = vunpack.c.l.b16 %v5434
        %v5503 = vunpack.c.l.b16 %v5435
        %v5504 = vunpack.c.l.b16 %v5436
        %v5505 = vunpack.c.l.b16 %v5437
        %v5506 = vunpack.c.l.b16 %v5438
        %v5507 = vunpack.c.l.b16 %v5439
        %v5508 = vunpack.c.l.b16 %v5440
        %v5509 = vunpack.c.l.b16 %v5441
        %v5510 = vunpack.c.l.b16 %v5442
        %v5511 = vunpack.c.l.b16 %v5443
        %v5512 = vunpack.c.l.b16 %v5444
        %v5513 = vunpack.c.l.b16 %v5445
        %v5514 = vunpack.c.l.b16 %v5446
        %v5515 = vunpack.c.l.b16 %v5447
        %v5516 = vunpack.c.l.b16 %v5448
        %v5517 = vpack.c.b16 %v5486, %v5485
        %v5518 = vpack.c.b16 %v5488, %v5487
        %v5519 = vpack.c.b16 %v5490, %v5489
        %v5520 = vpack.c.b16 %v5492, %v5491
        %v5521 = vpack.c.b16 %v5494, %v5493
        %v5522 = vpack.c.b16 %v5496, %v5495
        %v5523 = vpack.c.b16 %v5498, %v5497
        %v5524 = vpack.c.b16 %v5500, %v5499
        %v5525 = vpack.c.b16 %v5502, %v5501
        %v5526 = vpack.c.b16 %v5504, %v5503
        %v5527 = vpack.c.b16 %v5506, %v5505
        %v5528 = vpack.c.b16 %v5508, %v5507
        %v5529 = vpack.c.b16 %v5510, %v5509
        %v5530 = vpack.c.b16 %v5512, %v5511
        %v5531 = vpack.c.b16 %v5514, %v5513
        %v5532 = vpack.c.b16 %v5516, %v5515
        %5549 = vmatpush.bf16.msra.mxu0 %v5524
        %5550 = vmatpush.bf16.msra.mxu0 %v5523
        %5551 = vmatpush.bf16.msra.mxu0 %v5522
        %5552 = vmatpush.bf16.msra.mxu0 %v5521
        %5553 = vmatpush.bf16.msra.mxu0 %v5520
        %5554 = vmatpush.bf16.msra.mxu0 %v5519
        %5555 = vmatpush.bf16.msra.mxu0 %v5518
        %5556 = vmatpush.bf16.msra.mxu0 %v5517
        %5557 = vmatmul.bf16.gmra.mxu0 %v5353
        %v5558 = vpop.f32.mrf.mxu0
        %v5559 = vadd.f32 %v5451, %v5558
        %v5560 = vpop.f32.mrf.mxu0
        %v5561 = vadd.f32 %v5451, %v5560
        %5562 = vmatmul.bf16.gmra.mxu0 %v5354
        %v5563 = vpop.f32.mrf.mxu0
        %v5564 = vadd.f32 %v5451, %v5563
        %v5565 = vpop.f32.mrf.mxu0
        %v5566 = vadd.f32 %v5451, %v5565
        %5567 = vmatmul.bf16.gmra.mxu0 %v5355
        %v5568 = vpop.f32.mrf.mxu0
        %v5569 = vadd.f32 %v5451, %v5568
        %v5570 = vpop.f32.mrf.mxu0
        %v5571 = vadd.f32 %v5451, %v5570
        %5572 = vmatmul.bf16.gmra.mxu0 %v5356
        %v5573 = vpop.f32.mrf.mxu0
        %v5574 = vadd.f32 %v5451, %v5573
        %v5575 = vpop.f32.mrf.mxu0
        %v5576 = vadd.f32 %v5451, %v5575
        %5577 = vmatmul.bf16.gmra.mxu0 %v5357
        %v5578 = vpop.f32.mrf.mxu0
        %v5579 = vadd.f32 %v5451, %v5578
        %v5580 = vpop.f32.mrf.mxu0
        %v5581 = vadd.f32 %v5451, %v5580
        %5582 = vmatmul.bf16.gmra.mxu0 %v5358
        %v5583 = vpop.f32.mrf.mxu0
        %v5584 = vadd.f32 %v5451, %v5583
        %v5585 = vpop.f32.mrf.mxu0
        %v5586 = vadd.f32 %v5451, %v5585
        %5587 = vmatmul.bf16.gmra.mxu0 %v5359
        %v5588 = vpop.f32.mrf.mxu0
        %v5589 = vadd.f32 %v5451, %v5588
        %v5590 = vpop.f32.mrf.mxu0
        %v5591 = vadd.f32 %v5451, %v5590
        %5592 = vmatmul.bf16.gmra.mxu0 %v5360
        %v5593 = vpop.f32.mrf.mxu0
        %v5594 = vadd.f32 %v5451, %v5593
        %v5595 = vpop.f32.mrf.mxu0
        %v5596 = vadd.f32 %v5451, %v5595
        %5597 = vdwg.mxu0
        %5598 = vmatpush.bf16.msra.mxu0 %v5532
        %5599 = vmatpush.bf16.msra.mxu0 %v5531
        %5600 = vmatpush.bf16.msra.mxu0 %v5530
        %5601 = vmatpush.bf16.msra.mxu0 %v5529
        %5602 = vmatpush.bf16.msra.mxu0 %v5528
        %5603 = vmatpush.bf16.msra.mxu0 %v5527
        %5604 = vmatpush.bf16.msra.mxu0 %v5526
        %5605 = vmatpush.bf16.msra.mxu0 %v5525
        %5606 = vmatmul.bf16.gmra.mxu0 %v5401
        %v5607 = vpop.f32.mrf.mxu0
        %v5608 = vadd.f32 %v5559, %v5607
        %v5609 = vpop.f32.mrf.mxu0
        %v5610 = vadd.f32 %v5561, %v5609
        %5611 = vmatmul.bf16.gmra.mxu0 %v5402
        %v5612 = vpop.f32.mrf.mxu0
        %v5613 = vadd.f32 %v5564, %v5612
        %v5614 = vpop.f32.mrf.mxu0
        %v5615 = vadd.f32 %v5566, %v5614
        %5616 = vmatmul.bf16.gmra.mxu0 %v5403
        %v5617 = vpop.f32.mrf.mxu0
        %v5618 = vadd.f32 %v5569, %v5617
        %v5619 = vpop.f32.mrf.mxu0
        %v5620 = vadd.f32 %v5571, %v5619
        %5621 = vmatmul.bf16.gmra.mxu0 %v5404
        %v5622 = vpop.f32.mrf.mxu0
        %v5623 = vadd.f32 %v5574, %v5622
        %v5624 = vpop.f32.mrf.mxu0
        %v5625 = vadd.f32 %v5576, %v5624
        %5626 = vmatmul.bf16.gmra.mxu0 %v5405
        %v5627 = vpop.f32.mrf.mxu0
        %v5628 = vadd.f32 %v5579, %v5627
        %v5629 = vpop.f32.mrf.mxu0
        %v5630 = vadd.f32 %v5581, %v5629
        %5631 = vmatmul.bf16.gmra.mxu0 %v5406
        %v5632 = vpop.f32.mrf.mxu0
        %v5633 = vadd.f32 %v5584, %v5632
        %v5634 = vpop.f32.mrf.mxu0
        %v5635 = vadd.f32 %v5586, %v5634
        %5636 = vmatmul.bf16.gmra.mxu0 %v5407
        %v5637 = vpop.f32.mrf.mxu0
        %v5638 = vadd.f32 %v5589, %v5637
        %v5639 = vpop.f32.mrf.mxu0
        %v5640 = vadd.f32 %v5591, %v5639
        %5641 = vmatmul.bf16.gmra.mxu0 %v5408
        %v5642 = vpop.f32.mrf.mxu0
        %v5643 = vadd.f32 %v5594, %v5642
        %v5644 = vpop.f32.mrf.mxu0
        %v5645 = vadd.f32 %v5596, %v5644
        %5646 = vdwg.mxu0
        %v5647 = vsub.f32 0.0, %v5608
        %v5648 = vsub.f32 0.0, %v5610
        %v5649 = vsub.f32 0.0, %v5613
        %v5650 = vsub.f32 0.0, %v5615
        %v5651 = vsub.f32 0.0, %v5618
        %v5652 = vsub.f32 0.0, %v5620
        %v5653 = vsub.f32 0.0, %v5623
        %v5654 = vsub.f32 0.0, %v5625
        %v5655 = vsub.f32 0.0, %v5628
        %v5656 = vsub.f32 0.0, %v5630
        %v5657 = vsub.f32 0.0, %v5633
        %v5658 = vsub.f32 0.0, %v5635
        %v5659 = vsub.f32 0.0, %v5638
        %v5660 = vsub.f32 0.0, %v5640
        %v5661 = vsub.f32 0.0, %v5643
        %v5662 = vsub.f32 0.0, %v5645
        %v5663 = vmul.f32 %v5647, 1.442695
        %v5664 = vpow.pop %v5663
        %v5665 = vmul.f32 %v5648, 1.442695
        %v5666 = vpow.pop %v5665
        %v5667 = vmul.f32 %v5649, 1.442695
        %v5668 = vpow.pop %v5667
        %v5669 = vmul.f32 %v5650, 1.442695
        %v5670 = vpow.pop %v5669
        %v5671 = vmul.f32 %v5651, 1.442695
        %v5672 = vpow.pop %v5671
        %v5673 = vmul.f32 %v5652, 1.442695
        %v5674 = vpow.pop %v5673
        %v5675 = vmul.f32 %v5653, 1.442695
        %v5676 = vpow.pop %v5675
        %v5677 = vmul.f32 %v5654, 1.442695
        %v5678 = vpow.pop %v5677
        %v5679 = vmul.f32 %v5655, 1.442695
        %v5680 = vpow.pop %v5679
        %v5681 = vmul.f32 %v5656, 1.442695
        %v5682 = vpow.pop %v5681
        %v5683 = vmul.f32 %v5657, 1.442695
        %v5684 = vpow.pop %v5683
        %v5685 = vmul.f32 %v5658, 1.442695
        %v5686 = vpow.pop %v5685
        %v5687 = vmul.f32 %v5659, 1.442695
        %v5688 = vpow.pop %v5687
        %v5689 = vmul.f32 %v5660, 1.442695
        %v5690 = vpow.pop %v5689
        %v5691 = vmul.f32 %v5661, 1.442695
        %v5692 = vpow.pop %v5691
        %v5693 = vmul.f32 %v5662, 1.442695
        %v5694 = vpow.pop %v5693
        %v5695 = vadd.f32 %v5664, 1.0
        %v5696 = vadd.f32 %v5666, 1.0
        %v5697 = vadd.f32 %v5668, 1.0
        %v5698 = vadd.f32 %v5670, 1.0
        %v5699 = vadd.f32 %v5672, 1.0
        %v5700 = vadd.f32 %v5674, 1.0
        %v5701 = vadd.f32 %v5676, 1.0
        %v5702 = vadd.f32 %v5678, 1.0
        %v5703 = vadd.f32 %v5680, 1.0
        %v5704 = vadd.f32 %v5682, 1.0
        %v5705 = vadd.f32 %v5684, 1.0
        %v5706 = vadd.f32 %v5686, 1.0
        %v5707 = vadd.f32 %v5688, 1.0
        %v5708 = vadd.f32 %v5690, 1.0
        %v5709 = vadd.f32 %v5692, 1.0
        %v5710 = vadd.f32 %v5694, 1.0
        %v5711 = vrcp.pop %v5695
        %v5712 = vrcp.pop %v5696
        %v5713 = vrcp.pop %v5697
        %v5714 = vrcp.pop %v5698
        %v5715 = vrcp.pop %v5699
        %v5716 = vrcp.pop %v5700
        %v5717 = vrcp.pop %v5701
        %v5718 = vrcp.pop %v5702
        %v5719 = vrcp.pop %v5703
        %v5720 = vrcp.pop %v5704
        %v5721 = vrcp.pop %v5705
        %v5722 = vrcp.pop %v5706
        %v5723 = vrcp.pop %v5707
        %v5724 = vrcp.pop %v5708
        %v5725 = vrcp.pop %v5709
        %v5726 = vrcp.pop %v5710
        %v5727 = vmul.f32 %v5608, %v5711
        %v5728 = vmul.f32 %v5610, %v5712
        %v5729 = vmul.f32 %v5613, %v5713
        %v5730 = vmul.f32 %v5615, %v5714
        %v5731 = vmul.f32 %v5618, %v5715
        %v5732 = vmul.f32 %v5620, %v5716
        %v5733 = vmul.f32 %v5623, %v5717
        %v5734 = vmul.f32 %v5625, %v5718
        %v5735 = vmul.f32 %v5628, %v5719
        %v5736 = vmul.f32 %v5630, %v5720
        %v5737 = vmul.f32 %v5633, %v5721
        %v5738 = vmul.f32 %v5635, %v5722
        %v5739 = vmul.f32 %v5638, %v5723
        %v5740 = vmul.f32 %v5640, %v5724
        %v5741 = vmul.f32 %v5643, %v5725
        %v5742 = vmul.f32 %v5645, %v5726
        %v5743 = vld [vmem:[%s3] sm:$0xff]
        %v5744 = vld [vmem:[%s3 + $0x8] sm:$0xff]
        %v5745 = vld [vmem:[%s3 + $0x10] sm:$0xff]
        %v5746 = vld [vmem:[%s3 + $0x18] sm:$0xff]
        %v5747 = vld [vmem:[%s3 + $0x20] sm:$0xff]
        %v5748 = vld [vmem:[%s3 + $0x28] sm:$0xff]
        %v5749 = vld [vmem:[%s3 + $0x30] sm:$0xff]
        %v5750 = vld [vmem:[%s3 + $0x38] sm:$0xff]
        %v5751 = vld [vmem:[%s3 + $0x40] sm:$0xff]
        %v5752 = vld [vmem:[%s3 + $0x48] sm:$0xff]
        %v5753 = vld [vmem:[%s3 + $0x50] sm:$0xff]
        %v5754 = vld [vmem:[%s3 + $0x58] sm:$0xff]
        %v5755 = vld [vmem:[%s3 + $0x60] sm:$0xff]
        %v5756 = vld [vmem:[%s3 + $0x68] sm:$0xff]
        %v5757 = vld [vmem:[%s3 + $0x70] sm:$0xff]
        %v5758 = vld [vmem:[%s3 + $0x78] sm:$0xff]
        %v5759 = vld [vmem:[%s4] sm:$0x1]
        %v5761 = vperm.slane %v5759, 0
        %5763 = vmatpush.msra.mxu0 %v5758
        %5764 = vmatpush.msra.mxu0 %v5757
        %5765 = vmatpush.msra.mxu0 %v5756
        %5766 = vmatpush.msra.mxu0 %v5755
        %5767 = vmatpush.msra.mxu0 %v5754
        %5768 = vmatpush.msra.mxu0 %v5753
        %5769 = vmatpush.msra.mxu0 %v5752
        %5770 = vmatpush.msra.mxu0 %v5751
        %5771 = vmatpush.msra.mxu0 %v5750
        %5772 = vmatpush.msra.mxu0 %v5749
        %5773 = vmatpush.msra.mxu0 %v5748
        %5774 = vmatpush.msra.mxu0 %v5747
        %5775 = vmatpush.msra.mxu0 %v5746
        %5776 = vmatpush.msra.mxu0 %v5745
        %5777 = vmatpush.msra.mxu0 %v5744
        %5778 = vmatpush.msra.mxu0 %v5743
        %5779 = vmatmul.f32.gmra.mxu0 %v5727
        %v5780 = vpop.f32.mrf.mxu0
        %v5781 = vadd.f32 %v5761, %v5780
        %5782 = vmatmul.f32.gmra.mxu0 %v5728
        %v5783 = vpop.f32.mrf.mxu0
        %v5784 = vadd.f32 %v5761, %v5783
        %5785 = vmatmul.f32.gmra.mxu0 %v5729
        %v5786 = vpop.f32.mrf.mxu0
        %v5787 = vadd.f32 %v5761, %v5786
        %5788 = vmatmul.f32.gmra.mxu0 %v5730
        %v5789 = vpop.f32.mrf.mxu0
        %v5790 = vadd.f32 %v5761, %v5789
        %5791 = vmatmul.f32.gmra.mxu0 %v5731
        %v5792 = vpop.f32.mrf.mxu0
        %v5793 = vadd.f32 %v5761, %v5792
        %5794 = vmatmul.f32.gmra.mxu0 %v5732
        %v5795 = vpop.f32.mrf.mxu0
        %v5796 = vadd.f32 %v5761, %v5795
        %5797 = vmatmul.f32.gmra.mxu0 %v5733
        %v5798 = vpop.f32.mrf.mxu0
        %v5799 = vadd.f32 %v5761, %v5798
        %5800 = vmatmul.f32.gmra.mxu0 %v5734
        %v5801 = vpop.f32.mrf.mxu0
        %v5802 = vadd.f32 %v5761, %v5801
        %5803 = vmatmul.f32.gmra.mxu0 %v5735
        %v5804 = vpop.f32.mrf.mxu0
        %v5805 = vadd.f32 %v5761, %v5804
        %5806 = vmatmul.f32.gmra.mxu0 %v5736
        %v5807 = vpop.f32.mrf.mxu0
        %v5808 = vadd.f32 %v5761, %v5807
        %5809 = vmatmul.f32.gmra.mxu0 %v5737
        %v5810 = vpop.f32.mrf.mxu0
        %v5811 = vadd.f32 %v5761, %v5810
        %5812 = vmatmul.f32.gmra.mxu0 %v5738
        %v5813 = vpop.f32.mrf.mxu0
        %v5814 = vadd.f32 %v5761, %v5813
        %5815 = vmatmul.f32.gmra.mxu0 %v5739
        %v5816 = vpop.f32.mrf.mxu0
        %v5817 = vadd.f32 %v5761, %v5816
        %5818 = vmatmul.f32.gmra.mxu0 %v5740
        %v5819 = vpop.f32.mrf.mxu0
        %v5820 = vadd.f32 %v5761, %v5819
        %5821 = vmatmul.f32.gmra.mxu0 %v5741
        %v5822 = vpop.f32.mrf.mxu0
        %v5823 = vadd.f32 %v5761, %v5822
        %5824 = vmatmul.f32.gmra.mxu0 %v5742
        %v5825 = vpop.f32.mrf.mxu0
        %v5826 = vadd.f32 %v5761, %v5825
        %5827 = vdwg.mxu0
        %5828 = vst [vmem:[%s218] sm:$0xff] %v5781
        %5829 = vst [vmem:[%s218 + $0x8] sm:$0xff] %v5784
        %5830 = vst [vmem:[%s218 + $0x10] sm:$0xff] %v5787
        %5831 = vst [vmem:[%s218 + $0x18] sm:$0xff] %v5790
        %5832 = vst [vmem:[%s218 + $0x20] sm:$0xff] %v5793
        %5833 = vst [vmem:[%s218 + $0x28] sm:$0xff] %v5796
        %5834 = vst [vmem:[%s218 + $0x30] sm:$0xff] %v5799
        %5835 = vst [vmem:[%s218 + $0x38] sm:$0xff] %v5802
        %5836 = vst [vmem:[%s218 + $0x40] sm:$0xff] %v5805
        %5837 = vst [vmem:[%s218 + $0x48] sm:$0xff] %v5808
        %5838 = vst [vmem:[%s218 + $0x50] sm:$0xff] %v5811
        %5839 = vst [vmem:[%s218 + $0x58] sm:$0xff] %v5814
        %5840 = vst [vmem:[%s218 + $0x60] sm:$0xff] %v5817
        %5841 = vst [vmem:[%s218 + $0x68] sm:$0xff] %v5820
        %5842 = vst [vmem:[%s218 + $0x70] sm:$0xff] %v5823
        %5843 = vst [vmem:[%s218 + $0x78] sm:$0xff] %v5826
        %s5844 = sand.u32 %s137, 1
        %s5845 = scalar_lea.sflag [#allocation3], %s5844
        %s5846 = sand.u32 %s137, 1
        %s5847 = smul.addr %s5846, 128
        %s5848 = scalar_lea.vmem [#allocation2], %s5847
        // Predicated region
        $region41: #{tpu_custom_call.1} parent=39 // pred_check
          %p5849 = pneg %p147
        $region42: #{tpu_custom_call.1} parent=39 // pred_check_branch
          %5851 = sbr.rel (%p5849) target = $region44
        $region43: #{tpu_custom_call.1} parent=39 // pred_region
          %s5852 = smul.u32 16, %s19
          %5854 = vsyncadd %s5845, 0
          %s5855 = smul.addr %s5852, 8
          %s5856 = scalar_lea.hbm %s5, %s5855
          %s5857 = sshll.u32 %s5848, 4
          %s5858 = int_to_ptr.vmem [resolvable:$true] %s5857
          %s5859 = sshll.u32 %s5856, 4
          %s5860 = int_to_ptr.hbm [resolvable:$true] %s5859
          %5865 = dma.vmem_to_hbm [thread:$0]  %s5858, 2048, %s5860, %s5845, 128, 128, 8
        $region44: #{tpu_custom_call.1} parent=39 // pred_fallthru
          _
      $region40: #{tpu_custom_call.1} parent=5 // pred_fallthru
        _
      %p5866 = scmp.le.s32.totalorder 2, %s14
      // Predicated region
      $region45: #{tpu_custom_call.1} parent=5 // pred_check
        %p5867 = pneg %p5866
      $region46: #{tpu_custom_call.1} parent=5 // pred_check_branch
        %5869 = sbr.rel (%p5867) target = $region48
      $region47: #{tpu_custom_call.1} parent=5 // pred_region
        %s5870 = ssub.s32 %s14, 2
        // Predicated region
        $region49: #{tpu_custom_call.1} parent=47 // pred_check
          %p5871 = pneg %p153
        $region50: #{tpu_custom_call.1} parent=47 // pred_check_branch
          %5873 = sbr.rel (%p5871) target = $region52
        $region51: #{tpu_custom_call.1} parent=47 // pred_region
          %s5874 = sand.u32 %s138, 1
          %s5875 = scalar_lea.sflag [#allocation3], %s5874
          %s5876 = sand.u32 %s138, 1
          %s5877 = smul.addr %s5876, 128
          %s5878 = scalar_lea.vmem [#allocation2], %s5877
          %5880 = dma.done %s5875, 2048
        $region52: #{tpu_custom_call.1} parent=47 // pred_fallthru
          _
      $region48: #{tpu_custom_call.1} parent=5 // pred_fallthru
        _
    $region6: #{tpu_custom_call.1} parent=1 // loop_footer
      %s18 = sadd.s32 1, %s14
    $region7: #{tpu_custom_call.1} parent=1 // loop_footer_branch
      %13 = sbr.rel target = $region3
    $region8: #{tpu_custom_call.1} parent=1 // loop_exit
      _
    %5881 = vsyncpa [#allocation3], 1
    %s5882 = scalar_lea.sflag [#allocation3], 1
    %5883 = vsyncpa %s5882, 1

</llo_original>
